<compile_context>
chip_gen: v7x
topology: tpu7x:2x2x1
jax: 0.10.0
libtpu: 0.0.40
codegen_flags: <defaults>
</compile_context>

<pallas_src>
import numpy as np
import jax
import jax.numpy as jnp
from jax.experimental import pallas as pl
from jax.experimental.pallas import tpu as pltpu

# ----------------------------- model constants -----------------------------
FOV = 9
IN_W = IN_H = FOV + 2                    # 11
NUM_INPUT_FEATURES = 32                  # numInputFeatures == cnn_output_size
HEADS = 2                                # num_attention_heads
NUM_CLASSES = 5
CNN_CHANNELS = [3, 32, 32, 64, 64, 128]
BN_EPS = 1e-5
N_AGENTS = 8                             # graph nodes == CNN batch


# ===========================================================================
# Pallas kernel 1: conv hot path  relu(patches @ w' + b')   (BN pre-folded)
#   used for conv layers 0..2 (im2col built in jit-fused XLA glue).
# ===========================================================================
def _conv_mm_kernel(p_ref, w_ref, b_ref, o_ref):
    acc = jnp.dot(p_ref[...], w_ref[...], preferred_element_type=jnp.float32)
    o_ref[...] = jnp.maximum(acc + b_ref[...], 0.0).astype(o_ref.dtype)


def conv_mm(p, w, b):
    """p: [M, K] bf16, w: [K, C] bf16, b: [1, C] f32 -> relu(p @ w + b): [M, C] bf16."""
    M, K = p.shape
    C = w.shape[1]
    cost = pl.CostEstimate(flops=2 * M * K * C, transcendentals=0,
                           bytes_accessed=2 * (M * K + K * C + M * C) + 4 * C)
    return pl.pallas_call(
        _conv_mm_kernel,
        out_shape=jax.ShapeDtypeStruct((M, C), jnp.bfloat16),
        grid=(1,),
        in_specs=[
            pl.BlockSpec((M, K), lambda i: (0, 0)),
            pl.BlockSpec((K, C), lambda i: (0, 0)),
            pl.BlockSpec((1, C), lambda i: (0, 0)),
        ],
        out_specs=pl.BlockSpec((M, C), lambda i: (0, 0)),
        compiler_params=pltpu.CompilerParams(dimension_semantics=("arbitrary",)),
        cost_estimate=cost,
    )(p, w, b)


# ===========================================================================
# Pallas kernel 2: fused tail
#   conv3 -> conv4 -> 2x2 max-pool -> compress Linear+ReLU -> {gnn1, gnn2}
#   GATConv(+ReLU) -> actions MLP.  Single launch; intermediates never hit HBM.
#
#   conv3/conv4 run on a 2x2 spatial grid; they are expressed as one dense
#   matmul each against a precomputed "BigW" where the 4 spatial positions are
#   folded into the lane axis (pos-major [pos, channel] lane order).
# ===========================================================================
def _head_kernel(x2_ref, adj_ref, wconv_ref, wfc_ref, ps_ref, o_ref, g_scr):
    F = NUM_INPUT_FEATURES                                  # 32
    HF = HEADS * F                                          # 64

    # ---- conv layer 3: [8,256] @ [256,256]  (+ folded BN bias, ReLU) ----
    h3 = jnp.dot(x2_ref[...], wconv_ref[:, 0:256],
                 preferred_element_type=jnp.float32)
    h3 = jnp.maximum(h3 + ps_ref[1:2, 0:256], 0.0)

    # ---- conv layer 4: [8,256] @ [256,512] ----
    h4 = jnp.dot(h3.astype(jnp.bfloat16), wconv_ref[:, 256:768],
                 preferred_element_type=jnp.float32)
    h4 = jnp.maximum(h4 + ps_ref[0:1, 0:512], 0.0)

    # ---- 2x2 max-pool over the 4 spatial positions (128-lane blocks) ----
    feat = jnp.maximum(jnp.maximum(h4[:, 0:128], h4[:, 128:256]),
                       jnp.maximum(h4[:, 256:384], h4[:, 384:512]))   # [8,128]

    # ---- compress MLP: Linear(128 -> 32) + ReLU ----
    xc = jnp.dot(feat.astype(jnp.bfloat16), wfc_ref[0:128, 128:160],
                 preferred_element_type=jnp.float32)
    xc = jnp.maximum(xc + ps_ref[3:4, 0:F], 0.0)                      # [8,32]

    # ---- GAT feature transform, both branches / heads: [8,32] @ [32,128] ----
    h = jnp.dot(xc.astype(jnp.bfloat16), wfc_ref[0:32, 0:128],
                preferred_element_type=jnp.float32)                   # [8,128]

    # ---- attention logits; per-head lin weight pre-folded into att vectors ----
    watt = ps_ref[8:16, 0:F]                                          # [8,32]
    # alpha_dst[i, idx] and alpha_src[j, idx] via two tiny MXU matmuls
    D = jax.lax.dot_general(xc, watt[0:4, :], (((1,), (1,)), ((), ())),
                            preferred_element_type=jnp.float32)       # [8,4]
    ST = jax.lax.dot_general(watt[4:8, :], xc, (((1,), (1,)), ((), ())),
                             preferred_element_type=jnp.float32)      # [4,8]

    adj_pos = adj_ref[...] > 0.0
    neg_inf = jnp.float32(-1e30)
    for idx in range(2 * HEADS):                     # (branch, head) flattened
        e = D[:, idx:idx + 1] + ST[idx:idx + 1, :]   # e[i, j] = a_dst[i] + a_src[j]
        e = jnp.where(e > 0, e, 0.2 * e)             # leaky_relu(0.2)
        e = jnp.where(adj_pos, e, neg_inf)           # mask edges j -> i
        e = e - jnp.max(e, axis=-1, keepdims=True)   # softmax over sources j
        p = jnp.exp(e)
        p = p * pl.reciprocal(jnp.sum(p, axis=-1, keepdims=True), approx=True)
        g_scr[:, idx * F:(idx + 1) * F] = jnp.dot(
            p, h[:, idx * F:(idx + 1) * F], preferred_element_type=jnp.float32)

    # ---- GAT bias + ReLU (both branches), then actions MLP parallel combine ----
    g = jnp.maximum(g_scr[...] + ps_ref[2:3, 0:2 * HF], 0.0)          # [8,128]
    gsum = g[:, 0:HF] + g[:, HF:2 * HF]                               # g1 + g2, [8,64]
    # lin0(g1)+lin0(g2) == (g1+g2) @ w0 + 2*b0  (2*b0 is pre-stored in ps row 4)
    y = jnp.dot(gsum.astype(jnp.bfloat16), wfc_ref[32:96, 0:F],
                preferred_element_type=jnp.float32)
    y = jnp.maximum(y + ps_ref[4:5, 0:F], 0.0)
    # TODO(synk): F.dropout(p=0.2) between MLP layers omitted (use_dropout=False / eval).
    out = jnp.dot(y.astype(jnp.bfloat16), wfc_ref[96:128, 0:F],
                  preferred_element_type=jnp.float32)                 # w1 padded to 32 cols
    out = out + ps_ref[5:6, 0:F]                                      # b1 padded to 32
    o_ref[...] = out[:, 0:NUM_CLASSES]


def fused_head(x2p, adj, hp):
    N = x2p.shape[0]
    flops = (2 * N * (256 * 256 + 256 * 512 + 128 * 32 + 32 * 128 + 2 * 32 * 4
                      + 64 * 32 + 32 * 32) + 2 * HEADS * 2 * N * N * 32)
    bytes_acc = (N * 256 * 2 + N * N * 4 + 256 * 768 * 2 + 128 * 160 * 2
                 + 16 * 512 * 4 + N * NUM_CLASSES * 4)
    cost = pl.CostEstimate(flops=flops, transcendentals=2 * HEADS * (N * N + N),
                           bytes_accessed=bytes_acc)
    return pl.pallas_call(
        _head_kernel,
        out_shape=jax.ShapeDtypeStruct((N, NUM_CLASSES), jnp.float32),
        grid=(1,),
        in_specs=[
            pl.BlockSpec((N, 256), lambda i: (0, 0)),       # layer-2 pooled activations
            pl.BlockSpec((N, N), lambda i: (0, 0)),         # adjacency (dst, src)
            pl.BlockSpec((256, 768), lambda i: (0, 0)),     # BigW3 | BigW4 (bf16)
            pl.BlockSpec((128, 160), lambda i: (0, 0)),     # packed wg/w0/w1/wc (bf16)
            pl.BlockSpec((16, 512), lambda i: (0, 0)),      # packed biases + att folds (f32)
        ],
        out_specs=pl.BlockSpec((N, NUM_CLASSES), lambda i: (0, 0)),
        scratch_shapes=[pltpu.VMEM((N, 2 * HEADS * NUM_INPUT_FEATURES), jnp.float32)],
        compiler_params=pltpu.CompilerParams(dimension_semantics=("arbitrary",)),
        cost_estimate=cost,
    )(x2p, adj, hp['w_conv'], hp['w_fc'], hp['p_small'])


# ============================ plain-JAX glue ================================

def im2col_3x3_nhwc(x):
    """x: [N, H, W, C] -> [N*H*W, 9*C] (kernel 3, stride 1, pad 1), col order (ky,kx,c)."""
    N, H, W, C = x.shape
    xp = jnp.pad(x, ((0, 0), (1, 1), (1, 1), (0, 0)))
    cols = [xp[:, dy:dy + H, dx:dx + W, :] for dy in range(3) for dx in range(3)]
    return jnp.concatenate(cols, axis=-1).reshape(N * H * W, 9 * C)
    # TODO(synk): im2col / the 2x2 pools for layers 0-2 stay in jit-fused XLA glue; an
    # in-kernel formulation would need value reshapes whose Mosaic lowering is
    # shape-dependent, so it is not attempted (layers 3-4 ARE fully fused, see head).


def max_pool_2x2(y):
    """NHWC 2x2 max-pool, floor mode (matches torch.max_pool2d(kernel_size=2))."""
    N, H, W, C = y.shape
    H2, W2 = H // 2, W // 2
    return y[:, :H2 * 2, :W2 * 2, :].reshape(N, H2, 2, W2, 2, C).max(axis=(2, 4))


# ============================ parameters ====================================

def init_params(key):
    keys = iter(jax.random.split(key, 64))

    def nrm(shape, scale=1.0):
        return np.asarray(scale * jax.random.normal(next(keys), shape, jnp.float32))

    # --- conv + eval-mode BatchNorm (running_mean=0, running_var=1), BN folded ---
    conv_w, conv_b = [], []
    for l in range(len(CNN_CHANNELS) - 1):
        cin, cout = CNN_CHANNELS[l], CNN_CHANNELS[l + 1]
        w = nrm((cout, cin, 3, 3), 1.0 / np.sqrt(cin * 9))
        b = nrm((cout,), 0.05)
        gamma = 1.0 + nrm((cout,), 0.1)
        beta = nrm((cout,), 0.1)
        scale = gamma / np.sqrt(1.0 + BN_EPS)
        conv_w.append(w * scale[:, None, None, None])        # folded weight, OIHW
        conv_b.append(b * scale + beta)                      # folded bias

    params = {}

    # layers 0..2: im2col matmul weights [9*cin, cout], row order (ky, kx, cin)
    convs = []
    for l in range(3):
        cin, cout = CNN_CHANNELS[l], CNN_CHANNELS[l + 1]
        wmat = conv_w[l].transpose(2, 3, 1, 0).reshape(9 * cin, cout)
        convs.append(dict(w=jnp.asarray(wmat, jnp.bfloat16),
                          b=jnp.asarray(conv_b[l].reshape(1, cout), jnp.float32)))
    params['convs'] = convs

    # layers 3..4: 3x3 conv on a 2x2 grid as a dense matmul ("BigW", pos-major lanes)
    def big_w(w_oihw):                                       # [Cout, Cin, 3, 3]
        Cout, Cin = w_oihw.shape[0], w_oihw.shape[1]
        big = np.zeros((4 * Cin, 4 * Cout), np.float32)
        for p_in in range(4):
            yi, xi = divmod(p_in, 2)
            for p_out in range(4):
                yo, xo = divmod(p_out, 2)
                ky, kx = yi - yo + 1, xi - xo + 1            # always in [0, 2]
                big[p_in * Cin:(p_in + 1) * Cin,
                    p_out * Cout:(p_out + 1) * Cout] = w_oihw[:, :, ky, kx].T
        return big

    w3 = big_w(conv_w[3])                                    # [256, 256]
    w4 = big_w(conv_w[4])                                    # [256, 512]
    w_conv = jnp.asarray(np.concatenate([w3, w4], axis=1), jnp.bfloat16)   # [256, 768]
    b3 = np.tile(conv_b[3], 4)                               # [256]
    b4 = np.tile(conv_b[4], 4)                               # [512]

    F = NUM_INPUT_FEATURES
    # compress MLP: Linear(128 -> 32)
    wc = nrm((CNN_CHANNELS[-1], F), 1.0 / np.sqrt(CNN_CHANNELS[-1]))
    bc = nrm((F,), 0.05)

    # GAT params per branch (PyG GATConv: lin (no bias), att_src/att_dst, bias)
    def gat(fin, fout):
        hf = HEADS * fout
        return dict(w=nrm((fin, hf), 1.0 / np.sqrt(fin)),
                    att_src=nrm((HEADS, fout), 0.3),
                    att_dst=nrm((HEADS, fout), 0.3),
                    bias=nrm((hf,), 0.05))

    g1 = gat(F, F)
    g2 = gat(F, F)
    wg = np.concatenate([g1['w'], g2['w']], axis=1)                       # [32, 128]
    asrc = np.concatenate([g1['att_src'], g2['att_src']], axis=0)         # [4, 32]
    adst = np.concatenate([g1['att_dst'], g2['att_dst']], axis=0)         # [4, 32]
    bg = np.concatenate([g1['bias'], g2['bias']])                         # [128]
    # fold per-head lin weight into attention vectors:  alpha = x @ (W_head @ a_head)
    wd_t = np.stack([wg[:, i * F:(i + 1) * F] @ adst[i] for i in range(2 * HEADS)])  # [4,32]
    ws_t = np.stack([wg[:, i * F:(i + 1) * F] @ asrc[i] for i in range(2 * HEADS)])  # [4,32]

    # actions MLP: [heads*32 -> 32 -> 5]
    w0 = nrm((HEADS * F, F), 1.0 / np.sqrt(HEADS * F))                    # [64, 32]
    b0 = nrm((F,), 0.05)
    w1 = nrm((F, NUM_CLASSES), 1.0 / np.sqrt(F))                          # [32, 5]
    b1 = nrm((NUM_CLASSES,), 0.05)

    # ---- pack the small matmul weights into one bf16 array [128, 160] ----
    w_fc = np.zeros((128, 160), np.float32)
    w_fc[0:32, 0:128] = wg                 # GAT lin (both branches)
    w_fc[32:96, 0:F] = w0                  # actions lin0
    w_fc[96:128, 0:NUM_CLASSES] = w1       # actions lin1 (zero-padded to 32 cols)
    w_fc[0:128, 128:160] = wc              # compress lin
    w_fc = jnp.asarray(w_fc, jnp.bfloat16)

    # ---- pack biases + folded attention vectors into one f32 array [16, 512] ----
    ps = np.zeros((16, 512), np.float32)
    ps[0, 0:512] = b4
    ps[1, 0:256] = b3
    ps[2, 0:128] = bg
    ps[3, 0:F] = bc
    ps[4, 0:F] = 2.0 * b0                  # lin0 applied to both branches => +b0 twice
    ps[5, 0:NUM_CLASSES] = b1
    ps[8:12, 0:F] = wd_t                   # alpha_dst folds
    ps[12:16, 0:F] = ws_t                  # alpha_src folds
    p_small = jnp.asarray(ps, jnp.float32)

    params['head'] = dict(w_conv=w_conv, w_fc=w_fc, p_small=p_small)
    return params


# ============================ forward =======================================

def forward(params, x_nchw, adj):
    # ---- CNN layers 0..2 (NHWC bf16; BN folded into conv weights) ----
    x = jnp.transpose(x_nchw, (0, 2, 3, 1)).astype(jnp.bfloat16)   # NCHW -> NHWC, bf16
    N = x.shape[0]
    for i in range(3):
        cp = params['convs'][i]
        H, W = x.shape[1], x.shape[2]
        cout = cp['w'].shape[1]
        p = im2col_3x3_nhwc(x)                                      # [N*H*W, 9*Cin]
        y = conv_mm(p, cp['w'], cp['b']).reshape(N, H, W, cout)
        if i % 2 == 0:
            y = max_pool_2x2(y)
        x = y
    # x is now [N, 2, 2, 64]; flatten pos-major into lanes -> [N, 256]
    x2p = x.reshape(N, 4 * CNN_CHANNELS[4])

    # ---- conv3 + conv4 + pool + compress + gnn1 + gnn2 + actions MLP: one kernel ----
    return fused_head(x2p, adj, params['head'])


# ============================ main ==========================================

if __name__ == "__main__":
    key = jax.random.PRNGKey(0)
    k_params, k_x = jax.random.split(key)

    params = init_params(k_params)

    # CNN / node observations: one FOV patch per agent (NCHW, like PyTorch).
    x = jax.random.normal(k_x, (N_AGENTS, 3, IN_H, IN_W), jnp.float32)

    # Deterministic bidirectional ring graph, dense adjacency adj[dst, src] + self loops
    # (PyG GATConv adds self-loops by default).
    src = jnp.arange(N_AGENTS)
    dst = (src + 1) % N_AGENTS
    adj = jnp.zeros((N_AGENTS, N_AGENTS), jnp.float32)
    adj = adj.at[dst, src].set(1.0)
    adj = adj.at[src, dst].set(1.0)
    adj = adj + jnp.eye(N_AGENTS, dtype=jnp.float32)

    fwd = jax.jit(forward)
    out = jax.block_until_ready(fwd(params, x, adj))   # [N_AGENTS, NUM_CLASSES]
    assert out.shape == (N_AGENTS, NUM_CLASSES)
    print("KERNEL_OK")
</pallas_src>

<mosaic_0001>
module attributes {stable_mosaic.version = 11 : i64} {
  func.func @_conv_mm_kernel(%arg0: i32, %arg1: memref<968x27xbf16, #tpu.memory_space<vmem>>, %arg2: memref<27x32xbf16, #tpu.memory_space<vmem>>, %arg3: memref<1x32xf32, #tpu.memory_space<vmem>>, %arg4: memref<968x32xbf16, #tpu.memory_space<vmem>>) attributes {dimension_semantics = [#tpu.dimension_semantics<arbitrary>], iteration_bounds = array<i64: 1>, scalar_prefetch = 0 : i64, scratch_operands = 0 : i64, tpu.core_type = #tpu.core_type<tc>, window_params = [{pipeline_mode = #tpu.pipeline_mode<synchronous>, transform_indices = @transform_0, window_bounds = array<i64: 968, 27>}, {pipeline_mode = #tpu.pipeline_mode<synchronous>, transform_indices = @transform_1, window_bounds = array<i64: 27, 32>}, {pipeline_mode = #tpu.pipeline_mode<synchronous>, transform_indices = @transform_2, window_bounds = array<i64: 1, 32>}, {pipeline_mode = #tpu.pipeline_mode<synchronous>, transform_indices = @transform_3, window_bounds = array<i64: 968, 32>}]} {
    %c0 = arith.constant 0 : index
    %c0_0 = arith.constant 0 : index
    %0 = vector.load %arg1[%c0, %c0_0] : memref<968x27xbf16, #tpu.memory_space<vmem>>, vector<968x27xbf16>
    %c0_1 = arith.constant 0 : index
    %c0_2 = arith.constant 0 : index
    %1 = vector.load %arg2[%c0_1, %c0_2] : memref<27x32xbf16, #tpu.memory_space<vmem>>, vector<27x32xbf16>
    %cst = arith.constant dense<0.000000e+00> : vector<968x32xf32>
    %2 = tpu.matmul %0, %1, %cst {dimension_numbers = #tpu.dot_dimension_numbers<[1], [0], [0], [1], [0, 0, 1, 1], [], []>} : vector<968x27xbf16>, vector<27x32xbf16>, vector<968x32xf32> -> vector<968x32xf32>
    %c0_3 = arith.constant 0 : index
    %c0_4 = arith.constant 0 : index
    %3 = vector.load %arg3[%c0_3, %c0_4] : memref<1x32xf32, #tpu.memory_space<vmem>>, vector<1x32xf32>
    %4 = vector.broadcast %3 : vector<1x32xf32> to vector<968x32xf32>
    %5 = arith.addf %2, %4 : vector<968x32xf32>
    %cst_5 = arith.constant 0.000000e+00 : f32
    %6 = vector.broadcast %cst_5 : f32 to vector<968x32xf32>
    %7 = arith.maximumf %5, %6 : vector<968x32xf32>
    %8 = arith.truncf %7 : vector<968x32xf32> to vector<968x32xbf16>
    %c0_6 = arith.constant 0 : index
    %c0_7 = arith.constant 0 : index
    %9 = vector.load %arg4[%c0_6, %c0_7] : memref<968x32xbf16, #tpu.memory_space<vmem>>, vector<968x32xbf16>
    tpu.vector_store %arg4[%c0_6, %c0_7], %8 {strides = array<i32>} : memref<968x32xbf16, #tpu.memory_space<vmem>>, vector<968x32xbf16>,
    return
  }
  func.func @transform_0(%arg0: i32) -> (i32, i32) {
    %c0_i32 = arith.constant 0 : i32
    %c0_i32_0 = arith.constant 0 : i32
    %c0_i32_1 = arith.constant 0 : i32
    return %c0_i32, %c0_i32_0 : i32, i32
  }
  func.func @transform_1(%arg0: i32) -> (i32, i32) {
    %c0_i32 = arith.constant 0 : i32
    %c0_i32_0 = arith.constant 0 : i32
    %c0_i32_1 = arith.constant 0 : i32
    return %c0_i32, %c0_i32_0 : i32, i32
  }
  func.func @transform_2(%arg0: i32) -> (i32, i32) {
    %c0_i32 = arith.constant 0 : i32
    %c0_i32_0 = arith.constant 0 : i32
    %c0_i32_1 = arith.constant 0 : i32
    return %c0_i32, %c0_i32_0 : i32, i32
  }
  func.func @transform_3(%arg0: i32) -> (i32, i32) {
    %c0_i32 = arith.constant 0 : i32
    %c0_i32_0 = arith.constant 0 : i32
    %c0_i32_1 = arith.constant 0 : i32
    return %c0_i32, %c0_i32_0 : i32, i32
  }
}

module attributes {stable_mosaic.version = 11 : i64} {
  func.func @_conv_mm_kernel(%arg0: i32, %arg1: memref<200x288xbf16, #tpu.memory_space<vmem>>, %arg2: memref<288x32xbf16, #tpu.memory_space<vmem>>, %arg3: memref<1x32xf32, #tpu.memory_space<vmem>>, %arg4: memref<200x32xbf16, #tpu.memory_space<vmem>>) attributes {dimension_semantics = [#tpu.dimension_semantics<arbitrary>], iteration_bounds = array<i64: 1>, scalar_prefetch = 0 : i64, scratch_operands = 0 : i64, tpu.core_type = #tpu.core_type<tc>, window_params = [{pipeline_mode = #tpu.pipeline_mode<synchronous>, transform_indices = @transform_0, window_bounds = array<i64: 200, 288>}, {pipeline_mode = #tpu.pipeline_mode<synchronous>, transform_indices = @transform_1, window_bounds = array<i64: 288, 32>}, {pipeline_mode = #tpu.pipeline_mode<synchronous>, transform_indices = @transform_2, window_bounds = array<i64: 1, 32>}, {pipeline_mode = #tpu.pipeline_mode<synchronous>, transform_indices = @transform_3, window_bounds = array<i64: 200, 32>}]} {
    %c0 = arith.constant 0 : index
    %c0_0 = arith.constant 0 : index
    %0 = vector.load %arg1[%c0, %c0_0] : memref<200x288xbf16, #tpu.memory_space<vmem>>, vector<200x288xbf16>
    %c0_1 = arith.constant 0 : index
    %c0_2 = arith.constant 0 : index
    %1 = vector.load %arg2[%c0_1, %c0_2] : memref<288x32xbf16, #tpu.memory_space<vmem>>, vector<288x32xbf16>
    %cst = arith.constant dense<0.000000e+00> : vector<200x32xf32>
    %2 = tpu.matmul %0, %1, %cst {dimension_numbers = #tpu.dot_dimension_numbers<[1], [0], [0], [1], [0, 0, 1, 1], [], []>} : vector<200x288xbf16>, vector<288x32xbf16>, vector<200x32xf32> -> vector<200x32xf32>
    %c0_3 = arith.constant 0 : index
    %c0_4 = arith.constant 0 : index
    %3 = vector.load %arg3[%c0_3, %c0_4] : memref<1x32xf32, #tpu.memory_space<vmem>>, vector<1x32xf32>
    %4 = vector.broadcast %3 : vector<1x32xf32> to vector<200x32xf32>
    %5 = arith.addf %2, %4 : vector<200x32xf32>
    %cst_5 = arith.constant 0.000000e+00 : f32
    %6 = vector.broadcast %cst_5 : f32 to vector<200x32xf32>
    %7 = arith.maximumf %5, %6 : vector<200x32xf32>
    %8 = arith.truncf %7 : vector<200x32xf32> to vector<200x32xbf16>
    %c0_6 = arith.constant 0 : index
    %c0_7 = arith.constant 0 : index
    %9 = vector.load %arg4[%c0_6, %c0_7] : memref<200x32xbf16, #tpu.memory_space<vmem>>, vector<200x32xbf16>
    tpu.vector_store %arg4[%c0_6, %c0_7], %8 {strides = array<i32>} : memref<200x32xbf16, #tpu.memory_space<vmem>>, vector<200x32xbf16>,
    return
  }
  func.func @transform_0(%arg0: i32) -> (i32, i32) {
    %c0_i32 = arith.constant 0 : i32
    %c0_i32_0 = arith.constant 0 : i32
    %c0_i32_1 = arith.constant 0 : i32
    return %c0_i32, %c0_i32_0 : i32, i32
  }
  func.func @transform_1(%arg0: i32) -> (i32, i32) {
    %c0_i32 = arith.constant 0 : i32
    %c0_i32_0 = arith.constant 0 : i32
    %c0_i32_1 = arith.constant 0 : i32
    return %c0_i32, %c0_i32_0 : i32, i32
  }
  func.func @transform_2(%arg0: i32) -> (i32, i32) {
    %c0_i32 = arith.constant 0 : i32
    %c0_i32_0 = arith.constant 0 : i32
    %c0_i32_1 = arith.constant 0 : i32
    return %c0_i32, %c0_i32_0 : i32, i32
  }
  func.func @transform_3(%arg0: i32) -> (i32, i32) {
    %c0_i32 = arith.constant 0 : i32
    %c0_i32_0 = arith.constant 0 : i32
    %c0_i32_1 = arith.constant 0 : i32
    return %c0_i32, %c0_i32_0 : i32, i32
  }
}

module attributes {stable_mosaic.version = 11 : i64} {
  func.func @_conv_mm_kernel(%arg0: i32, %arg1: memref<200x288xbf16, #tpu.memory_space<vmem>>, %arg2: memref<288x64xbf16, #tpu.memory_space<vmem>>, %arg3: memref<1x64xf32, #tpu.memory_space<vmem>>, %arg4: memref<200x64xbf16, #tpu.memory_space<vmem>>) attributes {dimension_semantics = [#tpu.dimension_semantics<arbitrary>], iteration_bounds = array<i64: 1>, scalar_prefetch = 0 : i64, scratch_operands = 0 : i64, tpu.core_type = #tpu.core_type<tc>, window_params = [{pipeline_mode = #tpu.pipeline_mode<synchronous>, transform_indices = @transform_0, window_bounds = array<i64: 200, 288>}, {pipeline_mode = #tpu.pipeline_mode<synchronous>, transform_indices = @transform_1, window_bounds = array<i64: 288, 64>}, {pipeline_mode = #tpu.pipeline_mode<synchronous>, transform_indices = @transform_2, window_bounds = array<i64: 1, 64>}, {pipeline_mode = #tpu.pipeline_mode<synchronous>, transform_indices = @transform_3, window_bounds = array<i64: 200, 64>}]} {
    %c0 = arith.constant 0 : index
    %c0_0 = arith.constant 0 : index
    %0 = vector.load %arg1[%c0, %c0_0] : memref<200x288xbf16, #tpu.memory_space<vmem>>, vector<200x288xbf16>
    %c0_1 = arith.constant 0 : index
    %c0_2 = arith.constant 0 : index
    %1 = vector.load %arg2[%c0_1, %c0_2] : memref<288x64xbf16, #tpu.memory_space<vmem>>, vector<288x64xbf16>
    %cst = arith.constant dense<0.000000e+00> : vector<200x64xf32>
    %2 = tpu.matmul %0, %1, %cst {dimension_numbers = #tpu.dot_dimension_numbers<[1], [0], [0], [1], [0, 0, 1, 1], [], []>} : vector<200x288xbf16>, vector<288x64xbf16>, vector<200x64xf32> -> vector<200x64xf32>
    %c0_3 = arith.constant 0 : index
    %c0_4 = arith.constant 0 : index
    %3 = vector.load %arg3[%c0_3, %c0_4] : memref<1x64xf32, #tpu.memory_space<vmem>>, vector<1x64xf32>
    %4 = vector.broadcast %3 : vector<1x64xf32> to vector<200x64xf32>
    %5 = arith.addf %2, %4 : vector<200x64xf32>
    %cst_5 = arith.constant 0.000000e+00 : f32
    %6 = vector.broadcast %cst_5 : f32 to vector<200x64xf32>
    %7 = arith.maximumf %5, %6 : vector<200x64xf32>
    %8 = arith.truncf %7 : vector<200x64xf32> to vector<200x64xbf16>
    %c0_6 = arith.constant 0 : index
    %c0_7 = arith.constant 0 : index
    %9 = vector.load %arg4[%c0_6, %c0_7] : memref<200x64xbf16, #tpu.memory_space<vmem>>, vector<200x64xbf16>
    tpu.vector_store %arg4[%c0_6, %c0_7], %8 {strides = array<i32>} : memref<200x64xbf16, #tpu.memory_space<vmem>>, vector<200x64xbf16>,
    return
  }
  func.func @transform_0(%arg0: i32) -> (i32, i32) {
    %c0_i32 = arith.constant 0 : i32
    %c0_i32_0 = arith.constant 0 : i32
    %c0_i32_1 = arith.constant 0 : i32
    return %c0_i32, %c0_i32_0 : i32, i32
  }
  func.func @transform_1(%arg0: i32) -> (i32, i32) {
    %c0_i32 = arith.constant 0 : i32
    %c0_i32_0 = arith.constant 0 : i32
    %c0_i32_1 = arith.constant 0 : i32
    return %c0_i32, %c0_i32_0 : i32, i32
  }
  func.func @transform_2(%arg0: i32) -> (i32, i32) {
    %c0_i32 = arith.constant 0 : i32
    %c0_i32_0 = arith.constant 0 : i32
    %c0_i32_1 = arith.constant 0 : i32
    return %c0_i32, %c0_i32_0 : i32, i32
  }
  func.func @transform_3(%arg0: i32) -> (i32, i32) {
    %c0_i32 = arith.constant 0 : i32
    %c0_i32_0 = arith.constant 0 : i32
    %c0_i32_1 = arith.constant 0 : i32
    return %c0_i32, %c0_i32_0 : i32, i32
  }
}

module attributes {stable_mosaic.version = 11 : i64} {
  func.func @_head_kernel(%arg0: i32, %arg1: memref<8x256xbf16, #tpu.memory_space<vmem>>, %arg2: memref<8x8xf32, #tpu.memory_space<vmem>>, %arg3: memref<256x768xbf16, #tpu.memory_space<vmem>>, %arg4: memref<128x160xbf16, #tpu.memory_space<vmem>>, %arg5: memref<16x512xf32, #tpu.memory_space<vmem>>, %arg6: memref<8x5xf32, #tpu.memory_space<vmem>>, %arg7: memref<8x128xf32, #tpu.memory_space<vmem>>) attributes {dimension_semantics = [#tpu.dimension_semantics<arbitrary>], iteration_bounds = array<i64: 1>, scalar_prefetch = 0 : i64, scratch_operands = 1 : i64, tpu.core_type = #tpu.core_type<tc>, window_params = [{pipeline_mode = #tpu.pipeline_mode<synchronous>, transform_indices = @transform_0, window_bounds = array<i64: 8, 256>}, {pipeline_mode = #tpu.pipeline_mode<synchronous>, transform_indices = @transform_1, window_bounds = array<i64: 8, 8>}, {pipeline_mode = #tpu.pipeline_mode<synchronous>, transform_indices = @transform_2, window_bounds = array<i64: 256, 768>}, {pipeline_mode = #tpu.pipeline_mode<synchronous>, transform_indices = @transform_3, window_bounds = array<i64: 128, 160>}, {pipeline_mode = #tpu.pipeline_mode<synchronous>, transform_indices = @transform_4, window_bounds = array<i64: 16, 512>}, {pipeline_mode = #tpu.pipeline_mode<synchronous>, transform_indices = @transform_5, window_bounds = array<i64: 8, 5>}]} {
    %c0 = arith.constant 0 : index
    %c0_0 = arith.constant 0 : index
    %0 = vector.load %arg1[%c0, %c0_0] : memref<8x256xbf16, #tpu.memory_space<vmem>>, vector<8x256xbf16>
    %c0_1 = arith.constant 0 : index
    %c0_2 = arith.constant 0 : index
    %1 = vector.load %arg3[%c0_1, %c0_2] : memref<256x768xbf16, #tpu.memory_space<vmem>>, vector<256x256xbf16>
    %cst = arith.constant dense<0.000000e+00> : vector<8x256xf32>
    %2 = tpu.matmul %0, %1, %cst {dimension_numbers = #tpu.dot_dimension_numbers<[1], [0], [0], [1], [0, 0, 1, 1], [], []>} : vector<8x256xbf16>, vector<256x256xbf16>, vector<8x256xf32> -> vector<8x256xf32>
    %c1 = arith.constant 1 : index
    %c0_3 = arith.constant 0 : index
    %3 = vector.load %arg5[%c1, %c0_3] : memref<16x512xf32, #tpu.memory_space<vmem>>, vector<1x256xf32>
    %4 = vector.broadcast %3 : vector<1x256xf32> to vector<8x256xf32>
    %5 = arith.addf %2, %4 : vector<8x256xf32>
    %cst_4 = arith.constant 0.000000e+00 : f32
    %6 = vector.broadcast %cst_4 : f32 to vector<8x256xf32>
    %7 = arith.maximumf %5, %6 : vector<8x256xf32>
    %8 = arith.truncf %7 : vector<8x256xf32> to vector<8x256xbf16>
    %c0_5 = arith.constant 0 : index
    %c256 = arith.constant 256 : index
    %9 = vector.load %arg3[%c0_5, %c256] : memref<256x768xbf16, #tpu.memory_space<vmem>>, vector<256x512xbf16>
    %cst_6 = arith.constant dense<0.000000e+00> : vector<8x512xf32>
    %10 = tpu.matmul %8, %9, %cst_6 {dimension_numbers = #tpu.dot_dimension_numbers<[1], [0], [0], [1], [0, 0, 1, 1], [], []>} : vector<8x256xbf16>, vector<256x512xbf16>, vector<8x512xf32> -> vector<8x512xf32>
    %c0_7 = arith.constant 0 : index
    %c0_8 = arith.constant 0 : index
    %11 = vector.load %arg5[%c0_7, %c0_8] : memref<16x512xf32, #tpu.memory_space<vmem>>, vector<1x512xf32>
    %12 = vector.broadcast %11 : vector<1x512xf32> to vector<8x512xf32>
    %13 = arith.addf %10, %12 : vector<8x512xf32>
    %cst_9 = arith.constant 0.000000e+00 : f32
    %14 = vector.broadcast %cst_9 : f32 to vector<8x512xf32>
    %15 = arith.maximumf %13, %14 : vector<8x512xf32>
    %16 = vector.extract_strided_slice %15 {offsets = [0, 0], sizes = [8, 128], strides = [1, 1]} : vector<8x512xf32> to vector<8x128xf32>
    %17 = vector.extract_strided_slice %15 {offsets = [0, 128], sizes = [8, 128], strides = [1, 1]} : vector<8x512xf32> to vector<8x128xf32>
    %18 = arith.maximumf %16, %17 : vector<8x128xf32>
    %19 = vector.extract_strided_slice %15 {offsets = [0, 256], sizes = [8, 128], strides = [1, 1]} : vector<8x512xf32> to vector<8x128xf32>
    %20 = vector.extract_strided_slice %15 {offsets = [0, 384], sizes = [8, 128], strides = [1, 1]} : vector<8x512xf32> to vector<8x128xf32>
    %21 = arith.maximumf %19, %20 : vector<8x128xf32>
    %22 = arith.maximumf %18, %21 : vector<8x128xf32>
    %23 = arith.truncf %22 : vector<8x128xf32> to vector<8x128xbf16>
    %c0_10 = arith.constant 0 : index
    %c128 = arith.constant 128 : index
    %24 = vector.load %arg4[%c0_10, %c128] : memref<128x160xbf16, #tpu.memory_space<vmem>>, vector<128x32xbf16>
    %cst_11 = arith.constant dense<0.000000e+00> : vector<8x32xf32>
    %25 = tpu.matmul %23, %24, %cst_11 {dimension_numbers = #tpu.dot_dimension_numbers<[1], [0], [0], [1], [0, 0, 1, 1], [], []>} : vector<8x128xbf16>, vector<128x32xbf16>, vector<8x32xf32> -> vector<8x32xf32>
    %c3 = arith.constant 3 : index
    %c0_12 = arith.constant 0 : index
    %26 = vector.load %arg5[%c3, %c0_12] : memref<16x512xf32, #tpu.memory_space<vmem>>, vector<1x32xf32>
    %27 = vector.broadcast %26 : vector<1x32xf32> to vector<8x32xf32>
    %28 = arith.addf %25, %27 : vector<8x32xf32>
    %cst_13 = arith.constant 0.000000e+00 : f32
    %29 = vector.broadcast %cst_13 : f32 to vector<8x32xf32>
    %30 = arith.maximumf %28, %29 : vector<8x32xf32>
    %31 = arith.truncf %30 : vector<8x32xf32> to vector<8x32xbf16>
    %c0_14 = arith.constant 0 : index
    %c0_15 = arith.constant 0 : index
    %32 = vector.load %arg4[%c0_14, %c0_15] : memref<128x160xbf16, #tpu.memory_space<vmem>>, vector<32x128xbf16>
    %cst_16 = arith.constant dense<0.000000e+00> : vector<8x128xf32>
    %33 = tpu.matmul %31, %32, %cst_16 {dimension_numbers = #tpu.dot_dimension_numbers<[1], [0], [0], [1], [0, 0, 1, 1], [], []>} : vector<8x32xbf16>, vector<32x128xbf16>, vector<8x128xf32> -> vector<8x128xf32>
    %c8 = arith.constant 8 : index
    %c0_17 = arith.constant 0 : index
    %34 = vector.load %arg5[%c8, %c0_17] : memref<16x512xf32, #tpu.memory_space<vmem>>, vector<8x32xf32>
    %35 = vector.extract_strided_slice %34 {offsets = [0, 0], sizes = [4, 32], strides = [1, 1]} : vector<8x32xf32> to vector<4x32xf32>
    %cst_18 = arith.constant dense<0.000000e+00> : vector<8x4xf32>
    %36 = tpu.matmul %30, %35, %cst_18 {dimension_numbers = #tpu.dot_dimension_numbers<[1], [1], [0], [0], [0, 0, 1, 0], [], []>} : vector<8x32xf32>, vector<4x32xf32>, vector<8x4xf32> -> vector<8x4xf32>
    %37 = vector.extract_strided_slice %34 {offsets = [4, 0], sizes = [4, 32], strides = [1, 1]} : vector<8x32xf32> to vector<4x32xf32>
    %cst_19 = arith.constant dense<0.000000e+00> : vector<4x8xf32>
    %38 = tpu.matmul %37, %30, %cst_19 {dimension_numbers = #tpu.dot_dimension_numbers<[1], [1], [0], [0], [0, 0, 1, 0], [], []>} : vector<4x32xf32>, vector<8x32xf32>, vector<4x8xf32> -> vector<4x8xf32>
    %c0_20 = arith.constant 0 : index
    %c0_21 = arith.constant 0 : index
    %39 = vector.load %arg2[%c0_20, %c0_21] : memref<8x8xf32, #tpu.memory_space<vmem>>, vector<8x8xf32>
    %cst_22 = arith.constant 0.000000e+00 : f32
    %40 = vector.broadcast %cst_22 : f32 to vector<8x8xf32>
    %41 = arith.cmpf ogt, %39, %40 : vector<8x8xf32>
    %42 = vector.extract_strided_slice %36 {offsets = [0, 0], sizes = [8, 1], strides = [1, 1]} : vector<8x4xf32> to vector<8x1xf32>
    %43 = vector.extract_strided_slice %38 {offsets = [0, 0], sizes = [1, 8], strides = [1, 1]} : vector<4x8xf32> to vector<1x8xf32>
    %44 = vector.broadcast %42 : vector<8x1xf32> to vector<8x8xf32>
    %45 = vector.broadcast %43 : vector<1x8xf32> to vector<8x8xf32>
    %46 = arith.addf %44, %45 : vector<8x8xf32>
    %cst_23 = arith.constant 0.000000e+00 : f32
    %47 = vector.broadcast %cst_23 : f32 to vector<8x8xf32>
    %48 = arith.cmpf ogt, %46, %47 : vector<8x8xf32>
    %cst_24 = arith.constant 2.000000e-01 : f32
    %49 = vector.broadcast %cst_24 : f32 to vector<8x8xf32>
    %50 = arith.mulf %49, %46 : vector<8x8xf32>
    %51 = arith.select %48, %46, %50 : vector<8x8xi1>, vector<8x8xf32>
    %cst_25 = arith.constant -1.000000e+30 : f32
    %52 = vector.broadcast %cst_25 : f32 to vector<8x8xf32>
    %53 = arith.select %41, %51, %52 : vector<8x8xi1>, vector<8x8xf32>
    %cst_26 = arith.constant dense<0xFF800000> : vector<8xf32>
    %54 = vector.multi_reduction <maximumf>, %53, %cst_26 [1] : vector<8x8xf32> to vector<8xf32>
    %55 = vector.shape_cast %54 : vector<8xf32> to vector<8x1xf32>
    %56 = vector.broadcast %55 : vector<8x1xf32> to vector<8x8xf32>
    %57 = arith.subf %53, %56 : vector<8x8xf32>
    %58 = math.exp %57 : vector<8x8xf32>
    %cst_27 = arith.constant dense<0.000000e+00> : vector<8xf32>
    %59 = vector.multi_reduction <add>, %58, %cst_27 [1] : vector<8x8xf32> to vector<8xf32>
    %60 = vector.shape_cast %59 : vector<8xf32> to vector<8x1xf32>
    %61 = tpu.reciprocal %60 {approx = true} : vector<8x1xf32> -> vector<8x1xf32>
    %62 = vector.broadcast %61 : vector<8x1xf32> to vector<8x8xf32>
    %63 = arith.mulf %58, %62 : vector<8x8xf32>
    %64 = vector.extract_strided_slice %33 {offsets = [0, 0], sizes = [8, 32], strides = [1, 1]} : vector<8x128xf32> to vector<8x32xf32>
    %cst_28 = arith.constant dense<0.000000e+00> : vector<8x32xf32>
    %65 = tpu.matmul %63, %64, %cst_28 {dimension_numbers = #tpu.dot_dimension_numbers<[1], [0], [0], [1], [0, 0, 1, 1], [], []>} : vector<8x8xf32>, vector<8x32xf32>, vector<8x32xf32> -> vector<8x32xf32>
    %c0_29 = arith.constant 0 : index
    %c0_30 = arith.constant 0 : index
    %66 = vector.load %arg7[%c0_29, %c0_30] : memref<8x128xf32, #tpu.memory_space<vmem>>, vector<8x32xf32>
    tpu.vector_store %arg7[%c0_29, %c0_30], %65 {strides = array<i32>} : memref<8x128xf32, #tpu.memory_space<vmem>>, vector<8x32xf32>,
    %67 = vector.extract_strided_slice %36 {offsets = [0, 1], sizes = [8, 1], strides = [1, 1]} : vector<8x4xf32> to vector<8x1xf32>
    %68 = vector.extract_strided_slice %38 {offsets = [1, 0], sizes = [1, 8], strides = [1, 1]} : vector<4x8xf32> to vector<1x8xf32>
    %69 = vector.broadcast %67 : vector<8x1xf32> to vector<8x8xf32>
    %70 = vector.broadcast %68 : vector<1x8xf32> to vector<8x8xf32>
    %71 = arith.addf %69, %70 : vector<8x8xf32>
    %cst_31 = arith.constant 0.000000e+00 : f32
    %72 = vector.broadcast %cst_31 : f32 to vector<8x8xf32>
    %73 = arith.cmpf ogt, %71, %72 : vector<8x8xf32>
    %cst_32 = arith.constant 2.000000e-01 : f32
    %74 = vector.broadcast %cst_32 : f32 to vector<8x8xf32>
    %75 = arith.mulf %74, %71 : vector<8x8xf32>
    %76 = arith.select %73, %71, %75 : vector<8x8xi1>, vector<8x8xf32>
    %cst_33 = arith.constant -1.000000e+30 : f32
    %77 = vector.broadcast %cst_33 : f32 to vector<8x8xf32>
    %78 = arith.select %41, %76, %77 : vector<8x8xi1>, vector<8x8xf32>
    %cst_34 = arith.constant dense<0xFF800000> : vector<8xf32>
    %79 = vector.multi_reduction <maximumf>, %78, %cst_34 [1] : vector<8x8xf32> to vector<8xf32>
    %80 = vector.shape_cast %79 : vector<8xf32> to vector<8x1xf32>
    %81 = vector.broadcast %80 : vector<8x1xf32> to vector<8x8xf32>
    %82 = arith.subf %78, %81 : vector<8x8xf32>
    %83 = math.exp %82 : vector<8x8xf32>
    %cst_35 = arith.constant dense<0.000000e+00> : vector<8xf32>
    %84 = vector.multi_reduction <add>, %83, %cst_35 [1] : vector<8x8xf32> to vector<8xf32>
    %85 = vector.shape_cast %84 : vector<8xf32> to vector<8x1xf32>
    %86 = tpu.reciprocal %85 {approx = true} : vector<8x1xf32> -> vector<8x1xf32>
    %87 = vector.broadcast %86 : vector<8x1xf32> to vector<8x8xf32>
    %88 = arith.mulf %83, %87 : vector<8x8xf32>
    %89 = vector.extract_strided_slice %33 {offsets = [0, 32], sizes = [8, 32], strides = [1, 1]} : vector<8x128xf32> to vector<8x32xf32>
    %cst_36 = arith.constant dense<0.000000e+00> : vector<8x32xf32>
    %90 = tpu.matmul %88, %89, %cst_36 {dimension_numbers = #tpu.dot_dimension_numbers<[1], [0], [0], [1], [0, 0, 1, 1], [], []>} : vector<8x8xf32>, vector<8x32xf32>, vector<8x32xf32> -> vector<8x32xf32>
    %c0_37 = arith.constant 0 : index
    %c32 = arith.constant 32 : index
    %91 = vector.load %arg7[%c0_37, %c32] : memref<8x128xf32, #tpu.memory_space<vmem>>, vector<8x32xf32>
    tpu.vector_store %arg7[%c0_37, %c32], %90 {strides = array<i32>} : memref<8x128xf32, #tpu.memory_space<vmem>>, vector<8x32xf32>,
    %92 = vector.extract_strided_slice %36 {offsets = [0, 2], sizes = [8, 1], strides = [1, 1]} : vector<8x4xf32> to vector<8x1xf32>
    %93 = vector.extract_strided_slice %38 {offsets = [2, 0], sizes = [1, 8], strides = [1, 1]} : vector<4x8xf32> to vector<1x8xf32>
    %94 = vector.broadcast %92 : vector<8x1xf32> to vector<8x8xf32>
    %95 = vector.broadcast %93 : vector<1x8xf32> to vector<8x8xf32>
    %96 = arith.addf %94, %95 : vector<8x8xf32>
    %cst_38 = arith.constant 0.000000e+00 : f32
    %97 = vector.broadcast %cst_38 : f32 to vector<8x8xf32>
    %98 = arith.cmpf ogt, %96, %97 : vector<8x8xf32>
    %cst_39 = arith.constant 2.000000e-01 : f32
    %99 = vector.broadcast %cst_39 : f32 to vector<8x8xf32>
    %100 = arith.mulf %99, %96 : vector<8x8xf32>
    %101 = arith.select %98, %96, %100 : vector<8x8xi1>, vector<8x8xf32>
    %cst_40 = arith.constant -1.000000e+30 : f32
    %102 = vector.broadcast %cst_40 : f32 to vector<8x8xf32>
    %103 = arith.select %41, %101, %102 : vector<8x8xi1>, vector<8x8xf32>
    %cst_41 = arith.constant dense<0xFF800000> : vector<8xf32>
    %104 = vector.multi_reduction <maximumf>, %103, %cst_41 [1] : vector<8x8xf32> to vector<8xf32>
    %105 = vector.shape_cast %104 : vector<8xf32> to vector<8x1xf32>
    %106 = vector.broadcast %105 : vector<8x1xf32> to vector<8x8xf32>
    %107 = arith.subf %103, %106 : vector<8x8xf32>
    %108 = math.exp %107 : vector<8x8xf32>
    %cst_42 = arith.constant dense<0.000000e+00> : vector<8xf32>
    %109 = vector.multi_reduction <add>, %108, %cst_42 [1] : vector<8x8xf32> to vector<8xf32>
    %110 = vector.shape_cast %109 : vector<8xf32> to vector<8x1xf32>
    %111 = tpu.reciprocal %110 {approx = true} : vector<8x1xf32> -> vector<8x1xf32>
    %112 = vector.broadcast %111 : vector<8x1xf32> to vector<8x8xf32>
    %113 = arith.mulf %108, %112 : vector<8x8xf32>
    %114 = vector.extract_strided_slice %33 {offsets = [0, 64], sizes = [8, 32], strides = [1, 1]} : vector<8x128xf32> to vector<8x32xf32>
    %cst_43 = arith.constant dense<0.000000e+00> : vector<8x32xf32>
    %115 = tpu.matmul %113, %114, %cst_43 {dimension_numbers = #tpu.dot_dimension_numbers<[1], [0], [0], [1], [0, 0, 1, 1], [], []>} : vector<8x8xf32>, vector<8x32xf32>, vector<8x32xf32> -> vector<8x32xf32>
    %c0_44 = arith.constant 0 : index
    %c64 = arith.constant 64 : index
    %116 = vector.load %arg7[%c0_44, %c64] : memref<8x128xf32, #tpu.memory_space<vmem>>, vector<8x32xf32>
    tpu.vector_store %arg7[%c0_44, %c64], %115 {strides = array<i32>} : memref<8x128xf32, #tpu.memory_space<vmem>>, vector<8x32xf32>,
    %117 = vector.extract_strided_slice %36 {offsets = [0, 3], sizes = [8, 1], strides = [1, 1]} : vector<8x4xf32> to vector<8x1xf32>
    %118 = vector.extract_strided_slice %38 {offsets = [3, 0], sizes = [1, 8], strides = [1, 1]} : vector<4x8xf32> to vector<1x8xf32>
    %119 = vector.broadcast %117 : vector<8x1xf32> to vector<8x8xf32>
    %120 = vector.broadcast %118 : vector<1x8xf32> to vector<8x8xf32>
    %121 = arith.addf %119, %120 : vector<8x8xf32>
    %cst_45 = arith.constant 0.000000e+00 : f32
    %122 = vector.broadcast %cst_45 : f32 to vector<8x8xf32>
    %123 = arith.cmpf ogt, %121, %122 : vector<8x8xf32>
    %cst_46 = arith.constant 2.000000e-01 : f32
    %124 = vector.broadcast %cst_46 : f32 to vector<8x8xf32>
    %125 = arith.mulf %124, %121 : vector<8x8xf32>
    %126 = arith.select %123, %121, %125 : vector<8x8xi1>, vector<8x8xf32>
    %cst_47 = arith.constant -1.000000e+30 : f32
    %127 = vector.broadcast %cst_47 : f32 to vector<8x8xf32>
    %128 = arith.select %41, %126, %127 : vector<8x8xi1>, vector<8x8xf32>
    %cst_48 = arith.constant dense<0xFF800000> : vector<8xf32>
    %129 = vector.multi_reduction <maximumf>, %128, %cst_48 [1] : vector<8x8xf32> to vector<8xf32>
    %130 = vector.shape_cast %129 : vector<8xf32> to vector<8x1xf32>
    %131 = vector.broadcast %130 : vector<8x1xf32> to vector<8x8xf32>
    %132 = arith.subf %128, %131 : vector<8x8xf32>
    %133 = math.exp %132 : vector<8x8xf32>
    %cst_49 = arith.constant dense<0.000000e+00> : vector<8xf32>
    %134 = vector.multi_reduction <add>, %133, %cst_49 [1] : vector<8x8xf32> to vector<8xf32>
    %135 = vector.shape_cast %134 : vector<8xf32> to vector<8x1xf32>
    %136 = tpu.reciprocal %135 {approx = true} : vector<8x1xf32> -> vector<8x1xf32>
    %137 = vector.broadcast %136 : vector<8x1xf32> to vector<8x8xf32>
    %138 = arith.mulf %133, %137 : vector<8x8xf32>
    %139 = vector.extract_strided_slice %33 {offsets = [0, 96], sizes = [8, 32], strides = [1, 1]} : vector<8x128xf32> to vector<8x32xf32>
    %cst_50 = arith.constant dense<0.000000e+00> : vector<8x32xf32>
    %140 = tpu.matmul %138, %139, %cst_50 {dimension_numbers = #tpu.dot_dimension_numbers<[1], [0], [0], [1], [0, 0, 1, 1], [], []>} : vector<8x8xf32>, vector<8x32xf32>, vector<8x32xf32> -> vector<8x32xf32>
    %c0_51 = arith.constant 0 : index
    %c96 = arith.constant 96 : index
    %141 = vector.load %arg7[%c0_51, %c96] : memref<8x128xf32, #tpu.memory_space<vmem>>, vector<8x32xf32>
    tpu.vector_store %arg7[%c0_51, %c96], %140 {strides = array<i32>} : memref<8x128xf32, #tpu.memory_space<vmem>>, vector<8x32xf32>,
    %c0_52 = arith.constant 0 : index
    %c0_53 = arith.constant 0 : index
    %142 = vector.load %arg7[%c0_52, %c0_53] : memref<8x128xf32, #tpu.memory_space<vmem>>, vector<8x128xf32>
    %c2 = arith.constant 2 : index
    %c0_54 = arith.constant 0 : index
    %143 = vector.load %arg5[%c2, %c0_54] : memref<16x512xf32, #tpu.memory_space<vmem>>, vector<1x128xf32>
    %144 = vector.broadcast %143 : vector<1x128xf32> to vector<8x128xf32>
    %145 = arith.addf %142, %144 : vector<8x128xf32>
    %cst_55 = arith.constant 0.000000e+00 : f32
    %146 = vector.broadcast %cst_55 : f32 to vector<8x128xf32>
    %147 = arith.maximumf %145, %146 : vector<8x128xf32>
    %148 = vector.extract_strided_slice %147 {offsets = [0, 0], sizes = [8, 64], strides = [1, 1]} : vector<8x128xf32> to vector<8x64xf32>
    %149 = vector.extract_strided_slice %147 {offsets = [0, 64], sizes = [8, 64], strides = [1, 1]} : vector<8x128xf32> to vector<8x64xf32>
    %150 = arith.addf %148, %149 : vector<8x64xf32>
    %151 = arith.truncf %150 : vector<8x64xf32> to vector<8x64xbf16>
    %c32_56 = arith.constant 32 : index
    %c0_57 = arith.constant 0 : index
    %152 = vector.load %arg4[%c32_56, %c0_57] : memref<128x160xbf16, #tpu.memory_space<vmem>>, vector<64x32xbf16>
    %cst_58 = arith.constant dense<0.000000e+00> : vector<8x32xf32>
    %153 = tpu.matmul %151, %152, %cst_58 {dimension_numbers = #tpu.dot_dimension_numbers<[1], [0], [0], [1], [0, 0, 1, 1], [], []>} : vector<8x64xbf16>, vector<64x32xbf16>, vector<8x32xf32> -> vector<8x32xf32>
    %c4 = arith.constant 4 : index
    %c0_59 = arith.constant 0 : index
    %154 = vector.load %arg5[%c4, %c0_59] : memref<16x512xf32, #tpu.memory_space<vmem>>, vector<1x32xf32>
    %155 = vector.broadcast %154 : vector<1x32xf32> to vector<8x32xf32>
    %156 = arith.addf %153, %155 : vector<8x32xf32>
    %cst_60 = arith.constant 0.000000e+00 : f32
    %157 = vector.broadcast %cst_60 : f32 to vector<8x32xf32>
    %158 = arith.maximumf %156, %157 : vector<8x32xf32>
    %159 = arith.truncf %158 : vector<8x32xf32> to vector<8x32xbf16>
    %c96_61 = arith.constant 96 : index
    %c0_62 = arith.constant 0 : index
    %160 = vector.load %arg4[%c96_61, %c0_62] : memref<128x160xbf16, #tpu.memory_space<vmem>>, vector<32x32xbf16>
    %cst_63 = arith.constant dense<0.000000e+00> : vector<8x32xf32>
    %161 = tpu.matmul %159, %160, %cst_63 {dimension_numbers = #tpu.dot_dimension_numbers<[1], [0], [0], [1], [0, 0, 1, 1], [], []>} : vector<8x32xbf16>, vector<32x32xbf16>, vector<8x32xf32> -> vector<8x32xf32>
    %c5 = arith.constant 5 : index
    %c0_64 = arith.constant 0 : index
    %162 = vector.load %arg5[%c5, %c0_64] : memref<16x512xf32, #tpu.memory_space<vmem>>, vector<1x32xf32>
    %163 = vector.broadcast %162 : vector<1x32xf32> to vector<8x32xf32>
    %164 = arith.addf %161, %163 : vector<8x32xf32>
    %165 = vector.extract_strided_slice %164 {offsets = [0, 0], sizes = [8, 5], strides = [1, 1]} : vector<8x32xf32> to vector<8x5xf32>
    %c0_65 = arith.constant 0 : index
    %c0_66 = arith.constant 0 : index
    %166 = vector.load %arg6[%c0_65, %c0_66] : memref<8x5xf32, #tpu.memory_space<vmem>>, vector<8x5xf32>
    tpu.vector_store %arg6[%c0_65, %c0_66], %165 {strides = array<i32>} : memref<8x5xf32, #tpu.memory_space<vmem>>, vector<8x5xf32>,
    return
  }
  func.func @transform_0(%arg0: i32) -> (i32, i32) {
    %c0_i32 = arith.constant 0 : i32
    %c0_i32_0 = arith.constant 0 : i32
    %c0_i32_1 = arith.constant 0 : i32
    return %c0_i32, %c0_i32_0 : i32, i32
  }
  func.func @transform_1(%arg0: i32) -> (i32, i32) {
    %c0_i32 = arith.constant 0 : i32
    %c0_i32_0 = arith.constant 0 : i32
    %c0_i32_1 = arith.constant 0 : i32
    return %c0_i32, %c0_i32_0 : i32, i32
  }
  func.func @transform_2(%arg0: i32) -> (i32, i32) {
    %c0_i32 = arith.constant 0 : i32
    %c0_i32_0 = arith.constant 0 : i32
    %c0_i32_1 = arith.constant 0 : i32
    return %c0_i32, %c0_i32_0 : i32, i32
  }
  func.func @transform_3(%arg0: i32) -> (i32, i32) {
    %c0_i32 = arith.constant 0 : i32
    %c0_i32_0 = arith.constant 0 : i32
    %c0_i32_1 = arith.constant 0 : i32
    return %c0_i32, %c0_i32_0 : i32, i32
  }
  func.func @transform_4(%arg0: i32) -> (i32, i32) {
    %c0_i32 = arith.constant 0 : i32
    %c0_i32_0 = arith.constant 0 : i32
    %c0_i32_1 = arith.constant 0 : i32
    return %c0_i32, %c0_i32_0 : i32, i32
  }
  func.func @transform_5(%arg0: i32) -> (i32, i32) {
    %c0_i32 = arith.constant 0 : i32
    %c0_i32_0 = arith.constant 0 : i32
    %c0_i32_1 = arith.constant 0 : i32
    return %c0_i32, %c0_i32_0 : i32, i32
  }
}

</mosaic_0001>

<llo_original>
// kernel: forward.4
$region0: #{forward.4}
  #allocation0 [shape = 'u32[]', space=smem, size = 0x4, offset = 0x4, fixed_abs, tag = 'smem constant byte address 0x4 - core index']
  #allocation1 [shape = 'u32[144,128]{1,0:T(1,128)}', space=vmem, size = 0x12000, scoped, tag = 'internal scratch']
  %s0 = inlined_call_operand.vmem [shape: bf16[968,27], index: 0, kind: input, shape index: {}]
  %s1 = inlined_call_operand.vmem [shape: bf16[27,32], index: 1, kind: input, shape index: {}]
  %s2 = inlined_call_operand.vmem [shape: f32[1,32], index: 2, kind: input, shape index: {}]
  %s3 = inlined_call_operand.vmem [shape: bf16[968,32], index: 3, kind: output, shape index: {}]
  %s4 = sld [smem:[#allocation0]]
  $region22: #{forward.4} parent=0
    _
  %s6 = ssub.s32 1, %s4
  %s7 = scalar_select 0, %s6, %s4
  // Predicated region
  $region2: #{forward.4} parent=0 // pred_check
    _
  $region3: #{forward.4} parent=0 // pred_check_branch
    %9 = sbr.rel (0) target = $region5
  $region4: #{forward.4} parent=0 // pred_region
    _
  $region5: #{forward.4} parent=0 // pred_fallthru
    _
  // Predicated region
  $region6: #{forward.4} parent=0 // pred_check
    _
  $region7: #{forward.4} parent=0 // pred_check_branch
    %11 = sbr.rel (0) target = $region9
  $region8: #{forward.4} parent=0 // pred_region
    _
  $region9: #{forward.4} parent=0 // pred_fallthru
    _
  // Predicated region
  $region10: #{forward.4} parent=0 // pred_check
    _
  $region11: #{forward.4} parent=0 // pred_check_branch
    %13 = sbr.rel (0) target = $region13
  $region12: #{forward.4} parent=0 // pred_region
    _
  $region13: #{forward.4} parent=0 // pred_fallthru
    _
  %v15 = vld [vmem:[%s0] sm:$0xf]
  %v16 = vld [vmem:[%s0 + $0x4] sm:$0xf]
  %v17 = vld [vmem:[%s0 + $0x8] sm:$0xf]
  %v18 = vld [vmem:[%s0 + $0xc] sm:$0xf]
  %v19 = vld [vmem:[%s0 + $0x10] sm:$0xf]
  %v20 = vld [vmem:[%s0 + $0x14] sm:$0xf]
  %v21 = vld [vmem:[%s0 + $0x18] sm:$0xf]
  %v22 = vld [vmem:[%s0 + $0x1c] sm:$0xf]
  %v23 = vld [vmem:[%s0 + $0x20] sm:$0xf]
  %v24 = vld [vmem:[%s0 + $0x24] sm:$0xf]
  %v25 = vld [vmem:[%s0 + $0x28] sm:$0xf]
  %v26 = vld [vmem:[%s0 + $0x2c] sm:$0xf]
  %v27 = vld [vmem:[%s0 + $0x30] sm:$0xf]
  %v28 = vld [vmem:[%s0 + $0x34] sm:$0xf]
  %v29 = vld [vmem:[%s0 + $0x38] sm:$0xf]
  %v30 = vld [vmem:[%s0 + $0x3c] sm:$0xf]
  %v31 = vld [vmem:[%s0 + $0x40] sm:$0xf]
  %v32 = vld [vmem:[%s0 + $0x44] sm:$0xf]
  %v33 = vld [vmem:[%s0 + $0x48] sm:$0xf]
  %v34 = vld [vmem:[%s0 + $0x4c] sm:$0xf]
  %v35 = vld [vmem:[%s0 + $0x50] sm:$0xf]
  %v36 = vld [vmem:[%s0 + $0x54] sm:$0xf]
  %v37 = vld [vmem:[%s0 + $0x58] sm:$0xf]
  %v38 = vld [vmem:[%s0 + $0x5c] sm:$0xf]
  %v39 = vld [vmem:[%s0 + $0x60] sm:$0xf]
  %v40 = vld [vmem:[%s0 + $0x64] sm:$0xf]
  %v41 = vld [vmem:[%s0 + $0x68] sm:$0xf]
  %v42 = vld [vmem:[%s0 + $0x6c] sm:$0xf]
  %v43 = vld [vmem:[%s0 + $0x70] sm:$0xf]
  %v44 = vld [vmem:[%s0 + $0x74] sm:$0xf]
  %v45 = vld [vmem:[%s0 + $0x78] sm:$0xf]
  %v46 = vld [vmem:[%s0 + $0x7c] sm:$0xf]
  %v47 = vld [vmem:[%s0 + $0x80] sm:$0xf]
  %v48 = vld [vmem:[%s0 + $0x84] sm:$0xf]
  %v49 = vld [vmem:[%s0 + $0x88] sm:$0xf]
  %v50 = vld [vmem:[%s0 + $0x8c] sm:$0xf]
  %v51 = vld [vmem:[%s0 + $0x90] sm:$0xf]
  %v52 = vld [vmem:[%s0 + $0x94] sm:$0xf]
  %v53 = vld [vmem:[%s0 + $0x98] sm:$0xf]
  %v54 = vld [vmem:[%s0 + $0x9c] sm:$0xf]
  %v55 = vld [vmem:[%s0 + $0xa0] sm:$0xf]
  %v56 = vld [vmem:[%s0 + $0xa4] sm:$0xf]
  %v57 = vld [vmem:[%s0 + $0xa8] sm:$0xf]
  %v58 = vld [vmem:[%s0 + $0xac] sm:$0xf]
  %v59 = vld [vmem:[%s0 + $0xb0] sm:$0xf]
  %v60 = vld [vmem:[%s0 + $0xb4] sm:$0xf]
  %v61 = vld [vmem:[%s0 + $0xb8] sm:$0xf]
  %v62 = vld [vmem:[%s0 + $0xbc] sm:$0xf]
  %v63 = vld [vmem:[%s0 + $0xc0] sm:$0xf]
  %v64 = vld [vmem:[%s0 + $0xc4] sm:$0xf]
  %v65 = vld [vmem:[%s0 + $0xc8] sm:$0xf]
  %v66 = vld [vmem:[%s0 + $0xcc] sm:$0xf]
  %v67 = vld [vmem:[%s0 + $0xd0] sm:$0xf]
  %v68 = vld [vmem:[%s0 + $0xd4] sm:$0xf]
  %v69 = vld [vmem:[%s0 + $0xd8] sm:$0xf]
  %v70 = vld [vmem:[%s0 + $0xdc] sm:$0xf]
  %v71 = vld [vmem:[%s0 + $0xe0] sm:$0xf]
  %v72 = vld [vmem:[%s0 + $0xe4] sm:$0xf]
  %v73 = vld [vmem:[%s0 + $0xe8] sm:$0xf]
  %v74 = vld [vmem:[%s0 + $0xec] sm:$0xf]
  %v75 = vld [vmem:[%s0 + $0xf0] sm:$0xf]
  %v76 = vld [vmem:[%s0 + $0xf4] sm:$0xf]
  %v77 = vld [vmem:[%s0 + $0xf8] sm:$0xf]
  %v78 = vld [vmem:[%s0 + $0xfc] sm:$0xf]
  %v79 = vld [vmem:[%s0 + $0x100] sm:$0xf]
  %v80 = vld [vmem:[%s0 + $0x104] sm:$0xf]
  %v81 = vld [vmem:[%s0 + $0x108] sm:$0xf]
  %v82 = vld [vmem:[%s0 + $0x10c] sm:$0xf]
  %v83 = vld [vmem:[%s0 + $0x110] sm:$0xf]
  %v84 = vld [vmem:[%s0 + $0x114] sm:$0xf]
  %v85 = vld [vmem:[%s0 + $0x118] sm:$0xf]
  %v86 = vld [vmem:[%s0 + $0x11c] sm:$0xf]
  %v87 = vld [vmem:[%s0 + $0x120] sm:$0xf]
  %v88 = vld [vmem:[%s0 + $0x124] sm:$0xf]
  %v89 = vld [vmem:[%s0 + $0x128] sm:$0xf]
  %v90 = vld [vmem:[%s0 + $0x12c] sm:$0xf]
  %v91 = vld [vmem:[%s0 + $0x130] sm:$0xf]
  %v92 = vld [vmem:[%s0 + $0x134] sm:$0xf]
  %v93 = vld [vmem:[%s0 + $0x138] sm:$0xf]
  %v94 = vld [vmem:[%s0 + $0x13c] sm:$0xf]
  %v95 = vld [vmem:[%s0 + $0x140] sm:$0xf]
  %v96 = vld [vmem:[%s0 + $0x144] sm:$0xf]
  %v97 = vld [vmem:[%s0 + $0x148] sm:$0xf]
  %v98 = vld [vmem:[%s0 + $0x14c] sm:$0xf]
  %v99 = vld [vmem:[%s0 + $0x150] sm:$0xf]
  %v100 = vld [vmem:[%s0 + $0x154] sm:$0xf]
  %v101 = vld [vmem:[%s0 + $0x158] sm:$0xf]
  %v102 = vld [vmem:[%s0 + $0x15c] sm:$0xf]
  %v103 = vld [vmem:[%s0 + $0x160] sm:$0xf]
  %v104 = vld [vmem:[%s0 + $0x164] sm:$0xf]
  %v105 = vld [vmem:[%s0 + $0x168] sm:$0xf]
  %v106 = vld [vmem:[%s0 + $0x16c] sm:$0xf]
  %v107 = vld [vmem:[%s0 + $0x170] sm:$0xf]
  %v108 = vld [vmem:[%s0 + $0x174] sm:$0xf]
  %v109 = vld [vmem:[%s0 + $0x178] sm:$0xf]
  %v110 = vld [vmem:[%s0 + $0x17c] sm:$0xf]
  %v111 = vld [vmem:[%s0 + $0x180] sm:$0xf]
  %v112 = vld [vmem:[%s0 + $0x184] sm:$0xf]
  %v113 = vld [vmem:[%s0 + $0x188] sm:$0xf]
  %v114 = vld [vmem:[%s0 + $0x18c] sm:$0xf]
  %v115 = vld [vmem:[%s0 + $0x190] sm:$0xf]
  %v116 = vld [vmem:[%s0 + $0x194] sm:$0xf]
  %v117 = vld [vmem:[%s0 + $0x198] sm:$0xf]
  %v118 = vld [vmem:[%s0 + $0x19c] sm:$0xf]
  %v119 = vld [vmem:[%s0 + $0x1a0] sm:$0xf]
  %v120 = vld [vmem:[%s0 + $0x1a4] sm:$0xf]
  %v121 = vld [vmem:[%s0 + $0x1a8] sm:$0xf]
  %v122 = vld [vmem:[%s0 + $0x1ac] sm:$0xf]
  %v123 = vld [vmem:[%s0 + $0x1b0] sm:$0xf]
  %v124 = vld [vmem:[%s0 + $0x1b4] sm:$0xf]
  %v125 = vld [vmem:[%s0 + $0x1b8] sm:$0xf]
  %v126 = vld [vmem:[%s0 + $0x1bc] sm:$0xf]
  %v127 = vld [vmem:[%s0 + $0x1c0] sm:$0xf]
  %v128 = vld [vmem:[%s0 + $0x1c4] sm:$0xf]
  %v129 = vld [vmem:[%s0 + $0x1c8] sm:$0xf]
  %v130 = vld [vmem:[%s0 + $0x1cc] sm:$0xf]
  %v131 = vld [vmem:[%s0 + $0x1d0] sm:$0xf]
  %v132 = vld [vmem:[%s0 + $0x1d4] sm:$0xf]
  %v133 = vld [vmem:[%s0 + $0x1d8] sm:$0xf]
  %v134 = vld [vmem:[%s0 + $0x1dc] sm:$0xf]
  %v135 = vld [vmem:[%s0 + $0x1e0] sm:$0xf]
  %v136 = vld [vmem:[%s1] sm:$0xf]
  %v137 = vld [vmem:[%s1 + $0x4] sm:$0xf]
  %v138 = vld [vmem:[%s1 + $0x8] sm:$0xf]
  %v139 = vld [vmem:[%s1 + $0xc] sm:$0x3]
  %v140 = vld [vmem:[%s2] sm:$0x1]
  %v142 = vlaneseq
  %v143 = vshrl.u32 %v142, 7
  %v144 = vsub.s32 0, %v143
  %v145 = vrot.slane %v140, %v144
  %v268 = vunpack.c.l.b16 %v15
  %v269 = vunpack.c.l.b16 %v16
  %v270 = vunpack.c.l.b16 %v17
  %v271 = vunpack.c.l.b16 %v18
  %v272 = vunpack.c.l.b16 %v19
  %v273 = vunpack.c.l.b16 %v20
  %v274 = vunpack.c.l.b16 %v21
  %v275 = vunpack.c.l.b16 %v22
  %v276 = vunpack.c.l.b16 %v23
  %v277 = vunpack.c.l.b16 %v24
  %v278 = vunpack.c.l.b16 %v25
  %v279 = vunpack.c.l.b16 %v26
  %v280 = vunpack.c.l.b16 %v27
  %v281 = vunpack.c.l.b16 %v28
  %v282 = vunpack.c.l.b16 %v29
  %v283 = vunpack.c.l.b16 %v30
  %v284 = vunpack.c.l.b16 %v31
  %v285 = vunpack.c.l.b16 %v32
  %v286 = vunpack.c.l.b16 %v33
  %v287 = vunpack.c.l.b16 %v34
  %v288 = vunpack.c.l.b16 %v35
  %v289 = vunpack.c.l.b16 %v36
  %v290 = vunpack.c.l.b16 %v37
  %v291 = vunpack.c.l.b16 %v38
  %v292 = vunpack.c.l.b16 %v39
  %v293 = vunpack.c.l.b16 %v40
  %v294 = vunpack.c.l.b16 %v41
  %v295 = vunpack.c.l.b16 %v42
  %v296 = vunpack.c.l.b16 %v43
  %v297 = vunpack.c.l.b16 %v44
  %v298 = vunpack.c.l.b16 %v45
  %v299 = vunpack.c.l.b16 %v46
  %v300 = vunpack.c.l.b16 %v47
  %v301 = vunpack.c.l.b16 %v48
  %v302 = vunpack.c.l.b16 %v49
  %v303 = vunpack.c.l.b16 %v50
  %v304 = vunpack.c.l.b16 %v51
  %v305 = vunpack.c.l.b16 %v52
  %v306 = vunpack.c.l.b16 %v53
  %v307 = vunpack.c.l.b16 %v54
  %v308 = vunpack.c.l.b16 %v55
  %v309 = vunpack.c.l.b16 %v56
  %v310 = vunpack.c.l.b16 %v57
  %v311 = vunpack.c.l.b16 %v58
  %v312 = vunpack.c.l.b16 %v59
  %v313 = vunpack.c.l.b16 %v60
  %v314 = vunpack.c.l.b16 %v61
  %v315 = vunpack.c.l.b16 %v62
  %v316 = vunpack.c.l.b16 %v63
  %v317 = vunpack.c.l.b16 %v64
  %v318 = vunpack.c.l.b16 %v65
  %v319 = vunpack.c.l.b16 %v66
  %v320 = vunpack.c.l.b16 %v67
  %v321 = vunpack.c.l.b16 %v68
  %v322 = vunpack.c.l.b16 %v69
  %v323 = vunpack.c.l.b16 %v70
  %v324 = vunpack.c.l.b16 %v71
  %v325 = vunpack.c.l.b16 %v72
  %v326 = vunpack.c.l.b16 %v73
  %v327 = vunpack.c.l.b16 %v74
  %v328 = vunpack.c.l.b16 %v75
  %v329 = vunpack.c.l.b16 %v76
  %v330 = vunpack.c.l.b16 %v77
  %v331 = vunpack.c.l.b16 %v78
  %v332 = vunpack.c.l.b16 %v79
  %v333 = vunpack.c.l.b16 %v80
  %v334 = vunpack.c.l.b16 %v81
  %v335 = vunpack.c.l.b16 %v82
  %v336 = vunpack.c.l.b16 %v83
  %v337 = vunpack.c.l.b16 %v84
  %v338 = vunpack.c.l.b16 %v85
  %v339 = vunpack.c.l.b16 %v86
  %v340 = vunpack.c.l.b16 %v87
  %v341 = vunpack.c.l.b16 %v88
  %v342 = vunpack.c.l.b16 %v89
  %v343 = vunpack.c.l.b16 %v90
  %v344 = vunpack.c.l.b16 %v91
  %v345 = vunpack.c.l.b16 %v92
  %v346 = vunpack.c.l.b16 %v93
  %v347 = vunpack.c.l.b16 %v94
  %v348 = vunpack.c.l.b16 %v95
  %v349 = vunpack.c.l.b16 %v96
  %v350 = vunpack.c.l.b16 %v97
  %v351 = vunpack.c.l.b16 %v98
  %v352 = vunpack.c.l.b16 %v99
  %v353 = vunpack.c.l.b16 %v100
  %v354 = vunpack.c.l.b16 %v101
  %v355 = vunpack.c.l.b16 %v102
  %v356 = vunpack.c.l.b16 %v103
  %v357 = vunpack.c.l.b16 %v104
  %v358 = vunpack.c.l.b16 %v105
  %v359 = vunpack.c.l.b16 %v106
  %v360 = vunpack.c.l.b16 %v107
  %v361 = vunpack.c.l.b16 %v108
  %v362 = vunpack.c.l.b16 %v109
  %v363 = vunpack.c.l.b16 %v110
  %v364 = vunpack.c.l.b16 %v111
  %v365 = vunpack.c.l.b16 %v112
  %v366 = vunpack.c.l.b16 %v113
  %v367 = vunpack.c.l.b16 %v114
  %v368 = vunpack.c.l.b16 %v115
  %v369 = vunpack.c.l.b16 %v116
  %v370 = vunpack.c.l.b16 %v117
  %v371 = vunpack.c.l.b16 %v118
  %v372 = vunpack.c.l.b16 %v119
  %v373 = vunpack.c.l.b16 %v120
  %v374 = vunpack.c.l.b16 %v121
  %v375 = vunpack.c.l.b16 %v122
  %v376 = vunpack.c.l.b16 %v123
  %v377 = vunpack.c.l.b16 %v124
  %v378 = vunpack.c.l.b16 %v125
  %v379 = vunpack.c.l.b16 %v126
  %v380 = vunpack.c.l.b16 %v127
  %v381 = vunpack.c.l.b16 %v128
  %v382 = vunpack.c.l.b16 %v129
  %v383 = vunpack.c.l.b16 %v130
  %v384 = vunpack.c.l.b16 %v131
  %v385 = vunpack.c.l.b16 %v132
  %v386 = vunpack.c.l.b16 %v133
  %v387 = vunpack.c.l.b16 %v134
  %v388 = vunpack.c.l.b16 %v135
  %v389 = vpack.c.b16 %v269, %v268
  %v390 = vpack.c.b16 %v271, %v270
  %v391 = vpack.c.b16 %v273, %v272
  %v392 = vpack.c.b16 %v275, %v274
  %v393 = vpack.c.b16 %v277, %v276
  %v394 = vpack.c.b16 %v279, %v278
  %v395 = vpack.c.b16 %v281, %v280
  %v396 = vpack.c.b16 %v283, %v282
  %v397 = vpack.c.b16 %v285, %v284
  %v398 = vpack.c.b16 %v287, %v286
  %v399 = vpack.c.b16 %v289, %v288
  %v400 = vpack.c.b16 %v291, %v290
  %v401 = vpack.c.b16 %v293, %v292
  %v402 = vpack.c.b16 %v295, %v294
  %v403 = vpack.c.b16 %v297, %v296
  %v404 = vpack.c.b16 %v299, %v298
  %v405 = vpack.c.b16 %v301, %v300
  %v406 = vpack.c.b16 %v303, %v302
  %v407 = vpack.c.b16 %v305, %v304
  %v408 = vpack.c.b16 %v307, %v306
  %v409 = vpack.c.b16 %v309, %v308
  %v410 = vpack.c.b16 %v311, %v310
  %v411 = vpack.c.b16 %v313, %v312
  %v412 = vpack.c.b16 %v315, %v314
  %v413 = vpack.c.b16 %v317, %v316
  %v414 = vpack.c.b16 %v319, %v318
  %v415 = vpack.c.b16 %v321, %v320
  %v416 = vpack.c.b16 %v323, %v322
  %v417 = vpack.c.b16 %v325, %v324
  %v418 = vpack.c.b16 %v327, %v326
  %v419 = vpack.c.b16 %v329, %v328
  %v420 = vpack.c.b16 %v331, %v330
  %v421 = vpack.c.b16 %v333, %v332
  %v422 = vpack.c.b16 %v335, %v334
  %v423 = vpack.c.b16 %v337, %v336
  %v424 = vpack.c.b16 %v339, %v338
  %v425 = vpack.c.b16 %v341, %v340
  %v426 = vpack.c.b16 %v343, %v342
  %v427 = vpack.c.b16 %v345, %v344
  %v428 = vpack.c.b16 %v347, %v346
  %v429 = vpack.c.b16 %v349, %v348
  %v430 = vpack.c.b16 %v351, %v350
  %v431 = vpack.c.b16 %v353, %v352
  %v432 = vpack.c.b16 %v355, %v354
  %v433 = vpack.c.b16 %v357, %v356
  %v434 = vpack.c.b16 %v359, %v358
  %v435 = vpack.c.b16 %v361, %v360
  %v436 = vpack.c.b16 %v363, %v362
  %v437 = vpack.c.b16 %v365, %v364
  %v438 = vpack.c.b16 %v367, %v366
  %v439 = vpack.c.b16 %v369, %v368
  %v440 = vpack.c.b16 %v371, %v370
  %v441 = vpack.c.b16 %v373, %v372
  %v442 = vpack.c.b16 %v375, %v374
  %v443 = vpack.c.b16 %v377, %v376
  %v444 = vpack.c.b16 %v379, %v378
  %v445 = vpack.c.b16 %v381, %v380
  %v446 = vpack.c.b16 %v383, %v382
  %v447 = vpack.c.b16 %v385, %v384
  %v448 = vpack.c.b16 %v387, %v386
  %v449 = vpack.c.b16 %v388, %v388
  %v454 = vunpack.c.l.b16 %v136
  %v455 = vunpack.c.l.b16 %v137
  %v456 = vunpack.c.l.b16 %v138
  %v457 = vunpack.c.l.b16 %v139
  %v458 = vpack.c.b16 %v455, %v454
  %v459 = vpack.c.b16 %v457, %v456
  %vm461 = vcmask 220160
  %v463 = vsel %vm461, %v389, 0
  %v466 = vsel %vm461, %v390, 0
  %v469 = vsel %vm461, %v391, 0
  %v472 = vsel %vm461, %v392, 0
  %v475 = vsel %vm461, %v393, 0
  %v478 = vsel %vm461, %v394, 0
  %v481 = vsel %vm461, %v395, 0
  %v484 = vsel %vm461, %v396, 0
  %v487 = vsel %vm461, %v397, 0
  %v490 = vsel %vm461, %v398, 0
  %v493 = vsel %vm461, %v399, 0
  %v496 = vsel %vm461, %v400, 0
  %v499 = vsel %vm461, %v401, 0
  %v502 = vsel %vm461, %v402, 0
  %v505 = vsel %vm461, %v403, 0
  %v508 = vsel %vm461, %v404, 0
  %v511 = vsel %vm461, %v405, 0
  %v514 = vsel %vm461, %v406, 0
  %v517 = vsel %vm461, %v407, 0
  %v520 = vsel %vm461, %v408, 0
  %v523 = vsel %vm461, %v409, 0
  %v526 = vsel %vm461, %v410, 0
  %v529 = vsel %vm461, %v411, 0
  %v532 = vsel %vm461, %v412, 0
  %v535 = vsel %vm461, %v413, 0
  %v538 = vsel %vm461, %v414, 0
  %v541 = vsel %vm461, %v415, 0
  %v544 = vsel %vm461, %v416, 0
  %v547 = vsel %vm461, %v417, 0
  %v550 = vsel %vm461, %v418, 0
  %v553 = vsel %vm461, %v419, 0
  %v556 = vsel %vm461, %v420, 0
  %v559 = vsel %vm461, %v421, 0
  %v562 = vsel %vm461, %v422, 0
  %v565 = vsel %vm461, %v423, 0
  %v568 = vsel %vm461, %v424, 0
  %v571 = vsel %vm461, %v425, 0
  %v574 = vsel %vm461, %v426, 0
  %v577 = vsel %vm461, %v427, 0
  %v580 = vsel %vm461, %v428, 0
  %v583 = vsel %vm461, %v429, 0
  %v586 = vsel %vm461, %v430, 0
  %v589 = vsel %vm461, %v431, 0
  %v592 = vsel %vm461, %v432, 0
  %v595 = vsel %vm461, %v433, 0
  %v598 = vsel %vm461, %v434, 0
  %v601 = vsel %vm461, %v435, 0
  %v604 = vsel %vm461, %v436, 0
  %v607 = vsel %vm461, %v437, 0
  %v610 = vsel %vm461, %v438, 0
  %v613 = vsel %vm461, %v439, 0
  %v616 = vsel %vm461, %v440, 0
  %v619 = vsel %vm461, %v441, 0
  %v622 = vsel %vm461, %v442, 0
  %v625 = vsel %vm461, %v443, 0
  %v628 = vsel %vm461, %v444, 0
  %v631 = vsel %vm461, %v445, 0
  %v634 = vsel %vm461, %v446, 0
  %v637 = vsel %vm461, %v447, 0
  %v640 = vsel %vm461, %v448, 0
  %v643 = vsel %vm461, %v449, 0
  %vm645 = vcmask 1044480
  %vm646 = vcmask 1045504
  %v647 = vsel %vm645, 4294967295, 65535
  %v648 = vsel %vm646, %v647, 0
  %v650 = vand.u32 %v459, %v648
  %652 = vmatprep.subr.bf16.mxu0 0
  %653 = vmatpush1.bf16.msra.mxu0 %v458
  %654 = vmatprep.subr.bf16.mxu0 0
  %655 = vmatpush1.bf16.msra.mxu0 %v650
  %656 = vmatprep.subr.bf16.mxu0 0
  %657 = vmatpush1.bf16.msra.mxu0 0
  %658 = vmatprep.subr.bf16.mxu0 0
  %659 = vmatpush1.bf16.msra.mxu0 0
  %660 = vmatprep.subr.bf16.mxu0 0
  %661 = vmatpush1.bf16.msra.mxu0 0
  %662 = vmatprep.subr.bf16.mxu0 0
  %663 = vmatpush1.bf16.msra.mxu0 0
  %664 = vmatprep.subr.bf16.mxu0 0
  %665 = vmatpush1.bf16.msra.mxu0 0
  %666 = vmatprep.subr.bf16.mxu0 0
  %667 = vmatpush1.bf16.msra.mxu0 0
  %668 = vmatprep.subr.bf16.mxu0 0
  %669 = vmatpush1.bf16.msra.mxu0 0
  %670 = vmatprep.subr.bf16.mxu0 0
  %671 = vmatpush1.bf16.msra.mxu0 0
  %672 = vmatprep.subr.bf16.mxu0 0
  %673 = vmatpush1.bf16.msra.mxu0 0
  %674 = vmatprep.subr.bf16.mxu0 0
  %675 = vmatpush1.bf16.msra.mxu0 0
  %676 = vmatprep.subr.bf16.mxu0 0
  %677 = vmatpush1.bf16.msra.mxu0 0
  %678 = vmatprep.subr.bf16.mxu0 0
  %679 = vmatpush1.bf16.msra.mxu0 0
  %680 = vmatprep.subr.bf16.mxu0 0
  %681 = vmatpush1.bf16.msra.mxu0 0
  %682 = vmatprep.subr.bf16.mxu0 0
  %683 = vmatpush1.bf16.msra.mxu0 0
  %684 = vmatprep.mubr.bf16.mxu0 0
  %685 = vmatmul.mubr.bf16.gmra.mrb[0].mxu0 %v463
  %v686 = vpop.f32.mrb[0].mxu0
  %v687 = vadd.f32 %v145, %v686
  %v688 = vpop.f32.mrb[0].mxu0
  %v689 = vpop.f32.mrb[0].mxu0
  %v690 = vadd.f32 %v145, %v689
  %v691 = vpop.f32.mrb[0].mxu0
  %692 = vmatprep.mubr.bf16.mxu0 0
  %693 = vmatmul.mubr.bf16.gmra.mrb[0].mxu0 %v466
  %v694 = vpop.f32.mrb[0].mxu0
  %v695 = vadd.f32 %v145, %v694
  %v696 = vpop.f32.mrb[0].mxu0
  %v697 = vpop.f32.mrb[0].mxu0
  %v698 = vadd.f32 %v145, %v697
  %v699 = vpop.f32.mrb[0].mxu0
  %700 = vmatprep.mubr.bf16.mxu0 0
  %701 = vmatmul.mubr.bf16.gmra.mrb[0].mxu0 %v469
  %v702 = vpop.f32.mrb[0].mxu0
  %v703 = vadd.f32 %v145, %v702
  %v704 = vpop.f32.mrb[0].mxu0
  %v705 = vpop.f32.mrb[0].mxu0
  %v706 = vadd.f32 %v145, %v705
  %v707 = vpop.f32.mrb[0].mxu0
  %708 = vmatprep.mubr.bf16.mxu0 0
  %709 = vmatmul.mubr.bf16.gmra.mrb[0].mxu0 %v472
  %v710 = vpop.f32.mrb[0].mxu0
  %v711 = vadd.f32 %v145, %v710
  %v712 = vpop.f32.mrb[0].mxu0
  %v713 = vpop.f32.mrb[0].mxu0
  %v714 = vadd.f32 %v145, %v713
  %v715 = vpop.f32.mrb[0].mxu0
  %716 = vmatprep.mubr.bf16.mxu0 0
  %717 = vmatmul.mubr.bf16.gmra.mrb[0].mxu0 %v475
  %v718 = vpop.f32.mrb[0].mxu0
  %v719 = vadd.f32 %v145, %v718
  %v720 = vpop.f32.mrb[0].mxu0
  %v721 = vpop.f32.mrb[0].mxu0
  %v722 = vadd.f32 %v145, %v721
  %v723 = vpop.f32.mrb[0].mxu0
  %724 = vmatprep.mubr.bf16.mxu0 0
  %725 = vmatmul.mubr.bf16.gmra.mrb[0].mxu0 %v478
  %v726 = vpop.f32.mrb[0].mxu0
  %v727 = vadd.f32 %v145, %v726
  %v728 = vpop.f32.mrb[0].mxu0
  %v729 = vpop.f32.mrb[0].mxu0
  %v730 = vadd.f32 %v145, %v729
  %v731 = vpop.f32.mrb[0].mxu0
  %732 = vmatprep.mubr.bf16.mxu0 0
  %733 = vmatmul.mubr.bf16.gmra.mrb[0].mxu0 %v481
  %v734 = vpop.f32.mrb[0].mxu0
  %v735 = vadd.f32 %v145, %v734
  %v736 = vpop.f32.mrb[0].mxu0
  %v737 = vpop.f32.mrb[0].mxu0
  %v738 = vadd.f32 %v145, %v737
  %v739 = vpop.f32.mrb[0].mxu0
  %740 = vmatprep.mubr.bf16.mxu0 0
  %741 = vmatmul.mubr.bf16.gmra.mrb[0].mxu0 %v484
  %v742 = vpop.f32.mrb[0].mxu0
  %v743 = vadd.f32 %v145, %v742
  %v744 = vpop.f32.mrb[0].mxu0
  %v745 = vpop.f32.mrb[0].mxu0
  %v746 = vadd.f32 %v145, %v745
  %v747 = vpop.f32.mrb[0].mxu0
  %748 = vmatprep.mubr.bf16.mxu0 0
  %749 = vmatmul.mubr.bf16.gmra.mrb[0].mxu0 %v487
  %v750 = vpop.f32.mrb[0].mxu0
  %v751 = vadd.f32 %v145, %v750
  %v752 = vpop.f32.mrb[0].mxu0
  %v753 = vpop.f32.mrb[0].mxu0
  %v754 = vadd.f32 %v145, %v753
  %v755 = vpop.f32.mrb[0].mxu0
  %756 = vmatprep.mubr.bf16.mxu0 0
  %757 = vmatmul.mubr.bf16.gmra.mrb[0].mxu0 %v490
  %v758 = vpop.f32.mrb[0].mxu0
  %v759 = vadd.f32 %v145, %v758
  %v760 = vpop.f32.mrb[0].mxu0
  %v761 = vpop.f32.mrb[0].mxu0
  %v762 = vadd.f32 %v145, %v761
  %v763 = vpop.f32.mrb[0].mxu0
  %764 = vmatprep.mubr.bf16.mxu0 0
  %765 = vmatmul.mubr.bf16.gmra.mrb[0].mxu0 %v493
  %v766 = vpop.f32.mrb[0].mxu0
  %v767 = vadd.f32 %v145, %v766
  %v768 = vpop.f32.mrb[0].mxu0
  %v769 = vpop.f32.mrb[0].mxu0
  %v770 = vadd.f32 %v145, %v769
  %v771 = vpop.f32.mrb[0].mxu0
  %772 = vmatprep.mubr.bf16.mxu0 0
  %773 = vmatmul.mubr.bf16.gmra.mrb[0].mxu0 %v496
  %v774 = vpop.f32.mrb[0].mxu0
  %v775 = vadd.f32 %v145, %v774
  %v776 = vpop.f32.mrb[0].mxu0
  %v777 = vpop.f32.mrb[0].mxu0
  %v778 = vadd.f32 %v145, %v777
  %v779 = vpop.f32.mrb[0].mxu0
  %780 = vmatprep.mubr.bf16.mxu0 0
  %781 = vmatmul.mubr.bf16.gmra.mrb[0].mxu0 %v499
  %v782 = vpop.f32.mrb[0].mxu0
  %v783 = vadd.f32 %v145, %v782
  %v784 = vpop.f32.mrb[0].mxu0
  %v785 = vpop.f32.mrb[0].mxu0
  %v786 = vadd.f32 %v145, %v785
  %v787 = vpop.f32.mrb[0].mxu0
  %788 = vmatprep.mubr.bf16.mxu0 0
  %789 = vmatmul.mubr.bf16.gmra.mrb[0].mxu0 %v502
  %v790 = vpop.f32.mrb[0].mxu0
  %v791 = vadd.f32 %v145, %v790
  %v792 = vpop.f32.mrb[0].mxu0
  %v793 = vpop.f32.mrb[0].mxu0
  %v794 = vadd.f32 %v145, %v793
  %v795 = vpop.f32.mrb[0].mxu0
  %796 = vmatprep.mubr.bf16.mxu0 0
  %797 = vmatmul.mubr.bf16.gmra.mrb[0].mxu0 %v505
  %v798 = vpop.f32.mrb[0].mxu0
  %v799 = vadd.f32 %v145, %v798
  %v800 = vpop.f32.mrb[0].mxu0
  %v801 = vpop.f32.mrb[0].mxu0
  %v802 = vadd.f32 %v145, %v801
  %v803 = vpop.f32.mrb[0].mxu0
  %804 = vmatprep.mubr.bf16.mxu0 0
  %805 = vmatmul.mubr.bf16.gmra.mrb[0].mxu0 %v508
  %v806 = vpop.f32.mrb[0].mxu0
  %v807 = vadd.f32 %v145, %v806
  %v808 = vpop.f32.mrb[0].mxu0
  %v809 = vpop.f32.mrb[0].mxu0
  %v810 = vadd.f32 %v145, %v809
  %v811 = vpop.f32.mrb[0].mxu0
  %812 = vmatprep.mubr.bf16.mxu0 0
  %813 = vmatmul.mubr.bf16.gmra.mrb[0].mxu0 %v511
  %v814 = vpop.f32.mrb[0].mxu0
  %v815 = vadd.f32 %v145, %v814
  %v816 = vpop.f32.mrb[0].mxu0
  %v817 = vpop.f32.mrb[0].mxu0
  %v818 = vadd.f32 %v145, %v817
  %v819 = vpop.f32.mrb[0].mxu0
  %820 = vmatprep.mubr.bf16.mxu0 0
  %821 = vmatmul.mubr.bf16.gmra.mrb[0].mxu0 %v514
  %v822 = vpop.f32.mrb[0].mxu0
  %v823 = vadd.f32 %v145, %v822
  %v824 = vpop.f32.mrb[0].mxu0
  %v825 = vpop.f32.mrb[0].mxu0
  %v826 = vadd.f32 %v145, %v825
  %v827 = vpop.f32.mrb[0].mxu0
  %828 = vmatprep.mubr.bf16.mxu0 0
  %829 = vmatmul.mubr.bf16.gmra.mrb[0].mxu0 %v517
  %v830 = vpop.f32.mrb[0].mxu0
  %v831 = vadd.f32 %v145, %v830
  %v832 = vpop.f32.mrb[0].mxu0
  %v833 = vpop.f32.mrb[0].mxu0
  %v834 = vadd.f32 %v145, %v833
  %v835 = vpop.f32.mrb[0].mxu0
  %836 = vmatprep.mubr.bf16.mxu0 0
  %837 = vmatmul.mubr.bf16.gmra.mrb[0].mxu0 %v520
  %v838 = vpop.f32.mrb[0].mxu0
  %v839 = vadd.f32 %v145, %v838
  %v840 = vpop.f32.mrb[0].mxu0
  %v841 = vpop.f32.mrb[0].mxu0
  %v842 = vadd.f32 %v145, %v841
  %v843 = vpop.f32.mrb[0].mxu0
  %844 = vmatprep.mubr.bf16.mxu0 0
  %845 = vmatmul.mubr.bf16.gmra.mrb[0].mxu0 %v523
  %v846 = vpop.f32.mrb[0].mxu0
  %v847 = vadd.f32 %v145, %v846
  %v848 = vpop.f32.mrb[0].mxu0
  %v849 = vpop.f32.mrb[0].mxu0
  %v850 = vadd.f32 %v145, %v849
  %v851 = vpop.f32.mrb[0].mxu0
  %852 = vmatprep.mubr.bf16.mxu0 0
  %853 = vmatmul.mubr.bf16.gmra.mrb[0].mxu0 %v526
  %v854 = vpop.f32.mrb[0].mxu0
  %v855 = vadd.f32 %v145, %v854
  %v856 = vpop.f32.mrb[0].mxu0
  %v857 = vpop.f32.mrb[0].mxu0
  %v858 = vadd.f32 %v145, %v857
  %v859 = vpop.f32.mrb[0].mxu0
  %860 = vmatprep.mubr.bf16.mxu0 0
  %861 = vmatmul.mubr.bf16.gmra.mrb[0].mxu0 %v529
  %v862 = vpop.f32.mrb[0].mxu0
  %v863 = vadd.f32 %v145, %v862
  %v864 = vpop.f32.mrb[0].mxu0
  %v865 = vpop.f32.mrb[0].mxu0
  %v866 = vadd.f32 %v145, %v865
  %v867 = vpop.f32.mrb[0].mxu0
  %868 = vmatprep.mubr.bf16.mxu0 0
  %869 = vmatmul.mubr.bf16.gmra.mrb[0].mxu0 %v532
  %v870 = vpop.f32.mrb[0].mxu0
  %v871 = vadd.f32 %v145, %v870
  %v872 = vpop.f32.mrb[0].mxu0
  %v873 = vpop.f32.mrb[0].mxu0
  %v874 = vadd.f32 %v145, %v873
  %v875 = vpop.f32.mrb[0].mxu0
  %876 = vmatprep.mubr.bf16.mxu0 0
  %877 = vmatmul.mubr.bf16.gmra.mrb[0].mxu0 %v535
  %v878 = vpop.f32.mrb[0].mxu0
  %v879 = vadd.f32 %v145, %v878
  %v880 = vpop.f32.mrb[0].mxu0
  %v881 = vpop.f32.mrb[0].mxu0
  %v882 = vadd.f32 %v145, %v881
  %v883 = vpop.f32.mrb[0].mxu0
  %884 = vmatprep.mubr.bf16.mxu0 0
  %885 = vmatmul.mubr.bf16.gmra.mrb[0].mxu0 %v538
  %v886 = vpop.f32.mrb[0].mxu0
  %v887 = vadd.f32 %v145, %v886
  %v888 = vpop.f32.mrb[0].mxu0
  %v889 = vpop.f32.mrb[0].mxu0
  %v890 = vadd.f32 %v145, %v889
  %v891 = vpop.f32.mrb[0].mxu0
  %892 = vmatprep.mubr.bf16.mxu0 0
  %893 = vmatmul.mubr.bf16.gmra.mrb[0].mxu0 %v541
  %v894 = vpop.f32.mrb[0].mxu0
  %v895 = vadd.f32 %v145, %v894
  %v896 = vpop.f32.mrb[0].mxu0
  %v897 = vpop.f32.mrb[0].mxu0
  %v898 = vadd.f32 %v145, %v897
  %v899 = vpop.f32.mrb[0].mxu0
  %900 = vmatprep.mubr.bf16.mxu0 0
  %901 = vmatmul.mubr.bf16.gmra.mrb[0].mxu0 %v544
  %v902 = vpop.f32.mrb[0].mxu0
  %v903 = vadd.f32 %v145, %v902
  %v904 = vpop.f32.mrb[0].mxu0
  %v905 = vpop.f32.mrb[0].mxu0
  %v906 = vadd.f32 %v145, %v905
  %v907 = vpop.f32.mrb[0].mxu0
  %908 = vmatprep.mubr.bf16.mxu0 0
  %909 = vmatmul.mubr.bf16.gmra.mrb[0].mxu0 %v547
  %v910 = vpop.f32.mrb[0].mxu0
  %v911 = vadd.f32 %v145, %v910
  %v912 = vpop.f32.mrb[0].mxu0
  %v913 = vpop.f32.mrb[0].mxu0
  %v914 = vadd.f32 %v145, %v913
  %v915 = vpop.f32.mrb[0].mxu0
  %916 = vmatprep.mubr.bf16.mxu0 0
  %917 = vmatmul.mubr.bf16.gmra.mrb[0].mxu0 %v550
  %v918 = vpop.f32.mrb[0].mxu0
  %v919 = vadd.f32 %v145, %v918
  %v920 = vpop.f32.mrb[0].mxu0
  %v921 = vpop.f32.mrb[0].mxu0
  %v922 = vadd.f32 %v145, %v921
  %v923 = vpop.f32.mrb[0].mxu0
  %924 = vmatprep.mubr.bf16.mxu0 0
  %925 = vmatmul.mubr.bf16.gmra.mrb[0].mxu0 %v553
  %v926 = vpop.f32.mrb[0].mxu0
  %v927 = vadd.f32 %v145, %v926
  %v928 = vpop.f32.mrb[0].mxu0
  %v929 = vpop.f32.mrb[0].mxu0
  %v930 = vadd.f32 %v145, %v929
  %v931 = vpop.f32.mrb[0].mxu0
  %932 = vmatprep.mubr.bf16.mxu0 0
  %933 = vmatmul.mubr.bf16.gmra.mrb[0].mxu0 %v556
  %v934 = vpop.f32.mrb[0].mxu0
  %v935 = vadd.f32 %v145, %v934
  %v936 = vpop.f32.mrb[0].mxu0
  %v937 = vpop.f32.mrb[0].mxu0
  %v938 = vadd.f32 %v145, %v937
  %v939 = vpop.f32.mrb[0].mxu0
  %940 = vmatprep.mubr.bf16.mxu0 0
  %941 = vmatmul.mubr.bf16.gmra.mrb[0].mxu0 %v559
  %v942 = vpop.f32.mrb[0].mxu0
  %v943 = vadd.f32 %v145, %v942
  %v944 = vpop.f32.mrb[0].mxu0
  %v945 = vpop.f32.mrb[0].mxu0
  %v946 = vadd.f32 %v145, %v945
  %v947 = vpop.f32.mrb[0].mxu0
  %948 = vmatprep.mubr.bf16.mxu0 0
  %949 = vmatmul.mubr.bf16.gmra.mrb[0].mxu0 %v562
  %v950 = vpop.f32.mrb[0].mxu0
  %v951 = vadd.f32 %v145, %v950
  %v952 = vpop.f32.mrb[0].mxu0
  %v953 = vpop.f32.mrb[0].mxu0
  %v954 = vadd.f32 %v145, %v953
  %v955 = vpop.f32.mrb[0].mxu0
  %956 = vmatprep.mubr.bf16.mxu0 0
  %957 = vmatmul.mubr.bf16.gmra.mrb[0].mxu0 %v565
  %v958 = vpop.f32.mrb[0].mxu0
  %v959 = vadd.f32 %v145, %v958
  %v960 = vpop.f32.mrb[0].mxu0
  %v961 = vpop.f32.mrb[0].mxu0
  %v962 = vadd.f32 %v145, %v961
  %v963 = vpop.f32.mrb[0].mxu0
  %964 = vmatprep.mubr.bf16.mxu0 0
  %965 = vmatmul.mubr.bf16.gmra.mrb[0].mxu0 %v568
  %v966 = vpop.f32.mrb[0].mxu0
  %v967 = vadd.f32 %v145, %v966
  %v968 = vpop.f32.mrb[0].mxu0
  %v969 = vpop.f32.mrb[0].mxu0
  %v970 = vadd.f32 %v145, %v969
  %v971 = vpop.f32.mrb[0].mxu0
  %972 = vmatprep.mubr.bf16.mxu0 0
  %973 = vmatmul.mubr.bf16.gmra.mrb[0].mxu0 %v571
  %v974 = vpop.f32.mrb[0].mxu0
  %v975 = vadd.f32 %v145, %v974
  %v976 = vpop.f32.mrb[0].mxu0
  %v977 = vpop.f32.mrb[0].mxu0
  %v978 = vadd.f32 %v145, %v977
  %v979 = vpop.f32.mrb[0].mxu0
  %980 = vmatprep.mubr.bf16.mxu0 0
  %981 = vmatmul.mubr.bf16.gmra.mrb[0].mxu0 %v574
  %v982 = vpop.f32.mrb[0].mxu0
  %v983 = vadd.f32 %v145, %v982
  %v984 = vpop.f32.mrb[0].mxu0
  %v985 = vpop.f32.mrb[0].mxu0
  %v986 = vadd.f32 %v145, %v985
  %v987 = vpop.f32.mrb[0].mxu0
  %988 = vmatprep.mubr.bf16.mxu0 0
  %989 = vmatmul.mubr.bf16.gmra.mrb[0].mxu0 %v577
  %v990 = vpop.f32.mrb[0].mxu0
  %v991 = vadd.f32 %v145, %v990
  %v992 = vpop.f32.mrb[0].mxu0
  %v993 = vpop.f32.mrb[0].mxu0
  %v994 = vadd.f32 %v145, %v993
  %v995 = vpop.f32.mrb[0].mxu0
  %996 = vmatprep.mubr.bf16.mxu0 0
  %997 = vmatmul.mubr.bf16.gmra.mrb[0].mxu0 %v580
  %v998 = vpop.f32.mrb[0].mxu0
  %v999 = vadd.f32 %v145, %v998
  %v1000 = vpop.f32.mrb[0].mxu0
  %v1001 = vpop.f32.mrb[0].mxu0
  %v1002 = vadd.f32 %v145, %v1001
  %v1003 = vpop.f32.mrb[0].mxu0
  %1004 = vmatprep.mubr.bf16.mxu0 0
  %1005 = vmatmul.mubr.bf16.gmra.mrb[0].mxu0 %v583
  %v1006 = vpop.f32.mrb[0].mxu0
  %v1007 = vadd.f32 %v145, %v1006
  %v1008 = vpop.f32.mrb[0].mxu0
  %v1009 = vpop.f32.mrb[0].mxu0
  %v1010 = vadd.f32 %v145, %v1009
  %v1011 = vpop.f32.mrb[0].mxu0
  %1012 = vmatprep.mubr.bf16.mxu0 0
  %1013 = vmatmul.mubr.bf16.gmra.mrb[0].mxu0 %v586
  %v1014 = vpop.f32.mrb[0].mxu0
  %v1015 = vadd.f32 %v145, %v1014
  %v1016 = vpop.f32.mrb[0].mxu0
  %v1017 = vpop.f32.mrb[0].mxu0
  %v1018 = vadd.f32 %v145, %v1017
  %v1019 = vpop.f32.mrb[0].mxu0
  %1020 = vmatprep.mubr.bf16.mxu0 0
  %1021 = vmatmul.mubr.bf16.gmra.mrb[0].mxu0 %v589
  %v1022 = vpop.f32.mrb[0].mxu0
  %v1023 = vadd.f32 %v145, %v1022
  %v1024 = vpop.f32.mrb[0].mxu0
  %v1025 = vpop.f32.mrb[0].mxu0
  %v1026 = vadd.f32 %v145, %v1025
  %v1027 = vpop.f32.mrb[0].mxu0
  %1028 = vmatprep.mubr.bf16.mxu0 0
  %1029 = vmatmul.mubr.bf16.gmra.mrb[0].mxu0 %v592
  %v1030 = vpop.f32.mrb[0].mxu0
  %v1031 = vadd.f32 %v145, %v1030
  %v1032 = vpop.f32.mrb[0].mxu0
  %v1033 = vpop.f32.mrb[0].mxu0
  %v1034 = vadd.f32 %v145, %v1033
  %v1035 = vpop.f32.mrb[0].mxu0
  %1036 = vmatprep.mubr.bf16.mxu0 0
  %1037 = vmatmul.mubr.bf16.gmra.mrb[0].mxu0 %v595
  %v1038 = vpop.f32.mrb[0].mxu0
  %v1039 = vadd.f32 %v145, %v1038
  %v1040 = vpop.f32.mrb[0].mxu0
  %v1041 = vpop.f32.mrb[0].mxu0
  %v1042 = vadd.f32 %v145, %v1041
  %v1043 = vpop.f32.mrb[0].mxu0
  %1044 = vmatprep.mubr.bf16.mxu0 0
  %1045 = vmatmul.mubr.bf16.gmra.mrb[0].mxu0 %v598
  %v1046 = vpop.f32.mrb[0].mxu0
  %v1047 = vadd.f32 %v145, %v1046
  %v1048 = vpop.f32.mrb[0].mxu0
  %v1049 = vpop.f32.mrb[0].mxu0
  %v1050 = vadd.f32 %v145, %v1049
  %v1051 = vpop.f32.mrb[0].mxu0
  %1052 = vmatprep.mubr.bf16.mxu0 0
  %1053 = vmatmul.mubr.bf16.gmra.mrb[0].mxu0 %v601
  %v1054 = vpop.f32.mrb[0].mxu0
  %v1055 = vadd.f32 %v145, %v1054
  %v1056 = vpop.f32.mrb[0].mxu0
  %v1057 = vpop.f32.mrb[0].mxu0
  %v1058 = vadd.f32 %v145, %v1057
  %v1059 = vpop.f32.mrb[0].mxu0
  %1060 = vmatprep.mubr.bf16.mxu0 0
  %1061 = vmatmul.mubr.bf16.gmra.mrb[0].mxu0 %v604
  %v1062 = vpop.f32.mrb[0].mxu0
  %v1063 = vadd.f32 %v145, %v1062
  %v1064 = vpop.f32.mrb[0].mxu0
  %v1065 = vpop.f32.mrb[0].mxu0
  %v1066 = vadd.f32 %v145, %v1065
  %v1067 = vpop.f32.mrb[0].mxu0
  %1068 = vmatprep.mubr.bf16.mxu0 0
  %1069 = vmatmul.mubr.bf16.gmra.mrb[0].mxu0 %v607
  %v1070 = vpop.f32.mrb[0].mxu0
  %v1071 = vadd.f32 %v145, %v1070
  %v1072 = vpop.f32.mrb[0].mxu0
  %v1073 = vpop.f32.mrb[0].mxu0
  %v1074 = vadd.f32 %v145, %v1073
  %v1075 = vpop.f32.mrb[0].mxu0
  %1076 = vmatprep.mubr.bf16.mxu0 0
  %1077 = vmatmul.mubr.bf16.gmra.mrb[0].mxu0 %v610
  %v1078 = vpop.f32.mrb[0].mxu0
  %v1079 = vadd.f32 %v145, %v1078
  %v1080 = vpop.f32.mrb[0].mxu0
  %v1081 = vpop.f32.mrb[0].mxu0
  %v1082 = vadd.f32 %v145, %v1081
  %v1083 = vpop.f32.mrb[0].mxu0
  %1084 = vmatprep.mubr.bf16.mxu0 0
  %1085 = vmatmul.mubr.bf16.gmra.mrb[0].mxu0 %v613
  %v1086 = vpop.f32.mrb[0].mxu0
  %v1087 = vadd.f32 %v145, %v1086
  %v1088 = vpop.f32.mrb[0].mxu0
  %v1089 = vpop.f32.mrb[0].mxu0
  %v1090 = vadd.f32 %v145, %v1089
  %v1091 = vpop.f32.mrb[0].mxu0
  %1092 = vmatprep.mubr.bf16.mxu0 0
  %1093 = vmatmul.mubr.bf16.gmra.mrb[0].mxu0 %v616
  %v1094 = vpop.f32.mrb[0].mxu0
  %v1095 = vadd.f32 %v145, %v1094
  %v1096 = vpop.f32.mrb[0].mxu0
  %v1097 = vpop.f32.mrb[0].mxu0
  %v1098 = vadd.f32 %v145, %v1097
  %v1099 = vpop.f32.mrb[0].mxu0
  %1100 = vmatprep.mubr.bf16.mxu0 0
  %1101 = vmatmul.mubr.bf16.gmra.mrb[0].mxu0 %v619
  %v1102 = vpop.f32.mrb[0].mxu0
  %v1103 = vadd.f32 %v145, %v1102
  %v1104 = vpop.f32.mrb[0].mxu0
  %v1105 = vpop.f32.mrb[0].mxu0
  %v1106 = vadd.f32 %v145, %v1105
  %v1107 = vpop.f32.mrb[0].mxu0
  %1108 = vmatprep.mubr.bf16.mxu0 0
  %1109 = vmatmul.mubr.bf16.gmra.mrb[0].mxu0 %v622
  %v1110 = vpop.f32.mrb[0].mxu0
  %v1111 = vadd.f32 %v145, %v1110
  %v1112 = vpop.f32.mrb[0].mxu0
  %v1113 = vpop.f32.mrb[0].mxu0
  %v1114 = vadd.f32 %v145, %v1113
  %v1115 = vpop.f32.mrb[0].mxu0
  %1116 = vmatprep.mubr.bf16.mxu0 0
  %1117 = vmatmul.mubr.bf16.gmra.mrb[0].mxu0 %v625
  %v1118 = vpop.f32.mrb[0].mxu0
  %v1119 = vadd.f32 %v145, %v1118
  %v1120 = vpop.f32.mrb[0].mxu0
  %v1121 = vpop.f32.mrb[0].mxu0
  %v1122 = vadd.f32 %v145, %v1121
  %v1123 = vpop.f32.mrb[0].mxu0
  %1124 = vmatprep.mubr.bf16.mxu0 0
  %1125 = vmatmul.mubr.bf16.gmra.mrb[0].mxu0 %v628
  %v1126 = vpop.f32.mrb[0].mxu0
  %v1127 = vadd.f32 %v145, %v1126
  %v1128 = vpop.f32.mrb[0].mxu0
  %v1129 = vpop.f32.mrb[0].mxu0
  %v1130 = vadd.f32 %v145, %v1129
  %v1131 = vpop.f32.mrb[0].mxu0
  %1132 = vmatprep.mubr.bf16.mxu0 0
  %1133 = vmatmul.mubr.bf16.gmra.mrb[0].mxu0 %v631
  %v1134 = vpop.f32.mrb[0].mxu0
  %v1135 = vadd.f32 %v145, %v1134
  %v1136 = vpop.f32.mrb[0].mxu0
  %v1137 = vpop.f32.mrb[0].mxu0
  %v1138 = vadd.f32 %v145, %v1137
  %v1139 = vpop.f32.mrb[0].mxu0
  %1140 = vmatprep.mubr.bf16.mxu0 0
  %1141 = vmatmul.mubr.bf16.gmra.mrb[0].mxu0 %v634
  %v1142 = vpop.f32.mrb[0].mxu0
  %v1143 = vadd.f32 %v145, %v1142
  %v1144 = vpop.f32.mrb[0].mxu0
  %v1145 = vpop.f32.mrb[0].mxu0
  %v1146 = vadd.f32 %v145, %v1145
  %v1147 = vpop.f32.mrb[0].mxu0
  %1148 = vmatprep.mubr.bf16.mxu0 0
  %1149 = vmatmul.mubr.bf16.gmra.mrb[0].mxu0 %v637
  %v1150 = vpop.f32.mrb[0].mxu0
  %v1151 = vadd.f32 %v145, %v1150
  %v1152 = vpop.f32.mrb[0].mxu0
  %v1153 = vpop.f32.mrb[0].mxu0
  %v1154 = vadd.f32 %v145, %v1153
  %v1155 = vpop.f32.mrb[0].mxu0
  %1156 = vmatprep.mubr.bf16.mxu0 0
  %1157 = vmatmul.mubr.bf16.gmra.mrb[0].mxu0 %v640
  %v1158 = vpop.f32.mrb[0].mxu0
  %v1159 = vadd.f32 %v145, %v1158
  %v1160 = vpop.f32.mrb[0].mxu0
  %v1161 = vpop.f32.mrb[0].mxu0
  %v1162 = vadd.f32 %v145, %v1161
  %v1163 = vpop.f32.mrb[0].mxu0
  %1164 = vmatprep.mubr.bf16.mxu0 0
  %1165 = vmatmul.mubr.bf16.gmra.mrb[0].mxu0 %v643
  %v1166 = vpop.f32.mrb[0].mxu0
  %v1167 = vadd.f32 %v145, %v1166
  %v1168 = vpop.f32.mrb[0].mxu0
  %v1169 = vpop.f32.mrb[0].mxu0
  %v1170 = vpop.f32.mrb[0].mxu0
  %1171 = vdwg.mxu0
  %v1172 = vmax.f32 %v687, 0.0
  %v1173 = vmax.f32 %v690, 0.0
  %v1174 = vmax.f32 %v695, 0.0
  %v1175 = vmax.f32 %v698, 0.0
  %v1176 = vmax.f32 %v703, 0.0
  %v1177 = vmax.f32 %v706, 0.0
  %v1178 = vmax.f32 %v711, 0.0
  %v1179 = vmax.f32 %v714, 0.0
  %v1180 = vmax.f32 %v719, 0.0
  %v1181 = vmax.f32 %v722, 0.0
  %v1182 = vmax.f32 %v727, 0.0
  %v1183 = vmax.f32 %v730, 0.0
  %v1184 = vmax.f32 %v735, 0.0
  %v1185 = vmax.f32 %v738, 0.0
  %v1186 = vmax.f32 %v743, 0.0
  %v1187 = vmax.f32 %v746, 0.0
  %v1188 = vmax.f32 %v751, 0.0
  %v1189 = vmax.f32 %v754, 0.0
  %v1190 = vmax.f32 %v759, 0.0
  %v1191 = vmax.f32 %v762, 0.0
  %v1192 = vmax.f32 %v767, 0.0
  %v1193 = vmax.f32 %v770, 0.0
  %v1194 = vmax.f32 %v775, 0.0
  %v1195 = vmax.f32 %v778, 0.0
  %v1196 = vmax.f32 %v783, 0.0
  %v1197 = vmax.f32 %v786, 0.0
  %v1198 = vmax.f32 %v791, 0.0
  %v1199 = vmax.f32 %v794, 0.0
  %v1200 = vmax.f32 %v799, 0.0
  %v1201 = vmax.f32 %v802, 0.0
  %v1202 = vmax.f32 %v807, 0.0
  %v1203 = vmax.f32 %v810, 0.0
  %v1204 = vmax.f32 %v815, 0.0
  %v1205 = vmax.f32 %v818, 0.0
  %v1206 = vmax.f32 %v823, 0.0
  %v1207 = vmax.f32 %v826, 0.0
  %v1208 = vmax.f32 %v831, 0.0
  %v1209 = vmax.f32 %v834, 0.0
  %v1210 = vmax.f32 %v839, 0.0
  %v1211 = vmax.f32 %v842, 0.0
  %v1212 = vmax.f32 %v847, 0.0
  %v1213 = vmax.f32 %v850, 0.0
  %v1214 = vmax.f32 %v855, 0.0
  %v1215 = vmax.f32 %v858, 0.0
  %v1216 = vmax.f32 %v863, 0.0
  %v1217 = vmax.f32 %v866, 0.0
  %v1218 = vmax.f32 %v871, 0.0
  %v1219 = vmax.f32 %v874, 0.0
  %v1220 = vmax.f32 %v879, 0.0
  %v1221 = vmax.f32 %v882, 0.0
  %v1222 = vmax.f32 %v887, 0.0
  %v1223 = vmax.f32 %v890, 0.0
  %v1224 = vmax.f32 %v895, 0.0
  %v1225 = vmax.f32 %v898, 0.0
  %v1226 = vmax.f32 %v903, 0.0
  %v1227 = vmax.f32 %v906, 0.0
  %v1228 = vmax.f32 %v911, 0.0
  %v1229 = vmax.f32 %v914, 0.0
  %v1230 = vmax.f32 %v919, 0.0
  %v1231 = vmax.f32 %v922, 0.0
  %v1232 = vmax.f32 %v927, 0.0
  %v1233 = vmax.f32 %v930, 0.0
  %v1234 = vmax.f32 %v935, 0.0
  %v1235 = vmax.f32 %v938, 0.0
  %v1236 = vmax.f32 %v943, 0.0
  %v1237 = vmax.f32 %v946, 0.0
  %v1238 = vmax.f32 %v951, 0.0
  %v1239 = vmax.f32 %v954, 0.0
  %v1240 = vmax.f32 %v959, 0.0
  %v1241 = vmax.f32 %v962, 0.0
  %v1242 = vmax.f32 %v967, 0.0
  %v1243 = vmax.f32 %v970, 0.0
  %v1244 = vmax.f32 %v975, 0.0
  %v1245 = vmax.f32 %v978, 0.0
  %v1246 = vmax.f32 %v983, 0.0
  %v1247 = vmax.f32 %v986, 0.0
  %v1248 = vmax.f32 %v991, 0.0
  %v1249 = vmax.f32 %v994, 0.0
  %v1250 = vmax.f32 %v999, 0.0
  %v1251 = vmax.f32 %v1002, 0.0
  %v1252 = vmax.f32 %v1007, 0.0
  %v1253 = vmax.f32 %v1010, 0.0
  %v1254 = vmax.f32 %v1015, 0.0
  %v1255 = vmax.f32 %v1018, 0.0
  %v1256 = vmax.f32 %v1023, 0.0
  %v1257 = vmax.f32 %v1026, 0.0
  %v1258 = vmax.f32 %v1031, 0.0
  %v1259 = vmax.f32 %v1034, 0.0
  %v1260 = vmax.f32 %v1039, 0.0
  %v1261 = vmax.f32 %v1042, 0.0
  %v1262 = vmax.f32 %v1047, 0.0
  %v1263 = vmax.f32 %v1050, 0.0
  %v1264 = vmax.f32 %v1055, 0.0
  %v1265 = vmax.f32 %v1058, 0.0
  %v1266 = vmax.f32 %v1063, 0.0
  %v1267 = vmax.f32 %v1066, 0.0
  %v1268 = vmax.f32 %v1071, 0.0
  %v1269 = vmax.f32 %v1074, 0.0
  %v1270 = vmax.f32 %v1079, 0.0
  %v1271 = vmax.f32 %v1082, 0.0
  %v1272 = vmax.f32 %v1087, 0.0
  %v1273 = vmax.f32 %v1090, 0.0
  %v1274 = vmax.f32 %v1095, 0.0
  %v1275 = vmax.f32 %v1098, 0.0
  %v1276 = vmax.f32 %v1103, 0.0
  %v1277 = vmax.f32 %v1106, 0.0
  %v1278 = vmax.f32 %v1111, 0.0
  %v1279 = vmax.f32 %v1114, 0.0
  %v1280 = vmax.f32 %v1119, 0.0
  %v1281 = vmax.f32 %v1122, 0.0
  %v1282 = vmax.f32 %v1127, 0.0
  %v1283 = vmax.f32 %v1130, 0.0
  %v1284 = vmax.f32 %v1135, 0.0
  %v1285 = vmax.f32 %v1138, 0.0
  %v1286 = vmax.f32 %v1143, 0.0
  %v1287 = vmax.f32 %v1146, 0.0
  %v1288 = vmax.f32 %v1151, 0.0
  %v1289 = vmax.f32 %v1154, 0.0
  %v1290 = vmax.f32 %v1159, 0.0
  %v1291 = vmax.f32 %v1162, 0.0
  %v1292 = vmax.f32 %v1167, 0.0
  %v1293 = vpack.c.bf16 %v1173, %v1172
  %v1294 = vpack.c.bf16 %v1175, %v1174
  %v1295 = vpack.c.bf16 %v1177, %v1176
  %v1296 = vpack.c.bf16 %v1179, %v1178
  %v1297 = vpack.c.bf16 %v1181, %v1180
  %v1298 = vpack.c.bf16 %v1183, %v1182
  %v1299 = vpack.c.bf16 %v1185, %v1184
  %v1300 = vpack.c.bf16 %v1187, %v1186
  %v1301 = vpack.c.bf16 %v1189, %v1188
  %v1302 = vpack.c.bf16 %v1191, %v1190
  %v1303 = vpack.c.bf16 %v1193, %v1192
  %v1304 = vpack.c.bf16 %v1195, %v1194
  %v1305 = vpack.c.bf16 %v1197, %v1196
  %v1306 = vpack.c.bf16 %v1199, %v1198
  %v1307 = vpack.c.bf16 %v1201, %v1200
  %v1308 = vpack.c.bf16 %v1203, %v1202
  %v1309 = vpack.c.bf16 %v1205, %v1204
  %v1310 = vpack.c.bf16 %v1207, %v1206
  %v1311 = vpack.c.bf16 %v1209, %v1208
  %v1312 = vpack.c.bf16 %v1211, %v1210
  %v1313 = vpack.c.bf16 %v1213, %v1212
  %v1314 = vpack.c.bf16 %v1215, %v1214
  %v1315 = vpack.c.bf16 %v1217, %v1216
  %v1316 = vpack.c.bf16 %v1219, %v1218
  %v1317 = vpack.c.bf16 %v1221, %v1220
  %v1318 = vpack.c.bf16 %v1223, %v1222
  %v1319 = vpack.c.bf16 %v1225, %v1224
  %v1320 = vpack.c.bf16 %v1227, %v1226
  %v1321 = vpack.c.bf16 %v1229, %v1228
  %v1322 = vpack.c.bf16 %v1231, %v1230
  %v1323 = vpack.c.bf16 %v1233, %v1232
  %v1324 = vpack.c.bf16 %v1235, %v1234
  %v1325 = vpack.c.bf16 %v1237, %v1236
  %v1326 = vpack.c.bf16 %v1239, %v1238
  %v1327 = vpack.c.bf16 %v1241, %v1240
  %v1328 = vpack.c.bf16 %v1243, %v1242
  %v1329 = vpack.c.bf16 %v1245, %v1244
  %v1330 = vpack.c.bf16 %v1247, %v1246
  %v1331 = vpack.c.bf16 %v1249, %v1248
  %v1332 = vpack.c.bf16 %v1251, %v1250
  %v1333 = vpack.c.bf16 %v1253, %v1252
  %v1334 = vpack.c.bf16 %v1255, %v1254
  %v1335 = vpack.c.bf16 %v1257, %v1256
  %v1336 = vpack.c.bf16 %v1259, %v1258
  %v1337 = vpack.c.bf16 %v1261, %v1260
  %v1338 = vpack.c.bf16 %v1263, %v1262
  %v1339 = vpack.c.bf16 %v1265, %v1264
  %v1340 = vpack.c.bf16 %v1267, %v1266
  %v1341 = vpack.c.bf16 %v1269, %v1268
  %v1342 = vpack.c.bf16 %v1271, %v1270
  %v1343 = vpack.c.bf16 %v1273, %v1272
  %v1344 = vpack.c.bf16 %v1275, %v1274
  %v1345 = vpack.c.bf16 %v1277, %v1276
  %v1346 = vpack.c.bf16 %v1279, %v1278
  %v1347 = vpack.c.bf16 %v1281, %v1280
  %v1348 = vpack.c.bf16 %v1283, %v1282
  %v1349 = vpack.c.bf16 %v1285, %v1284
  %v1350 = vpack.c.bf16 %v1287, %v1286
  %v1351 = vpack.c.bf16 %v1289, %v1288
  %v1352 = vpack.c.bf16 %v1291, %v1290
  %v1353 = vpack.c.bf16 %v1292, %v1292
  %v1415 = vunpack.c.l.b16 %v1293
  %v1416 = vunpack.c.h.b16 %v1293
  %v1417 = vunpack.c.l.b16 %v1294
  %v1418 = vunpack.c.h.b16 %v1294
  %v1419 = vunpack.c.l.b16 %v1295
  %v1420 = vunpack.c.h.b16 %v1295
  %v1421 = vunpack.c.l.b16 %v1296
  %v1422 = vunpack.c.h.b16 %v1296
  %v1423 = vunpack.c.l.b16 %v1297
  %v1424 = vunpack.c.h.b16 %v1297
  %v1425 = vunpack.c.l.b16 %v1298
  %v1426 = vunpack.c.h.b16 %v1298
  %v1427 = vunpack.c.l.b16 %v1299
  %v1428 = vunpack.c.h.b16 %v1299
  %v1429 = vunpack.c.l.b16 %v1300
  %v1430 = vunpack.c.h.b16 %v1300
  %v1431 = vunpack.c.l.b16 %v1301
  %v1432 = vunpack.c.h.b16 %v1301
  %v1433 = vunpack.c.l.b16 %v1302
  %v1434 = vunpack.c.h.b16 %v1302
  %v1435 = vunpack.c.l.b16 %v1303
  %v1436 = vunpack.c.h.b16 %v1303
  %v1437 = vunpack.c.l.b16 %v1304
  %v1438 = vunpack.c.h.b16 %v1304
  %v1439 = vunpack.c.l.b16 %v1305
  %v1440 = vunpack.c.h.b16 %v1305
  %v1441 = vunpack.c.l.b16 %v1306
  %v1442 = vunpack.c.h.b16 %v1306
  %v1443 = vunpack.c.l.b16 %v1307
  %v1444 = vunpack.c.h.b16 %v1307
  %v1445 = vunpack.c.l.b16 %v1308
  %v1446 = vunpack.c.h.b16 %v1308
  %v1447 = vunpack.c.l.b16 %v1309
  %v1448 = vunpack.c.h.b16 %v1309
  %v1449 = vunpack.c.l.b16 %v1310
  %v1450 = vunpack.c.h.b16 %v1310
  %v1451 = vunpack.c.l.b16 %v1311
  %v1452 = vunpack.c.h.b16 %v1311
  %v1453 = vunpack.c.l.b16 %v1312
  %v1454 = vunpack.c.h.b16 %v1312
  %v1455 = vunpack.c.l.b16 %v1313
  %v1456 = vunpack.c.h.b16 %v1313
  %v1457 = vunpack.c.l.b16 %v1314
  %v1458 = vunpack.c.h.b16 %v1314
  %v1459 = vunpack.c.l.b16 %v1315
  %v1460 = vunpack.c.h.b16 %v1315
  %v1461 = vunpack.c.l.b16 %v1316
  %v1462 = vunpack.c.h.b16 %v1316
  %v1463 = vunpack.c.l.b16 %v1317
  %v1464 = vunpack.c.h.b16 %v1317
  %v1465 = vunpack.c.l.b16 %v1318
  %v1466 = vunpack.c.h.b16 %v1318
  %v1467 = vunpack.c.l.b16 %v1319
  %v1468 = vunpack.c.h.b16 %v1319
  %v1469 = vunpack.c.l.b16 %v1320
  %v1470 = vunpack.c.h.b16 %v1320
  %v1471 = vunpack.c.l.b16 %v1321
  %v1472 = vunpack.c.h.b16 %v1321
  %v1473 = vunpack.c.l.b16 %v1322
  %v1474 = vunpack.c.h.b16 %v1322
  %v1475 = vunpack.c.l.b16 %v1323
  %v1476 = vunpack.c.h.b16 %v1323
  %v1477 = vunpack.c.l.b16 %v1324
  %v1478 = vunpack.c.h.b16 %v1324
  %v1479 = vunpack.c.l.b16 %v1325
  %v1480 = vunpack.c.h.b16 %v1325
  %v1481 = vunpack.c.l.b16 %v1326
  %v1482 = vunpack.c.h.b16 %v1326
  %v1483 = vunpack.c.l.b16 %v1327
  %v1484 = vunpack.c.h.b16 %v1327
  %v1485 = vunpack.c.l.b16 %v1328
  %v1486 = vunpack.c.h.b16 %v1328
  %v1487 = vunpack.c.l.b16 %v1329
  %v1488 = vunpack.c.h.b16 %v1329
  %v1489 = vunpack.c.l.b16 %v1330
  %v1490 = vunpack.c.h.b16 %v1330
  %v1491 = vunpack.c.l.b16 %v1331
  %v1492 = vunpack.c.h.b16 %v1331
  %v1493 = vunpack.c.l.b16 %v1332
  %v1494 = vunpack.c.h.b16 %v1332
  %v1495 = vunpack.c.l.b16 %v1333
  %v1496 = vunpack.c.h.b16 %v1333
  %v1497 = vunpack.c.l.b16 %v1334
  %v1498 = vunpack.c.h.b16 %v1334
  %v1499 = vunpack.c.l.b16 %v1335
  %v1500 = vunpack.c.h.b16 %v1335
  %v1501 = vunpack.c.l.b16 %v1336
  %v1502 = vunpack.c.h.b16 %v1336
  %v1503 = vunpack.c.l.b16 %v1337
  %v1504 = vunpack.c.h.b16 %v1337
  %v1505 = vunpack.c.l.b16 %v1338
  %v1506 = vunpack.c.h.b16 %v1338
  %v1507 = vunpack.c.l.b16 %v1339
  %v1508 = vunpack.c.h.b16 %v1339
  %v1509 = vunpack.c.l.b16 %v1340
  %v1510 = vunpack.c.h.b16 %v1340
  %v1511 = vunpack.c.l.b16 %v1341
  %v1512 = vunpack.c.h.b16 %v1341
  %v1513 = vunpack.c.l.b16 %v1342
  %v1514 = vunpack.c.h.b16 %v1342
  %v1515 = vunpack.c.l.b16 %v1343
  %v1516 = vunpack.c.h.b16 %v1343
  %v1517 = vunpack.c.l.b16 %v1344
  %v1518 = vunpack.c.h.b16 %v1344
  %v1519 = vunpack.c.l.b16 %v1345
  %v1520 = vunpack.c.h.b16 %v1345
  %v1521 = vunpack.c.l.b16 %v1346
  %v1522 = vunpack.c.h.b16 %v1346
  %v1523 = vunpack.c.l.b16 %v1347
  %v1524 = vunpack.c.h.b16 %v1347
  %v1525 = vunpack.c.l.b16 %v1348
  %v1526 = vunpack.c.h.b16 %v1348
  %v1527 = vunpack.c.l.b16 %v1349
  %v1528 = vunpack.c.h.b16 %v1349
  %v1529 = vunpack.c.l.b16 %v1350
  %v1530 = vunpack.c.h.b16 %v1350
  %v1531 = vunpack.c.l.b16 %v1351
  %v1532 = vunpack.c.h.b16 %v1351
  %v1533 = vunpack.c.l.b16 %v1352
  %v1534 = vunpack.c.h.b16 %v1352
  %v1535 = vunpack.c.l.b16 %v1353
  %v1536 = vpack.c.b16 %v1415, %v1415
  %v1537 = vpack.c.b16 %v1416, %v1416
  %v1538 = vpack.c.b16 %v1417, %v1417
  %v1539 = vpack.c.b16 %v1418, %v1418
  %v1540 = vpack.c.b16 %v1419, %v1419
  %v1541 = vpack.c.b16 %v1420, %v1420
  %v1542 = vpack.c.b16 %v1421, %v1421
  %v1543 = vpack.c.b16 %v1422, %v1422
  %v1544 = vpack.c.b16 %v1423, %v1423
  %v1545 = vpack.c.b16 %v1424, %v1424
  %v1546 = vpack.c.b16 %v1425, %v1425
  %v1547 = vpack.c.b16 %v1426, %v1426
  %v1548 = vpack.c.b16 %v1427, %v1427
  %v1549 = vpack.c.b16 %v1428, %v1428
  %v1550 = vpack.c.b16 %v1429, %v1429
  %v1551 = vpack.c.b16 %v1430, %v1430
  %v1552 = vpack.c.b16 %v1431, %v1431
  %v1553 = vpack.c.b16 %v1432, %v1432
  %v1554 = vpack.c.b16 %v1433, %v1433
  %v1555 = vpack.c.b16 %v1434, %v1434
  %v1556 = vpack.c.b16 %v1435, %v1435
  %v1557 = vpack.c.b16 %v1436, %v1436
  %v1558 = vpack.c.b16 %v1437, %v1437
  %v1559 = vpack.c.b16 %v1438, %v1438
  %v1560 = vpack.c.b16 %v1439, %v1439
  %v1561 = vpack.c.b16 %v1440, %v1440
  %v1562 = vpack.c.b16 %v1441, %v1441
  %v1563 = vpack.c.b16 %v1442, %v1442
  %v1564 = vpack.c.b16 %v1443, %v1443
  %v1565 = vpack.c.b16 %v1444, %v1444
  %v1566 = vpack.c.b16 %v1445, %v1445
  %v1567 = vpack.c.b16 %v1446, %v1446
  %v1568 = vpack.c.b16 %v1447, %v1447
  %v1569 = vpack.c.b16 %v1448, %v1448
  %v1570 = vpack.c.b16 %v1449, %v1449
  %v1571 = vpack.c.b16 %v1450, %v1450
  %v1572 = vpack.c.b16 %v1451, %v1451
  %v1573 = vpack.c.b16 %v1452, %v1452
  %v1574 = vpack.c.b16 %v1453, %v1453
  %v1575 = vpack.c.b16 %v1454, %v1454
  %v1576 = vpack.c.b16 %v1455, %v1455
  %v1577 = vpack.c.b16 %v1456, %v1456
  %v1578 = vpack.c.b16 %v1457, %v1457
  %v1579 = vpack.c.b16 %v1458, %v1458
  %v1580 = vpack.c.b16 %v1459, %v1459
  %v1581 = vpack.c.b16 %v1460, %v1460
  %v1582 = vpack.c.b16 %v1461, %v1461
  %v1583 = vpack.c.b16 %v1462, %v1462
  %v1584 = vpack.c.b16 %v1463, %v1463
  %v1585 = vpack.c.b16 %v1464, %v1464
  %v1586 = vpack.c.b16 %v1465, %v1465
  %v1587 = vpack.c.b16 %v1466, %v1466
  %v1588 = vpack.c.b16 %v1467, %v1467
  %v1589 = vpack.c.b16 %v1468, %v1468
  %v1590 = vpack.c.b16 %v1469, %v1469
  %v1591 = vpack.c.b16 %v1470, %v1470
  %v1592 = vpack.c.b16 %v1471, %v1471
  %v1593 = vpack.c.b16 %v1472, %v1472
  %v1594 = vpack.c.b16 %v1473, %v1473
  %v1595 = vpack.c.b16 %v1474, %v1474
  %v1596 = vpack.c.b16 %v1475, %v1475
  %v1597 = vpack.c.b16 %v1476, %v1476
  %v1598 = vpack.c.b16 %v1477, %v1477
  %v1599 = vpack.c.b16 %v1478, %v1478
  %v1600 = vpack.c.b16 %v1479, %v1479
  %v1601 = vpack.c.b16 %v1480, %v1480
  %v1602 = vpack.c.b16 %v1481, %v1481
  %v1603 = vpack.c.b16 %v1482, %v1482
  %v1604 = vpack.c.b16 %v1483, %v1483
  %v1605 = vpack.c.b16 %v1484, %v1484
  %v1606 = vpack.c.b16 %v1485, %v1485
  %v1607 = vpack.c.b16 %v1486, %v1486
  %v1608 = vpack.c.b16 %v1487, %v1487
  %v1609 = vpack.c.b16 %v1488, %v1488
  %v1610 = vpack.c.b16 %v1489, %v1489
  %v1611 = vpack.c.b16 %v1490, %v1490
  %v1612 = vpack.c.b16 %v1491, %v1491
  %v1613 = vpack.c.b16 %v1492, %v1492
  %v1614 = vpack.c.b16 %v1493, %v1493
  %v1615 = vpack.c.b16 %v1494, %v1494
  %v1616 = vpack.c.b16 %v1495, %v1495
  %v1617 = vpack.c.b16 %v1496, %v1496
  %v1618 = vpack.c.b16 %v1497, %v1497
  %v1619 = vpack.c.b16 %v1498, %v1498
  %v1620 = vpack.c.b16 %v1499, %v1499
  %v1621 = vpack.c.b16 %v1500, %v1500
  %v1622 = vpack.c.b16 %v1501, %v1501
  %v1623 = vpack.c.b16 %v1502, %v1502
  %v1624 = vpack.c.b16 %v1503, %v1503
  %v1625 = vpack.c.b16 %v1504, %v1504
  %v1626 = vpack.c.b16 %v1505, %v1505
  %v1627 = vpack.c.b16 %v1506, %v1506
  %v1628 = vpack.c.b16 %v1507, %v1507
  %v1629 = vpack.c.b16 %v1508, %v1508
  %v1630 = vpack.c.b16 %v1509, %v1509
  %v1631 = vpack.c.b16 %v1510, %v1510
  %v1632 = vpack.c.b16 %v1511, %v1511
  %v1633 = vpack.c.b16 %v1512, %v1512
  %v1634 = vpack.c.b16 %v1513, %v1513
  %v1635 = vpack.c.b16 %v1514, %v1514
  %v1636 = vpack.c.b16 %v1515, %v1515
  %v1637 = vpack.c.b16 %v1516, %v1516
  %v1638 = vpack.c.b16 %v1517, %v1517
  %v1639 = vpack.c.b16 %v1518, %v1518
  %v1640 = vpack.c.b16 %v1519, %v1519
  %v1641 = vpack.c.b16 %v1520, %v1520
  %v1642 = vpack.c.b16 %v1521, %v1521
  %v1643 = vpack.c.b16 %v1522, %v1522
  %v1644 = vpack.c.b16 %v1523, %v1523
  %v1645 = vpack.c.b16 %v1524, %v1524
  %v1646 = vpack.c.b16 %v1525, %v1525
  %v1647 = vpack.c.b16 %v1526, %v1526
  %v1648 = vpack.c.b16 %v1527, %v1527
  %v1649 = vpack.c.b16 %v1528, %v1528
  %v1650 = vpack.c.b16 %v1529, %v1529
  %v1651 = vpack.c.b16 %v1530, %v1530
  %v1652 = vpack.c.b16 %v1531, %v1531
  %v1653 = vpack.c.b16 %v1532, %v1532
  %v1654 = vpack.c.b16 %v1533, %v1533
  %v1655 = vpack.c.b16 %v1534, %v1534
  %v1656 = vpack.c.b16 %v1535, %v1535
  %vm1778 = vcmask 257024
  %1779 = vst.msk [vmem:[%s3] sm:$0xf] %vm1778, %v1536
  %1780 = vst.msk [vmem:[%s3 + $0x4] sm:$0xf] %vm1778, %v1537
  %1781 = vst.msk [vmem:[%s3 + $0x8] sm:$0xf] %vm1778, %v1538
  %1782 = vst.msk [vmem:[%s3 + $0xc] sm:$0xf] %vm1778, %v1539
  %1783 = vst.msk [vmem:[%s3 + $0x10] sm:$0xf] %vm1778, %v1540
  %1784 = vst.msk [vmem:[%s3 + $0x14] sm:$0xf] %vm1778, %v1541
  %1785 = vst.msk [vmem:[%s3 + $0x18] sm:$0xf] %vm1778, %v1542
  %1786 = vst.msk [vmem:[%s3 + $0x1c] sm:$0xf] %vm1778, %v1543
  %1787 = vst.msk [vmem:[%s3 + $0x20] sm:$0xf] %vm1778, %v1544
  %1788 = vst.msk [vmem:[%s3 + $0x24] sm:$0xf] %vm1778, %v1545
  %1789 = vst.msk [vmem:[%s3 + $0x28] sm:$0xf] %vm1778, %v1546
  %1790 = vst.msk [vmem:[%s3 + $0x2c] sm:$0xf] %vm1778, %v1547
  %1791 = vst.msk [vmem:[%s3 + $0x30] sm:$0xf] %vm1778, %v1548
  %1792 = vst.msk [vmem:[%s3 + $0x34] sm:$0xf] %vm1778, %v1549
  %1793 = vst.msk [vmem:[%s3 + $0x38] sm:$0xf] %vm1778, %v1550
  %1794 = vst.msk [vmem:[%s3 + $0x3c] sm:$0xf] %vm1778, %v1551
  %1795 = vst.msk [vmem:[%s3 + $0x40] sm:$0xf] %vm1778, %v1552
  %1796 = vst.msk [vmem:[%s3 + $0x44] sm:$0xf] %vm1778, %v1553
  %1797 = vst.msk [vmem:[%s3 + $0x48] sm:$0xf] %vm1778, %v1554
  %1798 = vst.msk [vmem:[%s3 + $0x4c] sm:$0xf] %vm1778, %v1555
  %1799 = vst.msk [vmem:[%s3 + $0x50] sm:$0xf] %vm1778, %v1556
  %1800 = vst.msk [vmem:[%s3 + $0x54] sm:$0xf] %vm1778, %v1557
  %1801 = vst.msk [vmem:[%s3 + $0x58] sm:$0xf] %vm1778, %v1558
  %1802 = vst.msk [vmem:[%s3 + $0x5c] sm:$0xf] %vm1778, %v1559
  %1803 = vst.msk [vmem:[%s3 + $0x60] sm:$0xf] %vm1778, %v1560
  %1804 = vst.msk [vmem:[%s3 + $0x64] sm:$0xf] %vm1778, %v1561
  %1805 = vst.msk [vmem:[%s3 + $0x68] sm:$0xf] %vm1778, %v1562
  %1806 = vst.msk [vmem:[%s3 + $0x6c] sm:$0xf] %vm1778, %v1563
  %1807 = vst.msk [vmem:[%s3 + $0x70] sm:$0xf] %vm1778, %v1564
  %1808 = vst.msk [vmem:[%s3 + $0x74] sm:$0xf] %vm1778, %v1565
  %1809 = vst.msk [vmem:[%s3 + $0x78] sm:$0xf] %vm1778, %v1566
  %1810 = vst.msk [vmem:[%s3 + $0x7c] sm:$0xf] %vm1778, %v1567
  %1811 = vst.msk [vmem:[%s3 + $0x80] sm:$0xf] %vm1778, %v1568
  %1812 = vst.msk [vmem:[%s3 + $0x84] sm:$0xf] %vm1778, %v1569
  %1813 = vst.msk [vmem:[%s3 + $0x88] sm:$0xf] %vm1778, %v1570
  %1814 = vst.msk [vmem:[%s3 + $0x8c] sm:$0xf] %vm1778, %v1571
  %1815 = vst.msk [vmem:[%s3 + $0x90] sm:$0xf] %vm1778, %v1572
  %1816 = vst.msk [vmem:[%s3 + $0x94] sm:$0xf] %vm1778, %v1573
  %1817 = vst.msk [vmem:[%s3 + $0x98] sm:$0xf] %vm1778, %v1574
  %1818 = vst.msk [vmem:[%s3 + $0x9c] sm:$0xf] %vm1778, %v1575
  %1819 = vst.msk [vmem:[%s3 + $0xa0] sm:$0xf] %vm1778, %v1576
  %1820 = vst.msk [vmem:[%s3 + $0xa4] sm:$0xf] %vm1778, %v1577
  %1821 = vst.msk [vmem:[%s3 + $0xa8] sm:$0xf] %vm1778, %v1578
  %1822 = vst.msk [vmem:[%s3 + $0xac] sm:$0xf] %vm1778, %v1579
  %1823 = vst.msk [vmem:[%s3 + $0xb0] sm:$0xf] %vm1778, %v1580
  %1824 = vst.msk [vmem:[%s3 + $0xb4] sm:$0xf] %vm1778, %v1581
  %1825 = vst.msk [vmem:[%s3 + $0xb8] sm:$0xf] %vm1778, %v1582
  %1826 = vst.msk [vmem:[%s3 + $0xbc] sm:$0xf] %vm1778, %v1583
  %1827 = vst.msk [vmem:[%s3 + $0xc0] sm:$0xf] %vm1778, %v1584
  %1828 = vst.msk [vmem:[%s3 + $0xc4] sm:$0xf] %vm1778, %v1585
  %1829 = vst.msk [vmem:[%s3 + $0xc8] sm:$0xf] %vm1778, %v1586
  %1830 = vst.msk [vmem:[%s3 + $0xcc] sm:$0xf] %vm1778, %v1587
  %1831 = vst.msk [vmem:[%s3 + $0xd0] sm:$0xf] %vm1778, %v1588
  %1832 = vst.msk [vmem:[%s3 + $0xd4] sm:$0xf] %vm1778, %v1589
  %1833 = vst.msk [vmem:[%s3 + $0xd8] sm:$0xf] %vm1778, %v1590
  %1834 = vst.msk [vmem:[%s3 + $0xdc] sm:$0xf] %vm1778, %v1591
  %1835 = vst.msk [vmem:[%s3 + $0xe0] sm:$0xf] %vm1778, %v1592
  %1836 = vst.msk [vmem:[%s3 + $0xe4] sm:$0xf] %vm1778, %v1593
  %1837 = vst.msk [vmem:[%s3 + $0xe8] sm:$0xf] %vm1778, %v1594
  %1838 = vst.msk [vmem:[%s3 + $0xec] sm:$0xf] %vm1778, %v1595
  %1839 = vst.msk [vmem:[%s3 + $0xf0] sm:$0xf] %vm1778, %v1596
  %1840 = vst.msk [vmem:[%s3 + $0xf4] sm:$0xf] %vm1778, %v1597
  %1841 = vst.msk [vmem:[%s3 + $0xf8] sm:$0xf] %vm1778, %v1598
  %1842 = vst.msk [vmem:[%s3 + $0xfc] sm:$0xf] %vm1778, %v1599
  %1843 = vst.msk [vmem:[%s3 + $0x100] sm:$0xf] %vm1778, %v1600
  %1844 = vst.msk [vmem:[%s3 + $0x104] sm:$0xf] %vm1778, %v1601
  %1845 = vst.msk [vmem:[%s3 + $0x108] sm:$0xf] %vm1778, %v1602
  %1846 = vst.msk [vmem:[%s3 + $0x10c] sm:$0xf] %vm1778, %v1603
  %1847 = vst.msk [vmem:[%s3 + $0x110] sm:$0xf] %vm1778, %v1604
  %1848 = vst.msk [vmem:[%s3 + $0x114] sm:$0xf] %vm1778, %v1605
  %1849 = vst.msk [vmem:[%s3 + $0x118] sm:$0xf] %vm1778, %v1606
  %1850 = vst.msk [vmem:[%s3 + $0x11c] sm:$0xf] %vm1778, %v1607
  %1851 = vst.msk [vmem:[%s3 + $0x120] sm:$0xf] %vm1778, %v1608
  %1852 = vst.msk [vmem:[%s3 + $0x124] sm:$0xf] %vm1778, %v1609
  %1853 = vst.msk [vmem:[%s3 + $0x128] sm:$0xf] %vm1778, %v1610
  %1854 = vst.msk [vmem:[%s3 + $0x12c] sm:$0xf] %vm1778, %v1611
  %1855 = vst.msk [vmem:[%s3 + $0x130] sm:$0xf] %vm1778, %v1612
  %1856 = vst.msk [vmem:[%s3 + $0x134] sm:$0xf] %vm1778, %v1613
  %1857 = vst.msk [vmem:[%s3 + $0x138] sm:$0xf] %vm1778, %v1614
  %1858 = vst.msk [vmem:[%s3 + $0x13c] sm:$0xf] %vm1778, %v1615
  %1859 = vst.msk [vmem:[%s3 + $0x140] sm:$0xf] %vm1778, %v1616
  %1860 = vst.msk [vmem:[%s3 + $0x144] sm:$0xf] %vm1778, %v1617
  %1861 = vst.msk [vmem:[%s3 + $0x148] sm:$0xf] %vm1778, %v1618
  %1862 = vst.msk [vmem:[%s3 + $0x14c] sm:$0xf] %vm1778, %v1619
  %1863 = vst.msk [vmem:[%s3 + $0x150] sm:$0xf] %vm1778, %v1620
  %1864 = vst.msk [vmem:[%s3 + $0x154] sm:$0xf] %vm1778, %v1621
  %1865 = vst.msk [vmem:[%s3 + $0x158] sm:$0xf] %vm1778, %v1622
  %1866 = vst.msk [vmem:[%s3 + $0x15c] sm:$0xf] %vm1778, %v1623
  %1867 = vst.msk [vmem:[%s3 + $0x160] sm:$0xf] %vm1778, %v1624
  %1868 = vst.msk [vmem:[%s3 + $0x164] sm:$0xf] %vm1778, %v1625
  %1869 = vst.msk [vmem:[%s3 + $0x168] sm:$0xf] %vm1778, %v1626
  %1870 = vst.msk [vmem:[%s3 + $0x16c] sm:$0xf] %vm1778, %v1627
  %1871 = vst.msk [vmem:[%s3 + $0x170] sm:$0xf] %vm1778, %v1628
  %1872 = vst.msk [vmem:[%s3 + $0x174] sm:$0xf] %vm1778, %v1629
  %1873 = vst.msk [vmem:[%s3 + $0x178] sm:$0xf] %vm1778, %v1630
  %1874 = vst.msk [vmem:[%s3 + $0x17c] sm:$0xf] %vm1778, %v1631
  %1875 = vst.msk [vmem:[%s3 + $0x180] sm:$0xf] %vm1778, %v1632
  %1876 = vst.msk [vmem:[%s3 + $0x184] sm:$0xf] %vm1778, %v1633
  %1877 = vst.msk [vmem:[%s3 + $0x188] sm:$0xf] %vm1778, %v1634
  %1878 = vst.msk [vmem:[%s3 + $0x18c] sm:$0xf] %vm1778, %v1635
  %1879 = vst.msk [vmem:[%s3 + $0x190] sm:$0xf] %vm1778, %v1636
  %1880 = vst.msk [vmem:[%s3 + $0x194] sm:$0xf] %vm1778, %v1637
  %1881 = vst.msk [vmem:[%s3 + $0x198] sm:$0xf] %vm1778, %v1638
  %1882 = vst.msk [vmem:[%s3 + $0x19c] sm:$0xf] %vm1778, %v1639
  %1883 = vst.msk [vmem:[%s3 + $0x1a0] sm:$0xf] %vm1778, %v1640
  %1884 = vst.msk [vmem:[%s3 + $0x1a4] sm:$0xf] %vm1778, %v1641
  %1885 = vst.msk [vmem:[%s3 + $0x1a8] sm:$0xf] %vm1778, %v1642
  %1886 = vst.msk [vmem:[%s3 + $0x1ac] sm:$0xf] %vm1778, %v1643
  %1887 = vst.msk [vmem:[%s3 + $0x1b0] sm:$0xf] %vm1778, %v1644
  %1888 = vst.msk [vmem:[%s3 + $0x1b4] sm:$0xf] %vm1778, %v1645
  %1889 = vst.msk [vmem:[%s3 + $0x1b8] sm:$0xf] %vm1778, %v1646
  %1890 = vst.msk [vmem:[%s3 + $0x1bc] sm:$0xf] %vm1778, %v1647
  %1891 = vst.msk [vmem:[%s3 + $0x1c0] sm:$0xf] %vm1778, %v1648
  %1892 = vst.msk [vmem:[%s3 + $0x1c4] sm:$0xf] %vm1778, %v1649
  %1893 = vst.msk [vmem:[%s3 + $0x1c8] sm:$0xf] %vm1778, %v1650
  %1894 = vst.msk [vmem:[%s3 + $0x1cc] sm:$0xf] %vm1778, %v1651
  %1895 = vst.msk [vmem:[%s3 + $0x1d0] sm:$0xf] %vm1778, %v1652
  %1896 = vst.msk [vmem:[%s3 + $0x1d4] sm:$0xf] %vm1778, %v1653
  %1897 = vst.msk [vmem:[%s3 + $0x1d8] sm:$0xf] %vm1778, %v1654
  %1898 = vst.msk [vmem:[%s3 + $0x1dc] sm:$0xf] %vm1778, %v1655
  %1899 = vst.msk [vmem:[%s3 + $0x1e0] sm:$0xf] %vm1778, %v1656
  // Predicated region
  $region14: #{forward.4} parent=0 // pred_check
    _
  $region15: #{forward.4} parent=0 // pred_check_branch
    %1901 = sbr.rel (0) target = $region17
  $region16: #{forward.4} parent=0 // pred_region
    _
  $region17: #{forward.4} parent=0 // pred_fallthru
    _
  // Predicated region
  $region18: #{forward.4} parent=0 // pred_check
    _
  $region19: #{forward.4} parent=0 // pred_check_branch
    %1903 = sbr.rel (0) target = $region21
  $region20: #{forward.4} parent=0 // pred_region
    _
  $region21: #{forward.4} parent=0 // pred_fallthru
    _

// kernel: forward.5
$region0: #{forward.5}
  #allocation0 [shape = 'u32[]', space=smem, size = 0x4, offset = 0x4, fixed_abs, tag = 'smem constant byte address 0x4 - core index']
  #allocation1 [shape = 'u32[144,128]{1,0:T(1,128)}', space=vmem, size = 0x12000, scoped, tag = 'internal scratch']
  %s0 = inlined_call_operand.vmem [shape: bf16[200,288], index: 0, kind: input, shape index: {}]
  %s1 = inlined_call_operand.vmem [shape: bf16[288,32], index: 1, kind: input, shape index: {}]
  %s2 = inlined_call_operand.vmem [shape: f32[1,32], index: 2, kind: input, shape index: {}]
  %s3 = inlined_call_operand.vmem [shape: bf16[200,32], index: 3, kind: output, shape index: {}]
  %s4 = sld [smem:[#allocation0]]
  $region22: #{forward.5} parent=0
    _
  %s6 = ssub.s32 1, %s4
  %s7 = scalar_select 0, %s6, %s4
  // Predicated region
  $region2: #{forward.5} parent=0 // pred_check
    _
  $region3: #{forward.5} parent=0 // pred_check_branch
    %9 = sbr.rel (0) target = $region5
  $region4: #{forward.5} parent=0 // pred_region
    _
  $region5: #{forward.5} parent=0 // pred_fallthru
    _
  // Predicated region
  $region6: #{forward.5} parent=0 // pred_check
    _
  $region7: #{forward.5} parent=0 // pred_check_branch
    %11 = sbr.rel (0) target = $region9
  $region8: #{forward.5} parent=0 // pred_region
    _
  $region9: #{forward.5} parent=0 // pred_fallthru
    _
  // Predicated region
  $region10: #{forward.5} parent=0 // pred_check
    _
  $region11: #{forward.5} parent=0 // pred_check_branch
    %13 = sbr.rel (0) target = $region13
  $region12: #{forward.5} parent=0 // pred_region
    _
  $region13: #{forward.5} parent=0 // pred_fallthru
    _
  %v15 = vld [vmem:[%s0] sm:$0xff]
  %v16 = vld [vmem:[%s0 + $0x8] sm:$0xf]
  %v17 = vld [vmem:[%s0 + $0xc] sm:$0xff]
  %v18 = vld [vmem:[%s0 + $0x14] sm:$0xf]
  %v19 = vld [vmem:[%s0 + $0x18] sm:$0xff]
  %v20 = vld [vmem:[%s0 + $0x20] sm:$0xf]
  %v21 = vld [vmem:[%s0 + $0x24] sm:$0xff]
  %v22 = vld [vmem:[%s0 + $0x2c] sm:$0xf]
  %v23 = vld [vmem:[%s0 + $0x30] sm:$0xff]
  %v24 = vld [vmem:[%s0 + $0x38] sm:$0xf]
  %v25 = vld [vmem:[%s0 + $0x3c] sm:$0xff]
  %v26 = vld [vmem:[%s0 + $0x44] sm:$0xf]
  %v27 = vld [vmem:[%s0 + $0x48] sm:$0xff]
  %v28 = vld [vmem:[%s0 + $0x50] sm:$0xf]
  %v29 = vld [vmem:[%s0 + $0x54] sm:$0xff]
  %v30 = vld [vmem:[%s0 + $0x5c] sm:$0xf]
  %v31 = vld [vmem:[%s0 + $0x60] sm:$0xff]
  %v32 = vld [vmem:[%s0 + $0x68] sm:$0xf]
  %v33 = vld [vmem:[%s0 + $0x6c] sm:$0xff]
  %v34 = vld [vmem:[%s0 + $0x74] sm:$0xf]
  %v35 = vld [vmem:[%s0 + $0x78] sm:$0xff]
  %v36 = vld [vmem:[%s0 + $0x80] sm:$0xf]
  %v37 = vld [vmem:[%s0 + $0x84] sm:$0xff]
  %v38 = vld [vmem:[%s0 + $0x8c] sm:$0xf]
  %v39 = vld [vmem:[%s0 + $0x90] sm:$0xff]
  %v40 = vld [vmem:[%s0 + $0x98] sm:$0xf]
  %v41 = vld [vmem:[%s0 + $0x9c] sm:$0xff]
  %v42 = vld [vmem:[%s0 + $0xa4] sm:$0xf]
  %v43 = vld [vmem:[%s0 + $0xa8] sm:$0xff]
  %v44 = vld [vmem:[%s0 + $0xb0] sm:$0xf]
  %v45 = vld [vmem:[%s0 + $0xb4] sm:$0xff]
  %v46 = vld [vmem:[%s0 + $0xbc] sm:$0xf]
  %v47 = vld [vmem:[%s0 + $0xc0] sm:$0xff]
  %v48 = vld [vmem:[%s0 + $0xc8] sm:$0xf]
  %v49 = vld [vmem:[%s0 + $0xcc] sm:$0xff]
  %v50 = vld [vmem:[%s0 + $0xd4] sm:$0xf]
  %v51 = vld [vmem:[%s0 + $0xd8] sm:$0xff]
  %v52 = vld [vmem:[%s0 + $0xe0] sm:$0xf]
  %v53 = vld [vmem:[%s0 + $0xe4] sm:$0xff]
  %v54 = vld [vmem:[%s0 + $0xec] sm:$0xf]
  %v55 = vld [vmem:[%s0 + $0xf0] sm:$0xff]
  %v56 = vld [vmem:[%s0 + $0xf8] sm:$0xf]
  %v57 = vld [vmem:[%s0 + $0xfc] sm:$0xff]
  %v58 = vld [vmem:[%s0 + $0x104] sm:$0xf]
  %v59 = vld [vmem:[%s0 + $0x108] sm:$0xff]
  %v60 = vld [vmem:[%s0 + $0x110] sm:$0xf]
  %v61 = vld [vmem:[%s0 + $0x114] sm:$0xff]
  %v62 = vld [vmem:[%s0 + $0x11c] sm:$0xf]
  %v63 = vld [vmem:[%s0 + $0x120] sm:$0xff]
  %v64 = vld [vmem:[%s0 + $0x128] sm:$0xf]
  %v65 = vld [vmem:[%s1] sm:$0xf]
  %v66 = vld [vmem:[%s1 + $0x4] sm:$0xf]
  %v67 = vld [vmem:[%s1 + $0x8] sm:$0xf]
  %v68 = vld [vmem:[%s1 + $0xc] sm:$0xf]
  %v69 = vld [vmem:[%s1 + $0x10] sm:$0xf]
  %v70 = vld [vmem:[%s1 + $0x14] sm:$0xf]
  %v71 = vld [vmem:[%s1 + $0x18] sm:$0xf]
  %v72 = vld [vmem:[%s1 + $0x1c] sm:$0xf]
  %v73 = vld [vmem:[%s1 + $0x20] sm:$0xf]
  %v74 = vld [vmem:[%s1 + $0x24] sm:$0xf]
  %v75 = vld [vmem:[%s1 + $0x28] sm:$0xf]
  %v76 = vld [vmem:[%s1 + $0x2c] sm:$0xf]
  %v77 = vld [vmem:[%s1 + $0x30] sm:$0xf]
  %v78 = vld [vmem:[%s1 + $0x34] sm:$0xf]
  %v79 = vld [vmem:[%s1 + $0x38] sm:$0xf]
  %v80 = vld [vmem:[%s1 + $0x3c] sm:$0xf]
  %v81 = vld [vmem:[%s1 + $0x40] sm:$0xf]
  %v82 = vld [vmem:[%s1 + $0x44] sm:$0xf]
  %v83 = vld [vmem:[%s1 + $0x48] sm:$0xf]
  %v84 = vld [vmem:[%s1 + $0x4c] sm:$0xf]
  %v85 = vld [vmem:[%s1 + $0x50] sm:$0xf]
  %v86 = vld [vmem:[%s1 + $0x54] sm:$0xf]
  %v87 = vld [vmem:[%s1 + $0x58] sm:$0xf]
  %v88 = vld [vmem:[%s1 + $0x5c] sm:$0xf]
  %v89 = vld [vmem:[%s1 + $0x60] sm:$0xf]
  %v90 = vld [vmem:[%s1 + $0x64] sm:$0xf]
  %v91 = vld [vmem:[%s1 + $0x68] sm:$0xf]
  %v92 = vld [vmem:[%s1 + $0x6c] sm:$0xf]
  %v93 = vld [vmem:[%s1 + $0x70] sm:$0xf]
  %v94 = vld [vmem:[%s1 + $0x74] sm:$0xf]
  %v95 = vld [vmem:[%s1 + $0x78] sm:$0xf]
  %v96 = vld [vmem:[%s1 + $0x7c] sm:$0xf]
  %v97 = vld [vmem:[%s1 + $0x80] sm:$0xf]
  %v98 = vld [vmem:[%s1 + $0x84] sm:$0xf]
  %v99 = vld [vmem:[%s1 + $0x88] sm:$0xf]
  %v100 = vld [vmem:[%s1 + $0x8c] sm:$0xf]
  %v101 = vld [vmem:[%s2] sm:$0x1]
  %v103 = vlaneseq
  %v104 = vshrl.u32 %v103, 7
  %v105 = vsub.s32 0, %v104
  %v106 = vrot.slane %v101, %v105
  %v158 = vunpack.c.l.b16 %v15
  %v159 = vunpack.c.h.b16 %v15
  %v160 = vunpack.c.l.b16 %v16
  %v161 = vunpack.c.l.b16 %v17
  %v162 = vunpack.c.h.b16 %v17
  %v163 = vunpack.c.l.b16 %v18
  %v164 = vunpack.c.l.b16 %v19
  %v165 = vunpack.c.h.b16 %v19
  %v166 = vunpack.c.l.b16 %v20
  %v167 = vunpack.c.l.b16 %v21
  %v168 = vunpack.c.h.b16 %v21
  %v169 = vunpack.c.l.b16 %v22
  %v170 = vunpack.c.l.b16 %v23
  %v171 = vunpack.c.h.b16 %v23
  %v172 = vunpack.c.l.b16 %v24
  %v173 = vunpack.c.l.b16 %v25
  %v174 = vunpack.c.h.b16 %v25
  %v175 = vunpack.c.l.b16 %v26
  %v176 = vunpack.c.l.b16 %v27
  %v177 = vunpack.c.h.b16 %v27
  %v178 = vunpack.c.l.b16 %v28
  %v179 = vunpack.c.l.b16 %v29
  %v180 = vunpack.c.h.b16 %v29
  %v181 = vunpack.c.l.b16 %v30
  %v182 = vunpack.c.l.b16 %v31
  %v183 = vunpack.c.h.b16 %v31
  %v184 = vunpack.c.l.b16 %v32
  %v185 = vunpack.c.l.b16 %v33
  %v186 = vunpack.c.h.b16 %v33
  %v187 = vunpack.c.l.b16 %v34
  %v188 = vunpack.c.l.b16 %v35
  %v189 = vunpack.c.h.b16 %v35
  %v190 = vunpack.c.l.b16 %v36
  %v191 = vunpack.c.l.b16 %v37
  %v192 = vunpack.c.h.b16 %v37
  %v193 = vunpack.c.l.b16 %v38
  %v194 = vunpack.c.l.b16 %v39
  %v195 = vunpack.c.h.b16 %v39
  %v196 = vunpack.c.l.b16 %v40
  %v197 = vunpack.c.l.b16 %v41
  %v198 = vunpack.c.h.b16 %v41
  %v199 = vunpack.c.l.b16 %v42
  %v200 = vunpack.c.l.b16 %v43
  %v201 = vunpack.c.h.b16 %v43
  %v202 = vunpack.c.l.b16 %v44
  %v203 = vunpack.c.l.b16 %v45
  %v204 = vunpack.c.h.b16 %v45
  %v205 = vunpack.c.l.b16 %v46
  %v206 = vunpack.c.l.b16 %v47
  %v207 = vunpack.c.h.b16 %v47
  %v208 = vunpack.c.l.b16 %v48
  %v209 = vunpack.c.l.b16 %v49
  %v210 = vunpack.c.h.b16 %v49
  %v211 = vunpack.c.l.b16 %v50
  %v212 = vunpack.c.l.b16 %v51
  %v213 = vunpack.c.h.b16 %v51
  %v214 = vunpack.c.l.b16 %v52
  %v215 = vunpack.c.l.b16 %v53
  %v216 = vunpack.c.h.b16 %v53
  %v217 = vunpack.c.l.b16 %v54
  %v218 = vunpack.c.l.b16 %v55
  %v219 = vunpack.c.h.b16 %v55
  %v220 = vunpack.c.l.b16 %v56
  %v221 = vunpack.c.l.b16 %v57
  %v222 = vunpack.c.h.b16 %v57
  %v223 = vunpack.c.l.b16 %v58
  %v224 = vunpack.c.l.b16 %v59
  %v225 = vunpack.c.h.b16 %v59
  %v226 = vunpack.c.l.b16 %v60
  %v227 = vunpack.c.l.b16 %v61
  %v228 = vunpack.c.h.b16 %v61
  %v229 = vunpack.c.l.b16 %v62
  %v230 = vunpack.c.l.b16 %v63
  %v231 = vunpack.c.h.b16 %v63
  %v232 = vunpack.c.l.b16 %v64
  %v233 = vpack.c.b16 %v161, %v158
  %v234 = vpack.c.b16 %v162, %v159
  %v235 = vpack.c.b16 %v163, %v160
  %v236 = vpack.c.b16 %v167, %v164
  %v237 = vpack.c.b16 %v168, %v165
  %v238 = vpack.c.b16 %v169, %v166
  %v239 = vpack.c.b16 %v173, %v170
  %v240 = vpack.c.b16 %v174, %v171
  %v241 = vpack.c.b16 %v175, %v172
  %v242 = vpack.c.b16 %v179, %v176
  %v243 = vpack.c.b16 %v180, %v177
  %v244 = vpack.c.b16 %v181, %v178
  %v245 = vpack.c.b16 %v185, %v182
  %v246 = vpack.c.b16 %v186, %v183
  %v247 = vpack.c.b16 %v187, %v184
  %v248 = vpack.c.b16 %v191, %v188
  %v249 = vpack.c.b16 %v192, %v189
  %v250 = vpack.c.b16 %v193, %v190
  %v251 = vpack.c.b16 %v197, %v194
  %v252 = vpack.c.b16 %v198, %v195
  %v253 = vpack.c.b16 %v199, %v196
  %v254 = vpack.c.b16 %v203, %v200
  %v255 = vpack.c.b16 %v204, %v201
  %v256 = vpack.c.b16 %v205, %v202
  %v257 = vpack.c.b16 %v209, %v206
  %v258 = vpack.c.b16 %v210, %v207
  %v259 = vpack.c.b16 %v211, %v208
  %v260 = vpack.c.b16 %v215, %v212
  %v261 = vpack.c.b16 %v216, %v213
  %v262 = vpack.c.b16 %v217, %v214
  %v263 = vpack.c.b16 %v221, %v218
  %v264 = vpack.c.b16 %v222, %v219
  %v265 = vpack.c.b16 %v223, %v220
  %v266 = vpack.c.b16 %v227, %v224
  %v267 = vpack.c.b16 %v228, %v225
  %v268 = vpack.c.b16 %v229, %v226
  %v269 = vpack.c.b16 %v230, %v230
  %v270 = vpack.c.b16 %v231, %v231
  %v271 = vpack.c.b16 %v232, %v232
  %v334 = vunpack.c.l.b16 %v65
  %v335 = vunpack.c.l.b16 %v66
  %v336 = vunpack.c.l.b16 %v67
  %v337 = vunpack.c.l.b16 %v68
  %v338 = vunpack.c.l.b16 %v69
  %v339 = vunpack.c.l.b16 %v70
  %v340 = vunpack.c.l.b16 %v71
  %v341 = vunpack.c.l.b16 %v72
  %v342 = vunpack.c.l.b16 %v73
  %v343 = vunpack.c.l.b16 %v74
  %v344 = vunpack.c.l.b16 %v75
  %v345 = vunpack.c.l.b16 %v76
  %v346 = vunpack.c.l.b16 %v77
  %v347 = vunpack.c.l.b16 %v78
  %v348 = vunpack.c.l.b16 %v79
  %v349 = vunpack.c.l.b16 %v80
  %v350 = vunpack.c.l.b16 %v81
  %v351 = vunpack.c.l.b16 %v82
  %v352 = vunpack.c.l.b16 %v83
  %v353 = vunpack.c.l.b16 %v84
  %v354 = vunpack.c.l.b16 %v85
  %v355 = vunpack.c.l.b16 %v86
  %v356 = vunpack.c.l.b16 %v87
  %v357 = vunpack.c.l.b16 %v88
  %v358 = vunpack.c.l.b16 %v89
  %v359 = vunpack.c.l.b16 %v90
  %v360 = vunpack.c.l.b16 %v91
  %v361 = vunpack.c.l.b16 %v92
  %v362 = vunpack.c.l.b16 %v93
  %v363 = vunpack.c.l.b16 %v94
  %v364 = vunpack.c.l.b16 %v95
  %v365 = vunpack.c.l.b16 %v96
  %v366 = vunpack.c.l.b16 %v97
  %v367 = vunpack.c.l.b16 %v98
  %v368 = vunpack.c.l.b16 %v99
  %v369 = vunpack.c.l.b16 %v100
  %v370 = vpack.c.b16 %v335, %v334
  %v371 = vpack.c.b16 %v337, %v336
  %v372 = vpack.c.b16 %v339, %v338
  %v373 = vpack.c.b16 %v341, %v340
  %v374 = vpack.c.b16 %v343, %v342
  %v375 = vpack.c.b16 %v345, %v344
  %v376 = vpack.c.b16 %v347, %v346
  %v377 = vpack.c.b16 %v349, %v348
  %v378 = vpack.c.b16 %v351, %v350
  %v379 = vpack.c.b16 %v353, %v352
  %v380 = vpack.c.b16 %v355, %v354
  %v381 = vpack.c.b16 %v357, %v356
  %v382 = vpack.c.b16 %v359, %v358
  %v383 = vpack.c.b16 %v361, %v360
  %v384 = vpack.c.b16 %v363, %v362
  %v385 = vpack.c.b16 %v365, %v364
  %v386 = vpack.c.b16 %v367, %v366
  %v387 = vpack.c.b16 %v369, %v368
  %vm406 = vcmask 261120
  %v408 = vsel %vm406, %v235, 0
  %v411 = vsel %vm406, %v238, 0
  %v414 = vsel %vm406, %v241, 0
  %v417 = vsel %vm406, %v244, 0
  %v420 = vsel %vm406, %v247, 0
  %v423 = vsel %vm406, %v250, 0
  %v426 = vsel %vm406, %v253, 0
  %v429 = vsel %vm406, %v256, 0
  %v432 = vsel %vm406, %v259, 0
  %v435 = vsel %vm406, %v262, 0
  %v438 = vsel %vm406, %v265, 0
  %v441 = vsel %vm406, %v268, 0
  %v444 = vsel %vm406, %v271, 0
  %446 = vmatprep.subr.bf16.mxu0 0
  %447 = vmatpush1.bf16.msra.mxu0 %v370
  %448 = vmatprep.subr.bf16.mxu0 0
  %449 = vmatpush1.bf16.msra.mxu0 %v371
  %450 = vmatprep.subr.bf16.mxu0 0
  %451 = vmatpush1.bf16.msra.mxu0 %v372
  %452 = vmatprep.subr.bf16.mxu0 0
  %453 = vmatpush1.bf16.msra.mxu0 %v373
  %454 = vmatprep.subr.bf16.mxu0 0
  %455 = vmatpush1.bf16.msra.mxu0 %v374
  %456 = vmatprep.subr.bf16.mxu0 0
  %457 = vmatpush1.bf16.msra.mxu0 %v375
  %458 = vmatprep.subr.bf16.mxu0 0
  %459 = vmatpush1.bf16.msra.mxu0 %v376
  %460 = vmatprep.subr.bf16.mxu0 0
  %461 = vmatpush1.bf16.msra.mxu0 %v377
  %462 = vmatprep.subr.bf16.mxu0 0
  %463 = vmatpush1.bf16.msra.mxu0 %v378
  %464 = vmatprep.subr.bf16.mxu0 0
  %465 = vmatpush1.bf16.msra.mxu0 %v379
  %466 = vmatprep.subr.bf16.mxu0 0
  %467 = vmatpush1.bf16.msra.mxu0 %v380
  %468 = vmatprep.subr.bf16.mxu0 0
  %469 = vmatpush1.bf16.msra.mxu0 %v381
  %470 = vmatprep.subr.bf16.mxu0 0
  %471 = vmatpush1.bf16.msra.mxu0 %v382
  %472 = vmatprep.subr.bf16.mxu0 0
  %473 = vmatpush1.bf16.msra.mxu0 %v383
  %474 = vmatprep.subr.bf16.mxu0 0
  %475 = vmatpush1.bf16.msra.mxu0 %v384
  %476 = vmatprep.subr.bf16.mxu0 0
  %477 = vmatpush1.bf16.msra.mxu0 %v385
  %478 = vmatprep.mubr.bf16.mxu0 %v234
  %479 = vmatmul.mubr.bf16.gmra.mrb[0].mxu0 %v233
  %v480 = vpop.f32.mrb[0].mxu0
  %v481 = vadd.f32 %v106, %v480
  %v482 = vpop.f32.mrb[0].mxu0
  %v483 = vpop.f32.mrb[0].mxu0
  %v484 = vadd.f32 %v106, %v483
  %v485 = vpop.f32.mrb[0].mxu0
  %486 = vmatprep.mubr.bf16.mxu0 %v237
  %487 = vmatmul.mubr.bf16.gmra.mrb[0].mxu0 %v236
  %v488 = vpop.f32.mrb[0].mxu0
  %v489 = vadd.f32 %v106, %v488
  %v490 = vpop.f32.mrb[0].mxu0
  %v491 = vpop.f32.mrb[0].mxu0
  %v492 = vadd.f32 %v106, %v491
  %v493 = vpop.f32.mrb[0].mxu0
  %494 = vmatprep.mubr.bf16.mxu0 %v240
  %495 = vmatmul.mubr.bf16.gmra.mrb[0].mxu0 %v239
  %v496 = vpop.f32.mrb[0].mxu0
  %v497 = vadd.f32 %v106, %v496
  %v498 = vpop.f32.mrb[0].mxu0
  %v499 = vpop.f32.mrb[0].mxu0
  %v500 = vadd.f32 %v106, %v499
  %v501 = vpop.f32.mrb[0].mxu0
  %502 = vmatprep.mubr.bf16.mxu0 %v243
  %503 = vmatmul.mubr.bf16.gmra.mrb[0].mxu0 %v242
  %v504 = vpop.f32.mrb[0].mxu0
  %v505 = vadd.f32 %v106, %v504
  %v506 = vpop.f32.mrb[0].mxu0
  %v507 = vpop.f32.mrb[0].mxu0
  %v508 = vadd.f32 %v106, %v507
  %v509 = vpop.f32.mrb[0].mxu0
  %510 = vmatprep.mubr.bf16.mxu0 %v246
  %511 = vmatmul.mubr.bf16.gmra.mrb[0].mxu0 %v245
  %v512 = vpop.f32.mrb[0].mxu0
  %v513 = vadd.f32 %v106, %v512
  %v514 = vpop.f32.mrb[0].mxu0
  %v515 = vpop.f32.mrb[0].mxu0
  %v516 = vadd.f32 %v106, %v515
  %v517 = vpop.f32.mrb[0].mxu0
  %518 = vmatprep.mubr.bf16.mxu0 %v249
  %519 = vmatmul.mubr.bf16.gmra.mrb[0].mxu0 %v248
  %v520 = vpop.f32.mrb[0].mxu0
  %v521 = vadd.f32 %v106, %v520
  %v522 = vpop.f32.mrb[0].mxu0
  %v523 = vpop.f32.mrb[0].mxu0
  %v524 = vadd.f32 %v106, %v523
  %v525 = vpop.f32.mrb[0].mxu0
  %526 = vmatprep.mubr.bf16.mxu0 %v252
  %527 = vmatmul.mubr.bf16.gmra.mrb[0].mxu0 %v251
  %v528 = vpop.f32.mrb[0].mxu0
  %v529 = vadd.f32 %v106, %v528
  %v530 = vpop.f32.mrb[0].mxu0
  %v531 = vpop.f32.mrb[0].mxu0
  %v532 = vadd.f32 %v106, %v531
  %v533 = vpop.f32.mrb[0].mxu0
  %534 = vmatprep.mubr.bf16.mxu0 %v255
  %535 = vmatmul.mubr.bf16.gmra.mrb[0].mxu0 %v254
  %v536 = vpop.f32.mrb[0].mxu0
  %v537 = vadd.f32 %v106, %v536
  %v538 = vpop.f32.mrb[0].mxu0
  %v539 = vpop.f32.mrb[0].mxu0
  %v540 = vadd.f32 %v106, %v539
  %v541 = vpop.f32.mrb[0].mxu0
  %542 = vmatprep.mubr.bf16.mxu0 %v258
  %543 = vmatmul.mubr.bf16.gmra.mrb[0].mxu0 %v257
  %v544 = vpop.f32.mrb[0].mxu0
  %v545 = vadd.f32 %v106, %v544
  %v546 = vpop.f32.mrb[0].mxu0
  %v547 = vpop.f32.mrb[0].mxu0
  %v548 = vadd.f32 %v106, %v547
  %v549 = vpop.f32.mrb[0].mxu0
  %550 = vmatprep.mubr.bf16.mxu0 %v261
  %551 = vmatmul.mubr.bf16.gmra.mrb[0].mxu0 %v260
  %v552 = vpop.f32.mrb[0].mxu0
  %v553 = vadd.f32 %v106, %v552
  %v554 = vpop.f32.mrb[0].mxu0
  %v555 = vpop.f32.mrb[0].mxu0
  %v556 = vadd.f32 %v106, %v555
  %v557 = vpop.f32.mrb[0].mxu0
  %558 = vmatprep.mubr.bf16.mxu0 %v264
  %559 = vmatmul.mubr.bf16.gmra.mrb[0].mxu0 %v263
  %v560 = vpop.f32.mrb[0].mxu0
  %v561 = vadd.f32 %v106, %v560
  %v562 = vpop.f32.mrb[0].mxu0
  %v563 = vpop.f32.mrb[0].mxu0
  %v564 = vadd.f32 %v106, %v563
  %v565 = vpop.f32.mrb[0].mxu0
  %566 = vmatprep.mubr.bf16.mxu0 %v267
  %567 = vmatmul.mubr.bf16.gmra.mrb[0].mxu0 %v266
  %v568 = vpop.f32.mrb[0].mxu0
  %v569 = vadd.f32 %v106, %v568
  %v570 = vpop.f32.mrb[0].mxu0
  %v571 = vpop.f32.mrb[0].mxu0
  %v572 = vadd.f32 %v106, %v571
  %v573 = vpop.f32.mrb[0].mxu0
  %574 = vmatprep.mubr.bf16.mxu0 %v270
  %575 = vmatmul.mubr.bf16.gmra.mrb[0].mxu0 %v269
  %v576 = vpop.f32.mrb[0].mxu0
  %v577 = vadd.f32 %v106, %v576
  %v578 = vpop.f32.mrb[0].mxu0
  %v579 = vpop.f32.mrb[0].mxu0
  %v580 = vpop.f32.mrb[0].mxu0
  %581 = vdwg.mxu0
  %582 = vmatprep.subr.bf16.mxu0 0
  %583 = vmatpush1.bf16.msra.mxu0 %v386
  %584 = vmatprep.subr.bf16.mxu0 0
  %585 = vmatpush1.bf16.msra.mxu0 %v387
  %586 = vmatprep.subr.bf16.mxu0 0
  %587 = vmatpush1.bf16.msra.mxu0 0
  %588 = vmatprep.subr.bf16.mxu0 0
  %589 = vmatpush1.bf16.msra.mxu0 0
  %590 = vmatprep.subr.bf16.mxu0 0
  %591 = vmatpush1.bf16.msra.mxu0 0
  %592 = vmatprep.subr.bf16.mxu0 0
  %593 = vmatpush1.bf16.msra.mxu0 0
  %594 = vmatprep.subr.bf16.mxu0 0
  %595 = vmatpush1.bf16.msra.mxu0 0
  %596 = vmatprep.subr.bf16.mxu0 0
  %597 = vmatpush1.bf16.msra.mxu0 0
  %598 = vmatprep.subr.bf16.mxu0 0
  %599 = vmatpush1.bf16.msra.mxu0 0
  %600 = vmatprep.subr.bf16.mxu0 0
  %601 = vmatpush1.bf16.msra.mxu0 0
  %602 = vmatprep.subr.bf16.mxu0 0
  %603 = vmatpush1.bf16.msra.mxu0 0
  %604 = vmatprep.subr.bf16.mxu0 0
  %605 = vmatpush1.bf16.msra.mxu0 0
  %606 = vmatprep.subr.bf16.mxu0 0
  %607 = vmatpush1.bf16.msra.mxu0 0
  %608 = vmatprep.subr.bf16.mxu0 0
  %609 = vmatpush1.bf16.msra.mxu0 0
  %610 = vmatprep.subr.bf16.mxu0 0
  %611 = vmatpush1.bf16.msra.mxu0 0
  %612 = vmatprep.subr.bf16.mxu0 0
  %613 = vmatpush1.bf16.msra.mxu0 0
  %614 = vmatprep.mubr.bf16.mxu0 0
  %615 = vmatmul.mubr.bf16.gmra.mrb[0].mxu0 %v408
  %v616 = vpop.f32.mrb[0].mxu0
  %v617 = vadd.f32 %v481, %v616
  %v618 = vpop.f32.mrb[0].mxu0
  %v619 = vpop.f32.mrb[0].mxu0
  %v620 = vadd.f32 %v484, %v619
  %v621 = vpop.f32.mrb[0].mxu0
  %622 = vmatprep.mubr.bf16.mxu0 0
  %623 = vmatmul.mubr.bf16.gmra.mrb[0].mxu0 %v411
  %v624 = vpop.f32.mrb[0].mxu0
  %v625 = vadd.f32 %v489, %v624
  %v626 = vpop.f32.mrb[0].mxu0
  %v627 = vpop.f32.mrb[0].mxu0
  %v628 = vadd.f32 %v492, %v627
  %v629 = vpop.f32.mrb[0].mxu0
  %630 = vmatprep.mubr.bf16.mxu0 0
  %631 = vmatmul.mubr.bf16.gmra.mrb[0].mxu0 %v414
  %v632 = vpop.f32.mrb[0].mxu0
  %v633 = vadd.f32 %v497, %v632
  %v634 = vpop.f32.mrb[0].mxu0
  %v635 = vpop.f32.mrb[0].mxu0
  %v636 = vadd.f32 %v500, %v635
  %v637 = vpop.f32.mrb[0].mxu0
  %638 = vmatprep.mubr.bf16.mxu0 0
  %639 = vmatmul.mubr.bf16.gmra.mrb[0].mxu0 %v417
  %v640 = vpop.f32.mrb[0].mxu0
  %v641 = vadd.f32 %v505, %v640
  %v642 = vpop.f32.mrb[0].mxu0
  %v643 = vpop.f32.mrb[0].mxu0
  %v644 = vadd.f32 %v508, %v643
  %v645 = vpop.f32.mrb[0].mxu0
  %646 = vmatprep.mubr.bf16.mxu0 0
  %647 = vmatmul.mubr.bf16.gmra.mrb[0].mxu0 %v420
  %v648 = vpop.f32.mrb[0].mxu0
  %v649 = vadd.f32 %v513, %v648
  %v650 = vpop.f32.mrb[0].mxu0
  %v651 = vpop.f32.mrb[0].mxu0
  %v652 = vadd.f32 %v516, %v651
  %v653 = vpop.f32.mrb[0].mxu0
  %654 = vmatprep.mubr.bf16.mxu0 0
  %655 = vmatmul.mubr.bf16.gmra.mrb[0].mxu0 %v423
  %v656 = vpop.f32.mrb[0].mxu0
  %v657 = vadd.f32 %v521, %v656
  %v658 = vpop.f32.mrb[0].mxu0
  %v659 = vpop.f32.mrb[0].mxu0
  %v660 = vadd.f32 %v524, %v659
  %v661 = vpop.f32.mrb[0].mxu0
  %662 = vmatprep.mubr.bf16.mxu0 0
  %663 = vmatmul.mubr.bf16.gmra.mrb[0].mxu0 %v426
  %v664 = vpop.f32.mrb[0].mxu0
  %v665 = vadd.f32 %v529, %v664
  %v666 = vpop.f32.mrb[0].mxu0
  %v667 = vpop.f32.mrb[0].mxu0
  %v668 = vadd.f32 %v532, %v667
  %v669 = vpop.f32.mrb[0].mxu0
  %670 = vmatprep.mubr.bf16.mxu0 0
  %671 = vmatmul.mubr.bf16.gmra.mrb[0].mxu0 %v429
  %v672 = vpop.f32.mrb[0].mxu0
  %v673 = vadd.f32 %v537, %v672
  %v674 = vpop.f32.mrb[0].mxu0
  %v675 = vpop.f32.mrb[0].mxu0
  %v676 = vadd.f32 %v540, %v675
  %v677 = vpop.f32.mrb[0].mxu0
  %678 = vmatprep.mubr.bf16.mxu0 0
  %679 = vmatmul.mubr.bf16.gmra.mrb[0].mxu0 %v432
  %v680 = vpop.f32.mrb[0].mxu0
  %v681 = vadd.f32 %v545, %v680
  %v682 = vpop.f32.mrb[0].mxu0
  %v683 = vpop.f32.mrb[0].mxu0
  %v684 = vadd.f32 %v548, %v683
  %v685 = vpop.f32.mrb[0].mxu0
  %686 = vmatprep.mubr.bf16.mxu0 0
  %687 = vmatmul.mubr.bf16.gmra.mrb[0].mxu0 %v435
  %v688 = vpop.f32.mrb[0].mxu0
  %v689 = vadd.f32 %v553, %v688
  %v690 = vpop.f32.mrb[0].mxu0
  %v691 = vpop.f32.mrb[0].mxu0
  %v692 = vadd.f32 %v556, %v691
  %v693 = vpop.f32.mrb[0].mxu0
  %694 = vmatprep.mubr.bf16.mxu0 0
  %695 = vmatmul.mubr.bf16.gmra.mrb[0].mxu0 %v438
  %v696 = vpop.f32.mrb[0].mxu0
  %v697 = vadd.f32 %v561, %v696
  %v698 = vpop.f32.mrb[0].mxu0
  %v699 = vpop.f32.mrb[0].mxu0
  %v700 = vadd.f32 %v564, %v699
  %v701 = vpop.f32.mrb[0].mxu0
  %702 = vmatprep.mubr.bf16.mxu0 0
  %703 = vmatmul.mubr.bf16.gmra.mrb[0].mxu0 %v441
  %v704 = vpop.f32.mrb[0].mxu0
  %v705 = vadd.f32 %v569, %v704
  %v706 = vpop.f32.mrb[0].mxu0
  %v707 = vpop.f32.mrb[0].mxu0
  %v708 = vadd.f32 %v572, %v707
  %v709 = vpop.f32.mrb[0].mxu0
  %710 = vmatprep.mubr.bf16.mxu0 0
  %711 = vmatmul.mubr.bf16.gmra.mrb[0].mxu0 %v444
  %v712 = vpop.f32.mrb[0].mxu0
  %v713 = vadd.f32 %v577, %v712
  %v714 = vpop.f32.mrb[0].mxu0
  %v715 = vpop.f32.mrb[0].mxu0
  %v716 = vpop.f32.mrb[0].mxu0
  %717 = vdwg.mxu0
  %v718 = vmax.f32 %v617, 0.0
  %v719 = vmax.f32 %v620, 0.0
  %v720 = vmax.f32 %v625, 0.0
  %v721 = vmax.f32 %v628, 0.0
  %v722 = vmax.f32 %v633, 0.0
  %v723 = vmax.f32 %v636, 0.0
  %v724 = vmax.f32 %v641, 0.0
  %v725 = vmax.f32 %v644, 0.0
  %v726 = vmax.f32 %v649, 0.0
  %v727 = vmax.f32 %v652, 0.0
  %v728 = vmax.f32 %v657, 0.0
  %v729 = vmax.f32 %v660, 0.0
  %v730 = vmax.f32 %v665, 0.0
  %v731 = vmax.f32 %v668, 0.0
  %v732 = vmax.f32 %v673, 0.0
  %v733 = vmax.f32 %v676, 0.0
  %v734 = vmax.f32 %v681, 0.0
  %v735 = vmax.f32 %v684, 0.0
  %v736 = vmax.f32 %v689, 0.0
  %v737 = vmax.f32 %v692, 0.0
  %v738 = vmax.f32 %v697, 0.0
  %v739 = vmax.f32 %v700, 0.0
  %v740 = vmax.f32 %v705, 0.0
  %v741 = vmax.f32 %v708, 0.0
  %v742 = vmax.f32 %v713, 0.0
  %v743 = vpack.c.bf16 %v719, %v718
  %v744 = vpack.c.bf16 %v721, %v720
  %v745 = vpack.c.bf16 %v723, %v722
  %v746 = vpack.c.bf16 %v725, %v724
  %v747 = vpack.c.bf16 %v727, %v726
  %v748 = vpack.c.bf16 %v729, %v728
  %v749 = vpack.c.bf16 %v731, %v730
  %v750 = vpack.c.bf16 %v733, %v732
  %v751 = vpack.c.bf16 %v735, %v734
  %v752 = vpack.c.bf16 %v737, %v736
  %v753 = vpack.c.bf16 %v739, %v738
  %v754 = vpack.c.bf16 %v741, %v740
  %v755 = vpack.c.bf16 %v742, %v742
  %v769 = vunpack.c.l.b16 %v743
  %v770 = vunpack.c.h.b16 %v743
  %v771 = vunpack.c.l.b16 %v744
  %v772 = vunpack.c.h.b16 %v744
  %v773 = vunpack.c.l.b16 %v745
  %v774 = vunpack.c.h.b16 %v745
  %v775 = vunpack.c.l.b16 %v746
  %v776 = vunpack.c.h.b16 %v746
  %v777 = vunpack.c.l.b16 %v747
  %v778 = vunpack.c.h.b16 %v747
  %v779 = vunpack.c.l.b16 %v748
  %v780 = vunpack.c.h.b16 %v748
  %v781 = vunpack.c.l.b16 %v749
  %v782 = vunpack.c.h.b16 %v749
  %v783 = vunpack.c.l.b16 %v750
  %v784 = vunpack.c.h.b16 %v750
  %v785 = vunpack.c.l.b16 %v751
  %v786 = vunpack.c.h.b16 %v751
  %v787 = vunpack.c.l.b16 %v752
  %v788 = vunpack.c.h.b16 %v752
  %v789 = vunpack.c.l.b16 %v753
  %v790 = vunpack.c.h.b16 %v753
  %v791 = vunpack.c.l.b16 %v754
  %v792 = vunpack.c.h.b16 %v754
  %v793 = vunpack.c.l.b16 %v755
  %v794 = vpack.c.b16 %v769, %v769
  %v795 = vpack.c.b16 %v770, %v770
  %v796 = vpack.c.b16 %v771, %v771
  %v797 = vpack.c.b16 %v772, %v772
  %v798 = vpack.c.b16 %v773, %v773
  %v799 = vpack.c.b16 %v774, %v774
  %v800 = vpack.c.b16 %v775, %v775
  %v801 = vpack.c.b16 %v776, %v776
  %v802 = vpack.c.b16 %v777, %v777
  %v803 = vpack.c.b16 %v778, %v778
  %v804 = vpack.c.b16 %v779, %v779
  %v805 = vpack.c.b16 %v780, %v780
  %v806 = vpack.c.b16 %v781, %v781
  %v807 = vpack.c.b16 %v782, %v782
  %v808 = vpack.c.b16 %v783, %v783
  %v809 = vpack.c.b16 %v784, %v784
  %v810 = vpack.c.b16 %v785, %v785
  %v811 = vpack.c.b16 %v786, %v786
  %v812 = vpack.c.b16 %v787, %v787
  %v813 = vpack.c.b16 %v788, %v788
  %v814 = vpack.c.b16 %v789, %v789
  %v815 = vpack.c.b16 %v790, %v790
  %v816 = vpack.c.b16 %v791, %v791
  %v817 = vpack.c.b16 %v792, %v792
  %v818 = vpack.c.b16 %v793, %v793
  %vm844 = vcmask 257024
  %845 = vst.msk [vmem:[%s3] sm:$0xf] %vm844, %v794
  %846 = vst.msk [vmem:[%s3 + $0x4] sm:$0xf] %vm844, %v795
  %847 = vst.msk [vmem:[%s3 + $0x8] sm:$0xf] %vm844, %v796
  %848 = vst.msk [vmem:[%s3 + $0xc] sm:$0xf] %vm844, %v797
  %849 = vst.msk [vmem:[%s3 + $0x10] sm:$0xf] %vm844, %v798
  %850 = vst.msk [vmem:[%s3 + $0x14] sm:$0xf] %vm844, %v799
  %851 = vst.msk [vmem:[%s3 + $0x18] sm:$0xf] %vm844, %v800
  %852 = vst.msk [vmem:[%s3 + $0x1c] sm:$0xf] %vm844, %v801
  %853 = vst.msk [vmem:[%s3 + $0x20] sm:$0xf] %vm844, %v802
  %854 = vst.msk [vmem:[%s3 + $0x24] sm:$0xf] %vm844, %v803
  %855 = vst.msk [vmem:[%s3 + $0x28] sm:$0xf] %vm844, %v804
  %856 = vst.msk [vmem:[%s3 + $0x2c] sm:$0xf] %vm844, %v805
  %857 = vst.msk [vmem:[%s3 + $0x30] sm:$0xf] %vm844, %v806
  %858 = vst.msk [vmem:[%s3 + $0x34] sm:$0xf] %vm844, %v807
  %859 = vst.msk [vmem:[%s3 + $0x38] sm:$0xf] %vm844, %v808
  %860 = vst.msk [vmem:[%s3 + $0x3c] sm:$0xf] %vm844, %v809
  %861 = vst.msk [vmem:[%s3 + $0x40] sm:$0xf] %vm844, %v810
  %862 = vst.msk [vmem:[%s3 + $0x44] sm:$0xf] %vm844, %v811
  %863 = vst.msk [vmem:[%s3 + $0x48] sm:$0xf] %vm844, %v812
  %864 = vst.msk [vmem:[%s3 + $0x4c] sm:$0xf] %vm844, %v813
  %865 = vst.msk [vmem:[%s3 + $0x50] sm:$0xf] %vm844, %v814
  %866 = vst.msk [vmem:[%s3 + $0x54] sm:$0xf] %vm844, %v815
  %867 = vst.msk [vmem:[%s3 + $0x58] sm:$0xf] %vm844, %v816
  %868 = vst.msk [vmem:[%s3 + $0x5c] sm:$0xf] %vm844, %v817
  %869 = vst.msk [vmem:[%s3 + $0x60] sm:$0xf] %vm844, %v818
  // Predicated region
  $region14: #{forward.5} parent=0 // pred_check
    _
  $region15: #{forward.5} parent=0 // pred_check_branch
    %871 = sbr.rel (0) target = $region17
  $region16: #{forward.5} parent=0 // pred_region
    _
  $region17: #{forward.5} parent=0 // pred_fallthru
    _
  // Predicated region
  $region18: #{forward.5} parent=0 // pred_check
    _
  $region19: #{forward.5} parent=0 // pred_check_branch
    %873 = sbr.rel (0) target = $region21
  $region20: #{forward.5} parent=0 // pred_region
    _
  $region21: #{forward.5} parent=0 // pred_fallthru
    _

// kernel: forward.6
$region0: #{forward.6}
  #allocation0 [shape = 'u32[]', space=smem, size = 0x4, offset = 0x4, fixed_abs, tag = 'smem constant byte address 0x4 - core index']
  #allocation1 [shape = 'u32[144,128]{1,0:T(1,128)}', space=vmem, size = 0x12000, scoped, tag = 'internal scratch']
  %s0 = inlined_call_operand.vmem [shape: bf16[200,288], index: 0, kind: input, shape index: {}]
  %s1 = inlined_call_operand.vmem [shape: bf16[288,64], index: 1, kind: input, shape index: {}]
  %s2 = inlined_call_operand.vmem [shape: f32[1,64], index: 2, kind: input, shape index: {}]
  %s3 = inlined_call_operand.vmem [shape: bf16[200,64], index: 3, kind: output, shape index: {}]
  %s4 = sld [smem:[#allocation0]]
  $region22: #{forward.6} parent=0
    _
  %s6 = ssub.s32 1, %s4
  %s7 = scalar_select 0, %s6, %s4
  // Predicated region
  $region2: #{forward.6} parent=0 // pred_check
    _
  $region3: #{forward.6} parent=0 // pred_check_branch
    %9 = sbr.rel (0) target = $region5
  $region4: #{forward.6} parent=0 // pred_region
    _
  $region5: #{forward.6} parent=0 // pred_fallthru
    _
  // Predicated region
  $region6: #{forward.6} parent=0 // pred_check
    _
  $region7: #{forward.6} parent=0 // pred_check_branch
    %11 = sbr.rel (0) target = $region9
  $region8: #{forward.6} parent=0 // pred_region
    _
  $region9: #{forward.6} parent=0 // pred_fallthru
    _
  // Predicated region
  $region10: #{forward.6} parent=0 // pred_check
    _
  $region11: #{forward.6} parent=0 // pred_check_branch
    %13 = sbr.rel (0) target = $region13
  $region12: #{forward.6} parent=0 // pred_region
    _
  $region13: #{forward.6} parent=0 // pred_fallthru
    _
  %v15 = vld [vmem:[%s0] sm:$0xff]
  %v16 = vld [vmem:[%s0 + $0x8] sm:$0xf]
  %v17 = vld [vmem:[%s0 + $0xc] sm:$0xff]
  %v18 = vld [vmem:[%s0 + $0x14] sm:$0xf]
  %v19 = vld [vmem:[%s0 + $0x18] sm:$0xff]
  %v20 = vld [vmem:[%s0 + $0x20] sm:$0xf]
  %v21 = vld [vmem:[%s0 + $0x24] sm:$0xff]
  %v22 = vld [vmem:[%s0 + $0x2c] sm:$0xf]
  %v23 = vld [vmem:[%s0 + $0x30] sm:$0xff]
  %v24 = vld [vmem:[%s0 + $0x38] sm:$0xf]
  %v25 = vld [vmem:[%s0 + $0x3c] sm:$0xff]
  %v26 = vld [vmem:[%s0 + $0x44] sm:$0xf]
  %v27 = vld [vmem:[%s0 + $0x48] sm:$0xff]
  %v28 = vld [vmem:[%s0 + $0x50] sm:$0xf]
  %v29 = vld [vmem:[%s0 + $0x54] sm:$0xff]
  %v30 = vld [vmem:[%s0 + $0x5c] sm:$0xf]
  %v31 = vld [vmem:[%s0 + $0x60] sm:$0xff]
  %v32 = vld [vmem:[%s0 + $0x68] sm:$0xf]
  %v33 = vld [vmem:[%s0 + $0x6c] sm:$0xff]
  %v34 = vld [vmem:[%s0 + $0x74] sm:$0xf]
  %v35 = vld [vmem:[%s0 + $0x78] sm:$0xff]
  %v36 = vld [vmem:[%s0 + $0x80] sm:$0xf]
  %v37 = vld [vmem:[%s0 + $0x84] sm:$0xff]
  %v38 = vld [vmem:[%s0 + $0x8c] sm:$0xf]
  %v39 = vld [vmem:[%s0 + $0x90] sm:$0xff]
  %v40 = vld [vmem:[%s0 + $0x98] sm:$0xf]
  %v41 = vld [vmem:[%s0 + $0x9c] sm:$0xff]
  %v42 = vld [vmem:[%s0 + $0xa4] sm:$0xf]
  %v43 = vld [vmem:[%s0 + $0xa8] sm:$0xff]
  %v44 = vld [vmem:[%s0 + $0xb0] sm:$0xf]
  %v45 = vld [vmem:[%s0 + $0xb4] sm:$0xff]
  %v46 = vld [vmem:[%s0 + $0xbc] sm:$0xf]
  %v47 = vld [vmem:[%s0 + $0xc0] sm:$0xff]
  %v48 = vld [vmem:[%s0 + $0xc8] sm:$0xf]
  %v49 = vld [vmem:[%s0 + $0xcc] sm:$0xff]
  %v50 = vld [vmem:[%s0 + $0xd4] sm:$0xf]
  %v51 = vld [vmem:[%s0 + $0xd8] sm:$0xff]
  %v52 = vld [vmem:[%s0 + $0xe0] sm:$0xf]
  %v53 = vld [vmem:[%s0 + $0xe4] sm:$0xff]
  %v54 = vld [vmem:[%s0 + $0xec] sm:$0xf]
  %v55 = vld [vmem:[%s0 + $0xf0] sm:$0xff]
  %v56 = vld [vmem:[%s0 + $0xf8] sm:$0xf]
  %v57 = vld [vmem:[%s0 + $0xfc] sm:$0xff]
  %v58 = vld [vmem:[%s0 + $0x104] sm:$0xf]
  %v59 = vld [vmem:[%s0 + $0x108] sm:$0xff]
  %v60 = vld [vmem:[%s0 + $0x110] sm:$0xf]
  %v61 = vld [vmem:[%s0 + $0x114] sm:$0xff]
  %v62 = vld [vmem:[%s0 + $0x11c] sm:$0xf]
  %v63 = vld [vmem:[%s0 + $0x120] sm:$0xff]
  %v64 = vld [vmem:[%s0 + $0x128] sm:$0xf]
  %v65 = vld [vmem:[%s1] sm:$0xf]
  %v66 = vld [vmem:[%s1 + $0x4] sm:$0xf]
  %v67 = vld [vmem:[%s1 + $0x8] sm:$0xf]
  %v68 = vld [vmem:[%s1 + $0xc] sm:$0xf]
  %v69 = vld [vmem:[%s1 + $0x10] sm:$0xf]
  %v70 = vld [vmem:[%s1 + $0x14] sm:$0xf]
  %v71 = vld [vmem:[%s1 + $0x18] sm:$0xf]
  %v72 = vld [vmem:[%s1 + $0x1c] sm:$0xf]
  %v73 = vld [vmem:[%s1 + $0x20] sm:$0xf]
  %v74 = vld [vmem:[%s1 + $0x24] sm:$0xf]
  %v75 = vld [vmem:[%s1 + $0x28] sm:$0xf]
  %v76 = vld [vmem:[%s1 + $0x2c] sm:$0xf]
  %v77 = vld [vmem:[%s1 + $0x30] sm:$0xf]
  %v78 = vld [vmem:[%s1 + $0x34] sm:$0xf]
  %v79 = vld [vmem:[%s1 + $0x38] sm:$0xf]
  %v80 = vld [vmem:[%s1 + $0x3c] sm:$0xf]
  %v81 = vld [vmem:[%s1 + $0x40] sm:$0xf]
  %v82 = vld [vmem:[%s1 + $0x44] sm:$0xf]
  %v83 = vld [vmem:[%s1 + $0x48] sm:$0xf]
  %v84 = vld [vmem:[%s1 + $0x4c] sm:$0xf]
  %v85 = vld [vmem:[%s1 + $0x50] sm:$0xf]
  %v86 = vld [vmem:[%s1 + $0x54] sm:$0xf]
  %v87 = vld [vmem:[%s1 + $0x58] sm:$0xf]
  %v88 = vld [vmem:[%s1 + $0x5c] sm:$0xf]
  %v89 = vld [vmem:[%s1 + $0x60] sm:$0xf]
  %v90 = vld [vmem:[%s1 + $0x64] sm:$0xf]
  %v91 = vld [vmem:[%s1 + $0x68] sm:$0xf]
  %v92 = vld [vmem:[%s1 + $0x6c] sm:$0xf]
  %v93 = vld [vmem:[%s1 + $0x70] sm:$0xf]
  %v94 = vld [vmem:[%s1 + $0x74] sm:$0xf]
  %v95 = vld [vmem:[%s1 + $0x78] sm:$0xf]
  %v96 = vld [vmem:[%s1 + $0x7c] sm:$0xf]
  %v97 = vld [vmem:[%s1 + $0x80] sm:$0xf]
  %v98 = vld [vmem:[%s1 + $0x84] sm:$0xf]
  %v99 = vld [vmem:[%s1 + $0x88] sm:$0xf]
  %v100 = vld [vmem:[%s1 + $0x8c] sm:$0xf]
  %v101 = vld [vmem:[%s2] sm:$0x1]
  %v103 = vlaneseq
  %v104 = vshrl.u32 %v103, 7
  %v105 = vsub.s32 0, %v104
  %v106 = vrot.slane %v101, %v105
  %v158 = vunpack.c.l.b16 %v15
  %v159 = vunpack.c.h.b16 %v15
  %v160 = vunpack.c.l.b16 %v16
  %v161 = vunpack.c.l.b16 %v17
  %v162 = vunpack.c.h.b16 %v17
  %v163 = vunpack.c.l.b16 %v18
  %v164 = vunpack.c.l.b16 %v19
  %v165 = vunpack.c.h.b16 %v19
  %v166 = vunpack.c.l.b16 %v20
  %v167 = vunpack.c.l.b16 %v21
  %v168 = vunpack.c.h.b16 %v21
  %v169 = vunpack.c.l.b16 %v22
  %v170 = vunpack.c.l.b16 %v23
  %v171 = vunpack.c.h.b16 %v23
  %v172 = vunpack.c.l.b16 %v24
  %v173 = vunpack.c.l.b16 %v25
  %v174 = vunpack.c.h.b16 %v25
  %v175 = vunpack.c.l.b16 %v26
  %v176 = vunpack.c.l.b16 %v27
  %v177 = vunpack.c.h.b16 %v27
  %v178 = vunpack.c.l.b16 %v28
  %v179 = vunpack.c.l.b16 %v29
  %v180 = vunpack.c.h.b16 %v29
  %v181 = vunpack.c.l.b16 %v30
  %v182 = vunpack.c.l.b16 %v31
  %v183 = vunpack.c.h.b16 %v31
  %v184 = vunpack.c.l.b16 %v32
  %v185 = vunpack.c.l.b16 %v33
  %v186 = vunpack.c.h.b16 %v33
  %v187 = vunpack.c.l.b16 %v34
  %v188 = vunpack.c.l.b16 %v35
  %v189 = vunpack.c.h.b16 %v35
  %v190 = vunpack.c.l.b16 %v36
  %v191 = vunpack.c.l.b16 %v37
  %v192 = vunpack.c.h.b16 %v37
  %v193 = vunpack.c.l.b16 %v38
  %v194 = vunpack.c.l.b16 %v39
  %v195 = vunpack.c.h.b16 %v39
  %v196 = vunpack.c.l.b16 %v40
  %v197 = vunpack.c.l.b16 %v41
  %v198 = vunpack.c.h.b16 %v41
  %v199 = vunpack.c.l.b16 %v42
  %v200 = vunpack.c.l.b16 %v43
  %v201 = vunpack.c.h.b16 %v43
  %v202 = vunpack.c.l.b16 %v44
  %v203 = vunpack.c.l.b16 %v45
  %v204 = vunpack.c.h.b16 %v45
  %v205 = vunpack.c.l.b16 %v46
  %v206 = vunpack.c.l.b16 %v47
  %v207 = vunpack.c.h.b16 %v47
  %v208 = vunpack.c.l.b16 %v48
  %v209 = vunpack.c.l.b16 %v49
  %v210 = vunpack.c.h.b16 %v49
  %v211 = vunpack.c.l.b16 %v50
  %v212 = vunpack.c.l.b16 %v51
  %v213 = vunpack.c.h.b16 %v51
  %v214 = vunpack.c.l.b16 %v52
  %v215 = vunpack.c.l.b16 %v53
  %v216 = vunpack.c.h.b16 %v53
  %v217 = vunpack.c.l.b16 %v54
  %v218 = vunpack.c.l.b16 %v55
  %v219 = vunpack.c.h.b16 %v55
  %v220 = vunpack.c.l.b16 %v56
  %v221 = vunpack.c.l.b16 %v57
  %v222 = vunpack.c.h.b16 %v57
  %v223 = vunpack.c.l.b16 %v58
  %v224 = vunpack.c.l.b16 %v59
  %v225 = vunpack.c.h.b16 %v59
  %v226 = vunpack.c.l.b16 %v60
  %v227 = vunpack.c.l.b16 %v61
  %v228 = vunpack.c.h.b16 %v61
  %v229 = vunpack.c.l.b16 %v62
  %v230 = vunpack.c.l.b16 %v63
  %v231 = vunpack.c.h.b16 %v63
  %v232 = vunpack.c.l.b16 %v64
  %v233 = vpack.c.b16 %v161, %v158
  %v234 = vpack.c.b16 %v162, %v159
  %v235 = vpack.c.b16 %v163, %v160
  %v236 = vpack.c.b16 %v167, %v164
  %v237 = vpack.c.b16 %v168, %v165
  %v238 = vpack.c.b16 %v169, %v166
  %v239 = vpack.c.b16 %v173, %v170
  %v240 = vpack.c.b16 %v174, %v171
  %v241 = vpack.c.b16 %v175, %v172
  %v242 = vpack.c.b16 %v179, %v176
  %v243 = vpack.c.b16 %v180, %v177
  %v244 = vpack.c.b16 %v181, %v178
  %v245 = vpack.c.b16 %v185, %v182
  %v246 = vpack.c.b16 %v186, %v183
  %v247 = vpack.c.b16 %v187, %v184
  %v248 = vpack.c.b16 %v191, %v188
  %v249 = vpack.c.b16 %v192, %v189
  %v250 = vpack.c.b16 %v193, %v190
  %v251 = vpack.c.b16 %v197, %v194
  %v252 = vpack.c.b16 %v198, %v195
  %v253 = vpack.c.b16 %v199, %v196
  %v254 = vpack.c.b16 %v203, %v200
  %v255 = vpack.c.b16 %v204, %v201
  %v256 = vpack.c.b16 %v205, %v202
  %v257 = vpack.c.b16 %v209, %v206
  %v258 = vpack.c.b16 %v210, %v207
  %v259 = vpack.c.b16 %v211, %v208
  %v260 = vpack.c.b16 %v215, %v212
  %v261 = vpack.c.b16 %v216, %v213
  %v262 = vpack.c.b16 %v217, %v214
  %v263 = vpack.c.b16 %v221, %v218
  %v264 = vpack.c.b16 %v222, %v219
  %v265 = vpack.c.b16 %v223, %v220
  %v266 = vpack.c.b16 %v227, %v224
  %v267 = vpack.c.b16 %v228, %v225
  %v268 = vpack.c.b16 %v229, %v226
  %v269 = vpack.c.b16 %v230, %v230
  %v270 = vpack.c.b16 %v231, %v231
  %v271 = vpack.c.b16 %v232, %v232
  %v334 = vunpack.c.l.b16 %v65
  %v335 = vunpack.c.l.b16 %v66
  %v336 = vunpack.c.l.b16 %v67
  %v337 = vunpack.c.l.b16 %v68
  %v338 = vunpack.c.l.b16 %v69
  %v339 = vunpack.c.l.b16 %v70
  %v340 = vunpack.c.l.b16 %v71
  %v341 = vunpack.c.l.b16 %v72
  %v342 = vunpack.c.l.b16 %v73
  %v343 = vunpack.c.l.b16 %v74
  %v344 = vunpack.c.l.b16 %v75
  %v345 = vunpack.c.l.b16 %v76
  %v346 = vunpack.c.l.b16 %v77
  %v347 = vunpack.c.l.b16 %v78
  %v348 = vunpack.c.l.b16 %v79
  %v349 = vunpack.c.l.b16 %v80
  %v350 = vunpack.c.l.b16 %v81
  %v351 = vunpack.c.l.b16 %v82
  %v352 = vunpack.c.l.b16 %v83
  %v353 = vunpack.c.l.b16 %v84
  %v354 = vunpack.c.l.b16 %v85
  %v355 = vunpack.c.l.b16 %v86
  %v356 = vunpack.c.l.b16 %v87
  %v357 = vunpack.c.l.b16 %v88
  %v358 = vunpack.c.l.b16 %v89
  %v359 = vunpack.c.l.b16 %v90
  %v360 = vunpack.c.l.b16 %v91
  %v361 = vunpack.c.l.b16 %v92
  %v362 = vunpack.c.l.b16 %v93
  %v363 = vunpack.c.l.b16 %v94
  %v364 = vunpack.c.l.b16 %v95
  %v365 = vunpack.c.l.b16 %v96
  %v366 = vunpack.c.l.b16 %v97
  %v367 = vunpack.c.l.b16 %v98
  %v368 = vunpack.c.l.b16 %v99
  %v369 = vunpack.c.l.b16 %v100
  %v370 = vpack.c.b16 %v335, %v334
  %v371 = vpack.c.b16 %v337, %v336
  %v372 = vpack.c.b16 %v339, %v338
  %v373 = vpack.c.b16 %v341, %v340
  %v374 = vpack.c.b16 %v343, %v342
  %v375 = vpack.c.b16 %v345, %v344
  %v376 = vpack.c.b16 %v347, %v346
  %v377 = vpack.c.b16 %v349, %v348
  %v378 = vpack.c.b16 %v351, %v350
  %v379 = vpack.c.b16 %v353, %v352
  %v380 = vpack.c.b16 %v355, %v354
  %v381 = vpack.c.b16 %v357, %v356
  %v382 = vpack.c.b16 %v359, %v358
  %v383 = vpack.c.b16 %v361, %v360
  %v384 = vpack.c.b16 %v363, %v362
  %v385 = vpack.c.b16 %v365, %v364
  %v386 = vpack.c.b16 %v367, %v366
  %v387 = vpack.c.b16 %v369, %v368
  %vm406 = vcmask 261120
  %v408 = vsel %vm406, %v235, 0
  %v411 = vsel %vm406, %v238, 0
  %v414 = vsel %vm406, %v241, 0
  %v417 = vsel %vm406, %v244, 0
  %v420 = vsel %vm406, %v247, 0
  %v423 = vsel %vm406, %v250, 0
  %v426 = vsel %vm406, %v253, 0
  %v429 = vsel %vm406, %v256, 0
  %v432 = vsel %vm406, %v259, 0
  %v435 = vsel %vm406, %v262, 0
  %v438 = vsel %vm406, %v265, 0
  %v441 = vsel %vm406, %v268, 0
  %v444 = vsel %vm406, %v271, 0
  %446 = vmatprep.subr.bf16.mxu0 0
  %447 = vmatpush1.bf16.msra.mxu0 %v370
  %448 = vmatprep.subr.bf16.mxu0 0
  %449 = vmatpush1.bf16.msra.mxu0 %v371
  %450 = vmatprep.subr.bf16.mxu0 0
  %451 = vmatpush1.bf16.msra.mxu0 %v372
  %452 = vmatprep.subr.bf16.mxu0 0
  %453 = vmatpush1.bf16.msra.mxu0 %v373
  %454 = vmatprep.subr.bf16.mxu0 0
  %455 = vmatpush1.bf16.msra.mxu0 %v374
  %456 = vmatprep.subr.bf16.mxu0 0
  %457 = vmatpush1.bf16.msra.mxu0 %v375
  %458 = vmatprep.subr.bf16.mxu0 0
  %459 = vmatpush1.bf16.msra.mxu0 %v376
  %460 = vmatprep.subr.bf16.mxu0 0
  %461 = vmatpush1.bf16.msra.mxu0 %v377
  %462 = vmatprep.subr.bf16.mxu0 0
  %463 = vmatpush1.bf16.msra.mxu0 %v378
  %464 = vmatprep.subr.bf16.mxu0 0
  %465 = vmatpush1.bf16.msra.mxu0 %v379
  %466 = vmatprep.subr.bf16.mxu0 0
  %467 = vmatpush1.bf16.msra.mxu0 %v380
  %468 = vmatprep.subr.bf16.mxu0 0
  %469 = vmatpush1.bf16.msra.mxu0 %v381
  %470 = vmatprep.subr.bf16.mxu0 0
  %471 = vmatpush1.bf16.msra.mxu0 %v382
  %472 = vmatprep.subr.bf16.mxu0 0
  %473 = vmatpush1.bf16.msra.mxu0 %v383
  %474 = vmatprep.subr.bf16.mxu0 0
  %475 = vmatpush1.bf16.msra.mxu0 %v384
  %476 = vmatprep.subr.bf16.mxu0 0
  %477 = vmatpush1.bf16.msra.mxu0 %v385
  %478 = vmatprep.mubr.bf16.mxu0 %v234
  %479 = vmatmul.mubr.bf16.gmra.mrb[0].mxu0 %v233
  %v480 = vpop.f32.mrb[0].mxu0
  %v481 = vadd.f32 %v106, %v480
  %v482 = vpop.f32.mrb[0].mxu0
  %v483 = vpop.f32.mrb[0].mxu0
  %v484 = vadd.f32 %v106, %v483
  %v485 = vpop.f32.mrb[0].mxu0
  %486 = vmatprep.mubr.bf16.mxu0 %v237
  %487 = vmatmul.mubr.bf16.gmra.mrb[0].mxu0 %v236
  %v488 = vpop.f32.mrb[0].mxu0
  %v489 = vadd.f32 %v106, %v488
  %v490 = vpop.f32.mrb[0].mxu0
  %v491 = vpop.f32.mrb[0].mxu0
  %v492 = vadd.f32 %v106, %v491
  %v493 = vpop.f32.mrb[0].mxu0
  %494 = vmatprep.mubr.bf16.mxu0 %v240
  %495 = vmatmul.mubr.bf16.gmra.mrb[0].mxu0 %v239
  %v496 = vpop.f32.mrb[0].mxu0
  %v497 = vadd.f32 %v106, %v496
  %v498 = vpop.f32.mrb[0].mxu0
  %v499 = vpop.f32.mrb[0].mxu0
  %v500 = vadd.f32 %v106, %v499
  %v501 = vpop.f32.mrb[0].mxu0
  %502 = vmatprep.mubr.bf16.mxu0 %v243
  %503 = vmatmul.mubr.bf16.gmra.mrb[0].mxu0 %v242
  %v504 = vpop.f32.mrb[0].mxu0
  %v505 = vadd.f32 %v106, %v504
  %v506 = vpop.f32.mrb[0].mxu0
  %v507 = vpop.f32.mrb[0].mxu0
  %v508 = vadd.f32 %v106, %v507
  %v509 = vpop.f32.mrb[0].mxu0
  %510 = vmatprep.mubr.bf16.mxu0 %v246
  %511 = vmatmul.mubr.bf16.gmra.mrb[0].mxu0 %v245
  %v512 = vpop.f32.mrb[0].mxu0
  %v513 = vadd.f32 %v106, %v512
  %v514 = vpop.f32.mrb[0].mxu0
  %v515 = vpop.f32.mrb[0].mxu0
  %v516 = vadd.f32 %v106, %v515
  %v517 = vpop.f32.mrb[0].mxu0
  %518 = vmatprep.mubr.bf16.mxu0 %v249
  %519 = vmatmul.mubr.bf16.gmra.mrb[0].mxu0 %v248
  %v520 = vpop.f32.mrb[0].mxu0
  %v521 = vadd.f32 %v106, %v520
  %v522 = vpop.f32.mrb[0].mxu0
  %v523 = vpop.f32.mrb[0].mxu0
  %v524 = vadd.f32 %v106, %v523
  %v525 = vpop.f32.mrb[0].mxu0
  %526 = vmatprep.mubr.bf16.mxu0 %v252
  %527 = vmatmul.mubr.bf16.gmra.mrb[0].mxu0 %v251
  %v528 = vpop.f32.mrb[0].mxu0
  %v529 = vadd.f32 %v106, %v528
  %v530 = vpop.f32.mrb[0].mxu0
  %v531 = vpop.f32.mrb[0].mxu0
  %v532 = vadd.f32 %v106, %v531
  %v533 = vpop.f32.mrb[0].mxu0
  %534 = vmatprep.mubr.bf16.mxu0 %v255
  %535 = vmatmul.mubr.bf16.gmra.mrb[0].mxu0 %v254
  %v536 = vpop.f32.mrb[0].mxu0
  %v537 = vadd.f32 %v106, %v536
  %v538 = vpop.f32.mrb[0].mxu0
  %v539 = vpop.f32.mrb[0].mxu0
  %v540 = vadd.f32 %v106, %v539
  %v541 = vpop.f32.mrb[0].mxu0
  %542 = vmatprep.mubr.bf16.mxu0 %v258
  %543 = vmatmul.mubr.bf16.gmra.mrb[0].mxu0 %v257
  %v544 = vpop.f32.mrb[0].mxu0
  %v545 = vadd.f32 %v106, %v544
  %v546 = vpop.f32.mrb[0].mxu0
  %v547 = vpop.f32.mrb[0].mxu0
  %v548 = vadd.f32 %v106, %v547
  %v549 = vpop.f32.mrb[0].mxu0
  %550 = vmatprep.mubr.bf16.mxu0 %v261
  %551 = vmatmul.mubr.bf16.gmra.mrb[0].mxu0 %v260
  %v552 = vpop.f32.mrb[0].mxu0
  %v553 = vadd.f32 %v106, %v552
  %v554 = vpop.f32.mrb[0].mxu0
  %v555 = vpop.f32.mrb[0].mxu0
  %v556 = vadd.f32 %v106, %v555
  %v557 = vpop.f32.mrb[0].mxu0
  %558 = vmatprep.mubr.bf16.mxu0 %v264
  %559 = vmatmul.mubr.bf16.gmra.mrb[0].mxu0 %v263
  %v560 = vpop.f32.mrb[0].mxu0
  %v561 = vadd.f32 %v106, %v560
  %v562 = vpop.f32.mrb[0].mxu0
  %v563 = vpop.f32.mrb[0].mxu0
  %v564 = vadd.f32 %v106, %v563
  %v565 = vpop.f32.mrb[0].mxu0
  %566 = vmatprep.mubr.bf16.mxu0 %v267
  %567 = vmatmul.mubr.bf16.gmra.mrb[0].mxu0 %v266
  %v568 = vpop.f32.mrb[0].mxu0
  %v569 = vadd.f32 %v106, %v568
  %v570 = vpop.f32.mrb[0].mxu0
  %v571 = vpop.f32.mrb[0].mxu0
  %v572 = vadd.f32 %v106, %v571
  %v573 = vpop.f32.mrb[0].mxu0
  %574 = vmatprep.mubr.bf16.mxu0 %v270
  %575 = vmatmul.mubr.bf16.gmra.mrb[0].mxu0 %v269
  %v576 = vpop.f32.mrb[0].mxu0
  %v577 = vadd.f32 %v106, %v576
  %v578 = vpop.f32.mrb[0].mxu0
  %v579 = vpop.f32.mrb[0].mxu0
  %v580 = vpop.f32.mrb[0].mxu0
  %581 = vdwg.mxu0
  %582 = vmatprep.subr.bf16.mxu0 0
  %583 = vmatpush1.bf16.msra.mxu0 %v386
  %584 = vmatprep.subr.bf16.mxu0 0
  %585 = vmatpush1.bf16.msra.mxu0 %v387
  %586 = vmatprep.subr.bf16.mxu0 0
  %587 = vmatpush1.bf16.msra.mxu0 0
  %588 = vmatprep.subr.bf16.mxu0 0
  %589 = vmatpush1.bf16.msra.mxu0 0
  %590 = vmatprep.subr.bf16.mxu0 0
  %591 = vmatpush1.bf16.msra.mxu0 0
  %592 = vmatprep.subr.bf16.mxu0 0
  %593 = vmatpush1.bf16.msra.mxu0 0
  %594 = vmatprep.subr.bf16.mxu0 0
  %595 = vmatpush1.bf16.msra.mxu0 0
  %596 = vmatprep.subr.bf16.mxu0 0
  %597 = vmatpush1.bf16.msra.mxu0 0
  %598 = vmatprep.subr.bf16.mxu0 0
  %599 = vmatpush1.bf16.msra.mxu0 0
  %600 = vmatprep.subr.bf16.mxu0 0
  %601 = vmatpush1.bf16.msra.mxu0 0
  %602 = vmatprep.subr.bf16.mxu0 0
  %603 = vmatpush1.bf16.msra.mxu0 0
  %604 = vmatprep.subr.bf16.mxu0 0
  %605 = vmatpush1.bf16.msra.mxu0 0
  %606 = vmatprep.subr.bf16.mxu0 0
  %607 = vmatpush1.bf16.msra.mxu0 0
  %608 = vmatprep.subr.bf16.mxu0 0
  %609 = vmatpush1.bf16.msra.mxu0 0
  %610 = vmatprep.subr.bf16.mxu0 0
  %611 = vmatpush1.bf16.msra.mxu0 0
  %612 = vmatprep.subr.bf16.mxu0 0
  %613 = vmatpush1.bf16.msra.mxu0 0
  %614 = vmatprep.mubr.bf16.mxu0 0
  %615 = vmatmul.mubr.bf16.gmra.mrb[0].mxu0 %v408
  %v616 = vpop.f32.mrb[0].mxu0
  %v617 = vadd.f32 %v481, %v616
  %v618 = vpop.f32.mrb[0].mxu0
  %v619 = vpop.f32.mrb[0].mxu0
  %v620 = vadd.f32 %v484, %v619
  %v621 = vpop.f32.mrb[0].mxu0
  %622 = vmatprep.mubr.bf16.mxu0 0
  %623 = vmatmul.mubr.bf16.gmra.mrb[0].mxu0 %v411
  %v624 = vpop.f32.mrb[0].mxu0
  %v625 = vadd.f32 %v489, %v624
  %v626 = vpop.f32.mrb[0].mxu0
  %v627 = vpop.f32.mrb[0].mxu0
  %v628 = vadd.f32 %v492, %v627
  %v629 = vpop.f32.mrb[0].mxu0
  %630 = vmatprep.mubr.bf16.mxu0 0
  %631 = vmatmul.mubr.bf16.gmra.mrb[0].mxu0 %v414
  %v632 = vpop.f32.mrb[0].mxu0
  %v633 = vadd.f32 %v497, %v632
  %v634 = vpop.f32.mrb[0].mxu0
  %v635 = vpop.f32.mrb[0].mxu0
  %v636 = vadd.f32 %v500, %v635
  %v637 = vpop.f32.mrb[0].mxu0
  %638 = vmatprep.mubr.bf16.mxu0 0
  %639 = vmatmul.mubr.bf16.gmra.mrb[0].mxu0 %v417
  %v640 = vpop.f32.mrb[0].mxu0
  %v641 = vadd.f32 %v505, %v640
  %v642 = vpop.f32.mrb[0].mxu0
  %v643 = vpop.f32.mrb[0].mxu0
  %v644 = vadd.f32 %v508, %v643
  %v645 = vpop.f32.mrb[0].mxu0
  %646 = vmatprep.mubr.bf16.mxu0 0
  %647 = vmatmul.mubr.bf16.gmra.mrb[0].mxu0 %v420
  %v648 = vpop.f32.mrb[0].mxu0
  %v649 = vadd.f32 %v513, %v648
  %v650 = vpop.f32.mrb[0].mxu0
  %v651 = vpop.f32.mrb[0].mxu0
  %v652 = vadd.f32 %v516, %v651
  %v653 = vpop.f32.mrb[0].mxu0
  %654 = vmatprep.mubr.bf16.mxu0 0
  %655 = vmatmul.mubr.bf16.gmra.mrb[0].mxu0 %v423
  %v656 = vpop.f32.mrb[0].mxu0
  %v657 = vadd.f32 %v521, %v656
  %v658 = vpop.f32.mrb[0].mxu0
  %v659 = vpop.f32.mrb[0].mxu0
  %v660 = vadd.f32 %v524, %v659
  %v661 = vpop.f32.mrb[0].mxu0
  %662 = vmatprep.mubr.bf16.mxu0 0
  %663 = vmatmul.mubr.bf16.gmra.mrb[0].mxu0 %v426
  %v664 = vpop.f32.mrb[0].mxu0
  %v665 = vadd.f32 %v529, %v664
  %v666 = vpop.f32.mrb[0].mxu0
  %v667 = vpop.f32.mrb[0].mxu0
  %v668 = vadd.f32 %v532, %v667
  %v669 = vpop.f32.mrb[0].mxu0
  %670 = vmatprep.mubr.bf16.mxu0 0
  %671 = vmatmul.mubr.bf16.gmra.mrb[0].mxu0 %v429
  %v672 = vpop.f32.mrb[0].mxu0
  %v673 = vadd.f32 %v537, %v672
  %v674 = vpop.f32.mrb[0].mxu0
  %v675 = vpop.f32.mrb[0].mxu0
  %v676 = vadd.f32 %v540, %v675
  %v677 = vpop.f32.mrb[0].mxu0
  %678 = vmatprep.mubr.bf16.mxu0 0
  %679 = vmatmul.mubr.bf16.gmra.mrb[0].mxu0 %v432
  %v680 = vpop.f32.mrb[0].mxu0
  %v681 = vadd.f32 %v545, %v680
  %v682 = vpop.f32.mrb[0].mxu0
  %v683 = vpop.f32.mrb[0].mxu0
  %v684 = vadd.f32 %v548, %v683
  %v685 = vpop.f32.mrb[0].mxu0
  %686 = vmatprep.mubr.bf16.mxu0 0
  %687 = vmatmul.mubr.bf16.gmra.mrb[0].mxu0 %v435
  %v688 = vpop.f32.mrb[0].mxu0
  %v689 = vadd.f32 %v553, %v688
  %v690 = vpop.f32.mrb[0].mxu0
  %v691 = vpop.f32.mrb[0].mxu0
  %v692 = vadd.f32 %v556, %v691
  %v693 = vpop.f32.mrb[0].mxu0
  %694 = vmatprep.mubr.bf16.mxu0 0
  %695 = vmatmul.mubr.bf16.gmra.mrb[0].mxu0 %v438
  %v696 = vpop.f32.mrb[0].mxu0
  %v697 = vadd.f32 %v561, %v696
  %v698 = vpop.f32.mrb[0].mxu0
  %v699 = vpop.f32.mrb[0].mxu0
  %v700 = vadd.f32 %v564, %v699
  %v701 = vpop.f32.mrb[0].mxu0
  %702 = vmatprep.mubr.bf16.mxu0 0
  %703 = vmatmul.mubr.bf16.gmra.mrb[0].mxu0 %v441
  %v704 = vpop.f32.mrb[0].mxu0
  %v705 = vadd.f32 %v569, %v704
  %v706 = vpop.f32.mrb[0].mxu0
  %v707 = vpop.f32.mrb[0].mxu0
  %v708 = vadd.f32 %v572, %v707
  %v709 = vpop.f32.mrb[0].mxu0
  %710 = vmatprep.mubr.bf16.mxu0 0
  %711 = vmatmul.mubr.bf16.gmra.mrb[0].mxu0 %v444
  %v712 = vpop.f32.mrb[0].mxu0
  %v713 = vadd.f32 %v577, %v712
  %v714 = vpop.f32.mrb[0].mxu0
  %v715 = vpop.f32.mrb[0].mxu0
  %v716 = vpop.f32.mrb[0].mxu0
  %717 = vdwg.mxu0
  %v718 = vmax.f32 %v617, 0.0
  %v719 = vmax.f32 %v620, 0.0
  %v720 = vmax.f32 %v625, 0.0
  %v721 = vmax.f32 %v628, 0.0
  %v722 = vmax.f32 %v633, 0.0
  %v723 = vmax.f32 %v636, 0.0
  %v724 = vmax.f32 %v641, 0.0
  %v725 = vmax.f32 %v644, 0.0
  %v726 = vmax.f32 %v649, 0.0
  %v727 = vmax.f32 %v652, 0.0
  %v728 = vmax.f32 %v657, 0.0
  %v729 = vmax.f32 %v660, 0.0
  %v730 = vmax.f32 %v665, 0.0
  %v731 = vmax.f32 %v668, 0.0
  %v732 = vmax.f32 %v673, 0.0
  %v733 = vmax.f32 %v676, 0.0
  %v734 = vmax.f32 %v681, 0.0
  %v735 = vmax.f32 %v684, 0.0
  %v736 = vmax.f32 %v689, 0.0
  %v737 = vmax.f32 %v692, 0.0
  %v738 = vmax.f32 %v697, 0.0
  %v739 = vmax.f32 %v700, 0.0
  %v740 = vmax.f32 %v705, 0.0
  %v741 = vmax.f32 %v708, 0.0
  %v742 = vmax.f32 %v713, 0.0
  %v743 = vpack.c.bf16 %v719, %v718
  %v744 = vpack.c.bf16 %v721, %v720
  %v745 = vpack.c.bf16 %v723, %v722
  %v746 = vpack.c.bf16 %v725, %v724
  %v747 = vpack.c.bf16 %v727, %v726
  %v748 = vpack.c.bf16 %v729, %v728
  %v749 = vpack.c.bf16 %v731, %v730
  %v750 = vpack.c.bf16 %v733, %v732
  %v751 = vpack.c.bf16 %v735, %v734
  %v752 = vpack.c.bf16 %v737, %v736
  %v753 = vpack.c.bf16 %v739, %v738
  %v754 = vpack.c.bf16 %v741, %v740
  %v755 = vpack.c.bf16 %v742, %v742
  %v769 = vunpack.c.l.b16 %v743
  %v770 = vunpack.c.h.b16 %v743
  %v771 = vunpack.c.l.b16 %v744
  %v772 = vunpack.c.h.b16 %v744
  %v773 = vunpack.c.l.b16 %v745
  %v774 = vunpack.c.h.b16 %v745
  %v775 = vunpack.c.l.b16 %v746
  %v776 = vunpack.c.h.b16 %v746
  %v777 = vunpack.c.l.b16 %v747
  %v778 = vunpack.c.h.b16 %v747
  %v779 = vunpack.c.l.b16 %v748
  %v780 = vunpack.c.h.b16 %v748
  %v781 = vunpack.c.l.b16 %v749
  %v782 = vunpack.c.h.b16 %v749
  %v783 = vunpack.c.l.b16 %v750
  %v784 = vunpack.c.h.b16 %v750
  %v785 = vunpack.c.l.b16 %v751
  %v786 = vunpack.c.h.b16 %v751
  %v787 = vunpack.c.l.b16 %v752
  %v788 = vunpack.c.h.b16 %v752
  %v789 = vunpack.c.l.b16 %v753
  %v790 = vunpack.c.h.b16 %v753
  %v791 = vunpack.c.l.b16 %v754
  %v792 = vunpack.c.h.b16 %v754
  %v793 = vunpack.c.l.b16 %v755
  %v794 = vpack.c.b16 %v769, %v769
  %v795 = vpack.c.b16 %v770, %v770
  %v796 = vpack.c.b16 %v771, %v771
  %v797 = vpack.c.b16 %v772, %v772
  %v798 = vpack.c.b16 %v773, %v773
  %v799 = vpack.c.b16 %v774, %v774
  %v800 = vpack.c.b16 %v775, %v775
  %v801 = vpack.c.b16 %v776, %v776
  %v802 = vpack.c.b16 %v777, %v777
  %v803 = vpack.c.b16 %v778, %v778
  %v804 = vpack.c.b16 %v779, %v779
  %v805 = vpack.c.b16 %v780, %v780
  %v806 = vpack.c.b16 %v781, %v781
  %v807 = vpack.c.b16 %v782, %v782
  %v808 = vpack.c.b16 %v783, %v783
  %v809 = vpack.c.b16 %v784, %v784
  %v810 = vpack.c.b16 %v785, %v785
  %v811 = vpack.c.b16 %v786, %v786
  %v812 = vpack.c.b16 %v787, %v787
  %v813 = vpack.c.b16 %v788, %v788
  %v814 = vpack.c.b16 %v789, %v789
  %v815 = vpack.c.b16 %v790, %v790
  %v816 = vpack.c.b16 %v791, %v791
  %v817 = vpack.c.b16 %v792, %v792
  %v818 = vpack.c.b16 %v793, %v793
  %vm844 = vcmask 519168
  %845 = vst.msk [vmem:[%s3] sm:$0xf] %vm844, %v794
  %846 = vst.msk [vmem:[%s3 + $0x4] sm:$0xf] %vm844, %v795
  %847 = vst.msk [vmem:[%s3 + $0x8] sm:$0xf] %vm844, %v796
  %848 = vst.msk [vmem:[%s3 + $0xc] sm:$0xf] %vm844, %v797
  %849 = vst.msk [vmem:[%s3 + $0x10] sm:$0xf] %vm844, %v798
  %850 = vst.msk [vmem:[%s3 + $0x14] sm:$0xf] %vm844, %v799
  %851 = vst.msk [vmem:[%s3 + $0x18] sm:$0xf] %vm844, %v800
  %852 = vst.msk [vmem:[%s3 + $0x1c] sm:$0xf] %vm844, %v801
  %853 = vst.msk [vmem:[%s3 + $0x20] sm:$0xf] %vm844, %v802
  %854 = vst.msk [vmem:[%s3 + $0x24] sm:$0xf] %vm844, %v803
  %855 = vst.msk [vmem:[%s3 + $0x28] sm:$0xf] %vm844, %v804
  %856 = vst.msk [vmem:[%s3 + $0x2c] sm:$0xf] %vm844, %v805
  %857 = vst.msk [vmem:[%s3 + $0x30] sm:$0xf] %vm844, %v806
  %858 = vst.msk [vmem:[%s3 + $0x34] sm:$0xf] %vm844, %v807
  %859 = vst.msk [vmem:[%s3 + $0x38] sm:$0xf] %vm844, %v808
  %860 = vst.msk [vmem:[%s3 + $0x3c] sm:$0xf] %vm844, %v809
  %861 = vst.msk [vmem:[%s3 + $0x40] sm:$0xf] %vm844, %v810
  %862 = vst.msk [vmem:[%s3 + $0x44] sm:$0xf] %vm844, %v811
  %863 = vst.msk [vmem:[%s3 + $0x48] sm:$0xf] %vm844, %v812
  %864 = vst.msk [vmem:[%s3 + $0x4c] sm:$0xf] %vm844, %v813
  %865 = vst.msk [vmem:[%s3 + $0x50] sm:$0xf] %vm844, %v814
  %866 = vst.msk [vmem:[%s3 + $0x54] sm:$0xf] %vm844, %v815
  %867 = vst.msk [vmem:[%s3 + $0x58] sm:$0xf] %vm844, %v816
  %868 = vst.msk [vmem:[%s3 + $0x5c] sm:$0xf] %vm844, %v817
  %869 = vst.msk [vmem:[%s3 + $0x60] sm:$0xf] %vm844, %v818
  // Predicated region
  $region14: #{forward.6} parent=0 // pred_check
    _
  $region15: #{forward.6} parent=0 // pred_check_branch
    %871 = sbr.rel (0) target = $region17
  $region16: #{forward.6} parent=0 // pred_region
    _
  $region17: #{forward.6} parent=0 // pred_fallthru
    _
  // Predicated region
  $region18: #{forward.6} parent=0 // pred_check
    _
  $region19: #{forward.6} parent=0 // pred_check_branch
    %873 = sbr.rel (0) target = $region21
  $region20: #{forward.6} parent=0 // pred_region
    _
  $region21: #{forward.6} parent=0 // pred_fallthru
    _

// kernel: forward.7
$region0: #{forward.7}
  #allocation0 [shape = 'u32[]', space=smem, size = 0x4, offset = 0x4, fixed_abs, tag = 'smem constant byte address 0x4 - core index']
  #allocation1 [shape = 'u32[144,128]{1,0:T(1,128)}', space=vmem, size = 0x12000, scoped, tag = 'internal scratch']
  #allocation2 [shape = 'f32[8,128]{1,0:T(8,128)}', space=vmem, size = 0x1000, scoped, tag = 'scratch operand']
  %s0 = inlined_call_operand.vmem [shape: bf16[8,256], index: 0, kind: input, shape index: {}]
  %s1 = inlined_call_operand.vmem [shape: f32[8,8], index: 1, kind: input, shape index: {}]
  %s2 = inlined_call_operand.vmem [shape: bf16[256,768], index: 2, kind: input, shape index: {}]
  %s3 = inlined_call_operand.vmem [shape: bf16[128,160], index: 3, kind: input, shape index: {}]
  %s4 = inlined_call_operand.vmem [shape: f32[16,512], index: 4, kind: input, shape index: {}]
  %s5 = inlined_call_operand.hbm [shape: f32[8,5], index: 5, kind: output, shape index: {}]
  %s6 = sld [smem:[#allocation0]]
  $region30: #{forward.7} parent=0
    _
  %s8 = ssub.s32 1, %s6
  %s9 = scalar_select 0, %s8, %s6
  $region1: #{forward.7} parent=0
    #allocation3 [shape = 'u8[4096]{0}', space=vmem, size = 0x1000, scoped, tag = 'output window, operand 0, single buffered']
    #allocation4 [shape = 's32[1]{0}', space=sflag, size = 0x4, scoped, tag = 'scoped memory for forward.7']
    %10 = vsyncpa [#allocation4], 0
    // Predicated region
    $region2: #{forward.7} parent=1 // pred_check
      _
    $region3: #{forward.7} parent=1 // pred_check_branch
      %12 = sbr.rel (0) target = $region5
    $region4: #{forward.7} parent=1 // pred_region
      _
    $region5: #{forward.7} parent=1 // pred_fallthru
      _
    // Predicated region
    $region6: #{forward.7} parent=1 // pred_check
      _
    $region7: #{forward.7} parent=1 // pred_check_branch
      %14 = sbr.rel (0) target = $region9
    $region8: #{forward.7} parent=1 // pred_region
      _
    $region9: #{forward.7} parent=1 // pred_fallthru
      _
    // Predicated region
    $region10: #{forward.7} parent=1 // pred_check
      _
    $region11: #{forward.7} parent=1 // pred_check_branch
      %16 = sbr.rel (0) target = $region13
    $region12: #{forward.7} parent=1 // pred_region
      _
    $region13: #{forward.7} parent=1 // pred_fallthru
      _
    // Predicated region
    $region14: #{forward.7} parent=1 // pred_check
      _
    $region15: #{forward.7} parent=1 // pred_check_branch
      %18 = sbr.rel (0) target = $region17
    $region16: #{forward.7} parent=1 // pred_region
      _
    $region17: #{forward.7} parent=1 // pred_fallthru
      _
    // Predicated region
    $region18: #{forward.7} parent=1 // pred_check
      _
    $region19: #{forward.7} parent=1 // pred_check_branch
      %20 = sbr.rel (0) target = $region21
    $region20: #{forward.7} parent=1 // pred_region
      _
    $region21: #{forward.7} parent=1 // pred_fallthru
      _
    %v22 = vld [vmem:[%s0] sm:$0xff]
    %v23 = vld [vmem:[%s2] sm:$0xff]
    %v24 = vld [vmem:[%s2 + $0x18] sm:$0xff]
    %v25 = vld [vmem:[%s2 + $0x30] sm:$0xff]
    %v26 = vld [vmem:[%s2 + $0x48] sm:$0xff]
    %v27 = vld [vmem:[%s2 + $0x60] sm:$0xff]
    %v28 = vld [vmem:[%s2 + $0x78] sm:$0xff]
    %v29 = vld [vmem:[%s2 + $0x90] sm:$0xff]
    %v30 = vld [vmem:[%s2 + $0xa8] sm:$0xff]
    %v31 = vld [vmem:[%s2 + $0xc0] sm:$0xff]
    %v32 = vld [vmem:[%s2 + $0xd8] sm:$0xff]
    %v33 = vld [vmem:[%s2 + $0xf0] sm:$0xff]
    %v34 = vld [vmem:[%s2 + $0x108] sm:$0xff]
    %v35 = vld [vmem:[%s2 + $0x120] sm:$0xff]
    %v36 = vld [vmem:[%s2 + $0x138] sm:$0xff]
    %v37 = vld [vmem:[%s2 + $0x150] sm:$0xff]
    %v38 = vld [vmem:[%s2 + $0x168] sm:$0xff]
    %v39 = vld [vmem:[%s2 + $0x180] sm:$0xff]
    %v40 = vld [vmem:[%s2 + $0x198] sm:$0xff]
    %v41 = vld [vmem:[%s2 + $0x1b0] sm:$0xff]
    %v42 = vld [vmem:[%s2 + $0x1c8] sm:$0xff]
    %v43 = vld [vmem:[%s2 + $0x1e0] sm:$0xff]
    %v44 = vld [vmem:[%s2 + $0x1f8] sm:$0xff]
    %v45 = vld [vmem:[%s2 + $0x210] sm:$0xff]
    %v46 = vld [vmem:[%s2 + $0x228] sm:$0xff]
    %v47 = vld [vmem:[%s2 + $0x240] sm:$0xff]
    %v48 = vld [vmem:[%s2 + $0x258] sm:$0xff]
    %v49 = vld [vmem:[%s2 + $0x270] sm:$0xff]
    %v50 = vld [vmem:[%s2 + $0x288] sm:$0xff]
    %v51 = vld [vmem:[%s2 + $0x2a0] sm:$0xff]
    %v52 = vld [vmem:[%s2 + $0x2b8] sm:$0xff]
    %v53 = vld [vmem:[%s2 + $0x2d0] sm:$0xff]
    %v54 = vld [vmem:[%s2 + $0x2e8] sm:$0xff]
    %s55 = scalar_lea.vmem %s4, 1
    %v56 = vld [vmem:[%s55] ss:$8 sm:$0x3]
    %v58 = vlaneseq
    %v59 = vshrl.u32 %v58, 7
    %v60 = vsub.s32 0, %v59
    %v61 = vrot.slane %v56, %v60
    %v62 = vlaneseq
    %v63 = vshrl.u32 %v62, 7
    %v64 = vsub.s32 1, %v63
    %v65 = vrot.slane %v56, %v64
    %v69 = vunpack.c.l.b16 %v22
    %v70 = vunpack.c.h.b16 %v22
    %v71 = vpack.c.b16 %v69, %v69
    %v72 = vpack.c.b16 %v70, %v70
    %v107 = vunpack.c.l.b16 %v23
    %v108 = vunpack.c.h.b16 %v23
    %v109 = vunpack.c.l.b16 %v24
    %v110 = vunpack.c.h.b16 %v24
    %v111 = vunpack.c.l.b16 %v25
    %v112 = vunpack.c.h.b16 %v25
    %v113 = vunpack.c.l.b16 %v26
    %v114 = vunpack.c.h.b16 %v26
    %v115 = vunpack.c.l.b16 %v27
    %v116 = vunpack.c.h.b16 %v27
    %v117 = vunpack.c.l.b16 %v28
    %v118 = vunpack.c.h.b16 %v28
    %v119 = vunpack.c.l.b16 %v29
    %v120 = vunpack.c.h.b16 %v29
    %v121 = vunpack.c.l.b16 %v30
    %v122 = vunpack.c.h.b16 %v30
    %v123 = vunpack.c.l.b16 %v31
    %v124 = vunpack.c.h.b16 %v31
    %v125 = vunpack.c.l.b16 %v32
    %v126 = vunpack.c.h.b16 %v32
    %v127 = vunpack.c.l.b16 %v33
    %v128 = vunpack.c.h.b16 %v33
    %v129 = vunpack.c.l.b16 %v34
    %v130 = vunpack.c.h.b16 %v34
    %v131 = vunpack.c.l.b16 %v35
    %v132 = vunpack.c.h.b16 %v35
    %v133 = vunpack.c.l.b16 %v36
    %v134 = vunpack.c.h.b16 %v36
    %v135 = vunpack.c.l.b16 %v37
    %v136 = vunpack.c.h.b16 %v37
    %v137 = vunpack.c.l.b16 %v38
    %v138 = vunpack.c.h.b16 %v38
    %v139 = vunpack.c.l.b16 %v39
    %v140 = vunpack.c.h.b16 %v39
    %v141 = vunpack.c.l.b16 %v40
    %v142 = vunpack.c.h.b16 %v40
    %v143 = vunpack.c.l.b16 %v41
    %v144 = vunpack.c.h.b16 %v41
    %v145 = vunpack.c.l.b16 %v42
    %v146 = vunpack.c.h.b16 %v42
    %v147 = vunpack.c.l.b16 %v43
    %v148 = vunpack.c.h.b16 %v43
    %v149 = vunpack.c.l.b16 %v44
    %v150 = vunpack.c.h.b16 %v44
    %v151 = vunpack.c.l.b16 %v45
    %v152 = vunpack.c.h.b16 %v45
    %v153 = vunpack.c.l.b16 %v46
    %v154 = vunpack.c.h.b16 %v46
    %v155 = vunpack.c.l.b16 %v47
    %v156 = vunpack.c.h.b16 %v47
    %v157 = vunpack.c.l.b16 %v48
    %v158 = vunpack.c.h.b16 %v48
    %v159 = vunpack.c.l.b16 %v49
    %v160 = vunpack.c.h.b16 %v49
    %v161 = vunpack.c.l.b16 %v50
    %v162 = vunpack.c.h.b16 %v50
    %v163 = vunpack.c.l.b16 %v51
    %v164 = vunpack.c.h.b16 %v51
    %v165 = vunpack.c.l.b16 %v52
    %v166 = vunpack.c.h.b16 %v52
    %v167 = vunpack.c.l.b16 %v53
    %v168 = vunpack.c.h.b16 %v53
    %v169 = vunpack.c.l.b16 %v54
    %v170 = vunpack.c.h.b16 %v54
    %v171 = vpack.c.b16 %v109, %v107
    %v172 = vpack.c.b16 %v110, %v108
    %v173 = vpack.c.b16 %v113, %v111
    %v174 = vpack.c.b16 %v114, %v112
    %v175 = vpack.c.b16 %v117, %v115
    %v176 = vpack.c.b16 %v118, %v116
    %v177 = vpack.c.b16 %v121, %v119
    %v178 = vpack.c.b16 %v122, %v120
    %v179 = vpack.c.b16 %v125, %v123
    %v180 = vpack.c.b16 %v126, %v124
    %v181 = vpack.c.b16 %v129, %v127
    %v182 = vpack.c.b16 %v130, %v128
    %v183 = vpack.c.b16 %v133, %v131
    %v184 = vpack.c.b16 %v134, %v132
    %v185 = vpack.c.b16 %v137, %v135
    %v186 = vpack.c.b16 %v138, %v136
    %v187 = vpack.c.b16 %v141, %v139
    %v188 = vpack.c.b16 %v142, %v140
    %v189 = vpack.c.b16 %v145, %v143
    %v190 = vpack.c.b16 %v146, %v144
    %v191 = vpack.c.b16 %v149, %v147
    %v192 = vpack.c.b16 %v150, %v148
    %v193 = vpack.c.b16 %v153, %v151
    %v194 = vpack.c.b16 %v154, %v152
    %v195 = vpack.c.b16 %v157, %v155
    %v196 = vpack.c.b16 %v158, %v156
    %v197 = vpack.c.b16 %v161, %v159
    %v198 = vpack.c.b16 %v162, %v160
    %v199 = vpack.c.b16 %v165, %v163
    %v200 = vpack.c.b16 %v166, %v164
    %v201 = vpack.c.b16 %v169, %v167
    %v202 = vpack.c.b16 %v170, %v168
    %235 = vmatprep.subr.bf16.mxu0 %v172
    %236 = vmatpush1.bf16.msra.mxu0 %v171
    %237 = vmatprep.subr.bf16.mxu0 %v174
    %238 = vmatpush1.bf16.msra.mxu0 %v173
    %239 = vmatprep.subr.bf16.mxu0 %v176
    %240 = vmatpush1.bf16.msra.mxu0 %v175
    %241 = vmatprep.subr.bf16.mxu0 %v178
    %242 = vmatpush1.bf16.msra.mxu0 %v177
    %243 = vmatprep.subr.bf16.mxu0 %v180
    %244 = vmatpush1.bf16.msra.mxu0 %v179
    %245 = vmatprep.subr.bf16.mxu0 %v182
    %246 = vmatpush1.bf16.msra.mxu0 %v181
    %247 = vmatprep.subr.bf16.mxu0 %v184
    %248 = vmatpush1.bf16.msra.mxu0 %v183
    %249 = vmatprep.subr.bf16.mxu0 %v186
    %250 = vmatpush1.bf16.msra.mxu0 %v185
    %251 = vmatprep.subr.bf16.mxu0 %v188
    %252 = vmatpush1.bf16.msra.mxu0 %v187
    %253 = vmatprep.subr.bf16.mxu0 %v190
    %254 = vmatpush1.bf16.msra.mxu0 %v189
    %255 = vmatprep.subr.bf16.mxu0 %v192
    %256 = vmatpush1.bf16.msra.mxu0 %v191
    %257 = vmatprep.subr.bf16.mxu0 %v194
    %258 = vmatpush1.bf16.msra.mxu0 %v193
    %259 = vmatprep.subr.bf16.mxu0 %v196
    %260 = vmatpush1.bf16.msra.mxu0 %v195
    %261 = vmatprep.subr.bf16.mxu0 %v198
    %262 = vmatpush1.bf16.msra.mxu0 %v197
    %263 = vmatprep.subr.bf16.mxu0 %v200
    %264 = vmatpush1.bf16.msra.mxu0 %v199
    %265 = vmatprep.subr.bf16.mxu0 %v202
    %266 = vmatpush1.bf16.msra.mxu0 %v201
    %267 = vmatprep.mubr.bf16.mxu0 %v72
    %268 = vmatmul.mubr.bf16.gmra.mrb[0].mxu0 %v71
    %v269 = vpop.f32.mrb[0].mxu0
    %v270 = vadd.f32 %v61, %v269
    %v271 = vpop.f32.mrb[0].mxu0
    %v272 = vadd.f32 %v65, %v271
    %v273 = vpop.f32.mrb[0].mxu0
    %v274 = vpop.f32.mrb[0].mxu0
    %275 = vdwg.mxu0
    %v276 = vmax.f32 %v270, 0.0
    %v277 = vmax.f32 %v272, 0.0
    %v278 = vpack.c.bf16 %v276, %v276
    %v279 = vpack.c.bf16 %v277, %v277
    %v280 = vld [vmem:[%s2 + $0x8] sm:$0xff]
    %v281 = vld [vmem:[%s2 + $0x10] sm:$0xff]
    %v282 = vld [vmem:[%s2 + $0x20] sm:$0xff]
    %v283 = vld [vmem:[%s2 + $0x28] sm:$0xff]
    %v284 = vld [vmem:[%s2 + $0x38] sm:$0xff]
    %v285 = vld [vmem:[%s2 + $0x40] sm:$0xff]
    %v286 = vld [vmem:[%s2 + $0x50] sm:$0xff]
    %v287 = vld [vmem:[%s2 + $0x58] sm:$0xff]
    %v288 = vld [vmem:[%s2 + $0x68] sm:$0xff]
    %v289 = vld [vmem:[%s2 + $0x70] sm:$0xff]
    %v290 = vld [vmem:[%s2 + $0x80] sm:$0xff]
    %v291 = vld [vmem:[%s2 + $0x88] sm:$0xff]
    %v292 = vld [vmem:[%s2 + $0x98] sm:$0xff]
    %v293 = vld [vmem:[%s2 + $0xa0] sm:$0xff]
    %v294 = vld [vmem:[%s2 + $0xb0] sm:$0xff]
    %v295 = vld [vmem:[%s2 + $0xb8] sm:$0xff]
    %v296 = vld [vmem:[%s2 + $0xc8] sm:$0xff]
    %v297 = vld [vmem:[%s2 + $0xd0] sm:$0xff]
    %v298 = vld [vmem:[%s2 + $0xe0] sm:$0xff]
    %v299 = vld [vmem:[%s2 + $0xe8] sm:$0xff]
    %v300 = vld [vmem:[%s2 + $0xf8] sm:$0xff]
    %v301 = vld [vmem:[%s2 + $0x100] sm:$0xff]
    %v302 = vld [vmem:[%s2 + $0x110] sm:$0xff]
    %v303 = vld [vmem:[%s2 + $0x118] sm:$0xff]
    %v304 = vld [vmem:[%s2 + $0x128] sm:$0xff]
    %v305 = vld [vmem:[%s2 + $0x130] sm:$0xff]
    %v306 = vld [vmem:[%s2 + $0x140] sm:$0xff]
    %v307 = vld [vmem:[%s2 + $0x148] sm:$0xff]
    %v308 = vld [vmem:[%s2 + $0x158] sm:$0xff]
    %v309 = vld [vmem:[%s2 + $0x160] sm:$0xff]
    %v310 = vld [vmem:[%s2 + $0x170] sm:$0xff]
    %v311 = vld [vmem:[%s2 + $0x178] sm:$0xff]
    %v312 = vld [vmem:[%s2 + $0x188] sm:$0xff]
    %v313 = vld [vmem:[%s2 + $0x190] sm:$0xff]
    %v314 = vld [vmem:[%s2 + $0x1a0] sm:$0xff]
    %v315 = vld [vmem:[%s2 + $0x1a8] sm:$0xff]
    %v316 = vld [vmem:[%s2 + $0x1b8] sm:$0xff]
    %v317 = vld [vmem:[%s2 + $0x1c0] sm:$0xff]
    %v318 = vld [vmem:[%s2 + $0x1d0] sm:$0xff]
    %v319 = vld [vmem:[%s2 + $0x1d8] sm:$0xff]
    %v320 = vld [vmem:[%s2 + $0x1e8] sm:$0xff]
    %v321 = vld [vmem:[%s2 + $0x1f0] sm:$0xff]
    %v322 = vld [vmem:[%s2 + $0x200] sm:$0xff]
    %v323 = vld [vmem:[%s2 + $0x208] sm:$0xff]
    %v324 = vld [vmem:[%s2 + $0x218] sm:$0xff]
    %v325 = vld [vmem:[%s2 + $0x220] sm:$0xff]
    %v326 = vld [vmem:[%s2 + $0x230] sm:$0xff]
    %v327 = vld [vmem:[%s2 + $0x238] sm:$0xff]
    %v328 = vld [vmem:[%s2 + $0x248] sm:$0xff]
    %v329 = vld [vmem:[%s2 + $0x250] sm:$0xff]
    %v330 = vld [vmem:[%s2 + $0x260] sm:$0xff]
    %v331 = vld [vmem:[%s2 + $0x268] sm:$0xff]
    %v332 = vld [vmem:[%s2 + $0x278] sm:$0xff]
    %v333 = vld [vmem:[%s2 + $0x280] sm:$0xff]
    %v334 = vld [vmem:[%s2 + $0x290] sm:$0xff]
    %v335 = vld [vmem:[%s2 + $0x298] sm:$0xff]
    %v336 = vld [vmem:[%s2 + $0x2a8] sm:$0xff]
    %v337 = vld [vmem:[%s2 + $0x2b0] sm:$0xff]
    %v338 = vld [vmem:[%s2 + $0x2c0] sm:$0xff]
    %v339 = vld [vmem:[%s2 + $0x2c8] sm:$0xff]
    %v340 = vld [vmem:[%s2 + $0x2d8] sm:$0xff]
    %v341 = vld [vmem:[%s2 + $0x2e0] sm:$0xff]
    %v342 = vld [vmem:[%s2 + $0x2f0] sm:$0xff]
    %v343 = vld [vmem:[%s2 + $0x2f8] sm:$0xff]
    %v344 = vld [vmem:[%s4] ss:$8 sm:$0xf]
    %v346 = vlaneseq
    %v347 = vshrl.u32 %v346, 7
    %v348 = vsub.s32 0, %v347
    %v349 = vrot.slane %v344, %v348
    %v350 = vlaneseq
    %v351 = vshrl.u32 %v350, 7
    %v352 = vsub.s32 1, %v351
    %v353 = vrot.slane %v344, %v352
    %v354 = vlaneseq
    %v355 = vshrl.u32 %v354, 7
    %v356 = vsub.s32 2, %v355
    %v357 = vrot.slane %v344, %v356
    %v358 = vlaneseq
    %v359 = vshrl.u32 %v358, 7
    %v360 = vsub.s32 3, %v359
    %v361 = vrot.slane %v344, %v360
    %v430 = vunpack.c.l.b16 %v280
    %v431 = vunpack.c.h.b16 %v280
    %v432 = vunpack.c.l.b16 %v281
    %v433 = vunpack.c.h.b16 %v281
    %v434 = vunpack.c.l.b16 %v282
    %v435 = vunpack.c.h.b16 %v282
    %v436 = vunpack.c.l.b16 %v283
    %v437 = vunpack.c.h.b16 %v283
    %v438 = vunpack.c.l.b16 %v284
    %v439 = vunpack.c.h.b16 %v284
    %v440 = vunpack.c.l.b16 %v285
    %v441 = vunpack.c.h.b16 %v285
    %v442 = vunpack.c.l.b16 %v286
    %v443 = vunpack.c.h.b16 %v286
    %v444 = vunpack.c.l.b16 %v287
    %v445 = vunpack.c.h.b16 %v287
    %v446 = vunpack.c.l.b16 %v288
    %v447 = vunpack.c.h.b16 %v288
    %v448 = vunpack.c.l.b16 %v289
    %v449 = vunpack.c.h.b16 %v289
    %v450 = vunpack.c.l.b16 %v290
    %v451 = vunpack.c.h.b16 %v290
    %v452 = vunpack.c.l.b16 %v291
    %v453 = vunpack.c.h.b16 %v291
    %v454 = vunpack.c.l.b16 %v292
    %v455 = vunpack.c.h.b16 %v292
    %v456 = vunpack.c.l.b16 %v293
    %v457 = vunpack.c.h.b16 %v293
    %v458 = vunpack.c.l.b16 %v294
    %v459 = vunpack.c.h.b16 %v294
    %v460 = vunpack.c.l.b16 %v295
    %v461 = vunpack.c.h.b16 %v295
    %v462 = vunpack.c.l.b16 %v296
    %v463 = vunpack.c.h.b16 %v296
    %v464 = vunpack.c.l.b16 %v297
    %v465 = vunpack.c.h.b16 %v297
    %v466 = vunpack.c.l.b16 %v298
    %v467 = vunpack.c.h.b16 %v298
    %v468 = vunpack.c.l.b16 %v299
    %v469 = vunpack.c.h.b16 %v299
    %v470 = vunpack.c.l.b16 %v300
    %v471 = vunpack.c.h.b16 %v300
    %v472 = vunpack.c.l.b16 %v301
    %v473 = vunpack.c.h.b16 %v301
    %v474 = vunpack.c.l.b16 %v302
    %v475 = vunpack.c.h.b16 %v302
    %v476 = vunpack.c.l.b16 %v303
    %v477 = vunpack.c.h.b16 %v303
    %v478 = vunpack.c.l.b16 %v304
    %v479 = vunpack.c.h.b16 %v304
    %v480 = vunpack.c.l.b16 %v305
    %v481 = vunpack.c.h.b16 %v305
    %v482 = vunpack.c.l.b16 %v306
    %v483 = vunpack.c.h.b16 %v306
    %v484 = vunpack.c.l.b16 %v307
    %v485 = vunpack.c.h.b16 %v307
    %v486 = vunpack.c.l.b16 %v308
    %v487 = vunpack.c.h.b16 %v308
    %v488 = vunpack.c.l.b16 %v309
    %v489 = vunpack.c.h.b16 %v309
    %v490 = vunpack.c.l.b16 %v310
    %v491 = vunpack.c.h.b16 %v310
    %v492 = vunpack.c.l.b16 %v311
    %v493 = vunpack.c.h.b16 %v311
    %v494 = vunpack.c.l.b16 %v312
    %v495 = vunpack.c.h.b16 %v312
    %v496 = vunpack.c.l.b16 %v313
    %v497 = vunpack.c.h.b16 %v313
    %v498 = vunpack.c.l.b16 %v314
    %v499 = vunpack.c.h.b16 %v314
    %v500 = vunpack.c.l.b16 %v315
    %v501 = vunpack.c.h.b16 %v315
    %v502 = vunpack.c.l.b16 %v316
    %v503 = vunpack.c.h.b16 %v316
    %v504 = vunpack.c.l.b16 %v317
    %v505 = vunpack.c.h.b16 %v317
    %v506 = vunpack.c.l.b16 %v318
    %v507 = vunpack.c.h.b16 %v318
    %v508 = vunpack.c.l.b16 %v319
    %v509 = vunpack.c.h.b16 %v319
    %v510 = vunpack.c.l.b16 %v320
    %v511 = vunpack.c.h.b16 %v320
    %v512 = vunpack.c.l.b16 %v321
    %v513 = vunpack.c.h.b16 %v321
    %v514 = vunpack.c.l.b16 %v322
    %v515 = vunpack.c.h.b16 %v322
    %v516 = vunpack.c.l.b16 %v323
    %v517 = vunpack.c.h.b16 %v323
    %v518 = vunpack.c.l.b16 %v324
    %v519 = vunpack.c.h.b16 %v324
    %v520 = vunpack.c.l.b16 %v325
    %v521 = vunpack.c.h.b16 %v325
    %v522 = vunpack.c.l.b16 %v326
    %v523 = vunpack.c.h.b16 %v326
    %v524 = vunpack.c.l.b16 %v327
    %v525 = vunpack.c.h.b16 %v327
    %v526 = vunpack.c.l.b16 %v328
    %v527 = vunpack.c.h.b16 %v328
    %v528 = vunpack.c.l.b16 %v329
    %v529 = vunpack.c.h.b16 %v329
    %v530 = vunpack.c.l.b16 %v330
    %v531 = vunpack.c.h.b16 %v330
    %v532 = vunpack.c.l.b16 %v331
    %v533 = vunpack.c.h.b16 %v331
    %v534 = vunpack.c.l.b16 %v332
    %v535 = vunpack.c.h.b16 %v332
    %v536 = vunpack.c.l.b16 %v333
    %v537 = vunpack.c.h.b16 %v333
    %v538 = vunpack.c.l.b16 %v334
    %v539 = vunpack.c.h.b16 %v334
    %v540 = vunpack.c.l.b16 %v335
    %v541 = vunpack.c.h.b16 %v335
    %v542 = vunpack.c.l.b16 %v336
    %v543 = vunpack.c.h.b16 %v336
    %v544 = vunpack.c.l.b16 %v337
    %v545 = vunpack.c.h.b16 %v337
    %v546 = vunpack.c.l.b16 %v338
    %v547 = vunpack.c.h.b16 %v338
    %v548 = vunpack.c.l.b16 %v339
    %v549 = vunpack.c.h.b16 %v339
    %v550 = vunpack.c.l.b16 %v340
    %v551 = vunpack.c.h.b16 %v340
    %v552 = vunpack.c.l.b16 %v341
    %v553 = vunpack.c.h.b16 %v341
    %v554 = vunpack.c.l.b16 %v342
    %v555 = vunpack.c.h.b16 %v342
    %v556 = vunpack.c.l.b16 %v343
    %v557 = vunpack.c.h.b16 %v343
    %v558 = vpack.c.b16 %v434, %v430
    %v559 = vpack.c.b16 %v435, %v431
    %v560 = vpack.c.b16 %v436, %v432
    %v561 = vpack.c.b16 %v437, %v433
    %v562 = vpack.c.b16 %v442, %v438
    %v563 = vpack.c.b16 %v443, %v439
    %v564 = vpack.c.b16 %v444, %v440
    %v565 = vpack.c.b16 %v445, %v441
    %v566 = vpack.c.b16 %v450, %v446
    %v567 = vpack.c.b16 %v451, %v447
    %v568 = vpack.c.b16 %v452, %v448
    %v569 = vpack.c.b16 %v453, %v449
    %v570 = vpack.c.b16 %v458, %v454
    %v571 = vpack.c.b16 %v459, %v455
    %v572 = vpack.c.b16 %v460, %v456
    %v573 = vpack.c.b16 %v461, %v457
    %v574 = vpack.c.b16 %v466, %v462
    %v575 = vpack.c.b16 %v467, %v463
    %v576 = vpack.c.b16 %v468, %v464
    %v577 = vpack.c.b16 %v469, %v465
    %v578 = vpack.c.b16 %v474, %v470
    %v579 = vpack.c.b16 %v475, %v471
    %v580 = vpack.c.b16 %v476, %v472
    %v581 = vpack.c.b16 %v477, %v473
    %v582 = vpack.c.b16 %v482, %v478
    %v583 = vpack.c.b16 %v483, %v479
    %v584 = vpack.c.b16 %v484, %v480
    %v585 = vpack.c.b16 %v485, %v481
    %v586 = vpack.c.b16 %v490, %v486
    %v587 = vpack.c.b16 %v491, %v487
    %v588 = vpack.c.b16 %v492, %v488
    %v589 = vpack.c.b16 %v493, %v489
    %v590 = vpack.c.b16 %v498, %v494
    %v591 = vpack.c.b16 %v499, %v495
    %v592 = vpack.c.b16 %v500, %v496
    %v593 = vpack.c.b16 %v501, %v497
    %v594 = vpack.c.b16 %v506, %v502
    %v595 = vpack.c.b16 %v507, %v503
    %v596 = vpack.c.b16 %v508, %v504
    %v597 = vpack.c.b16 %v509, %v505
    %v598 = vpack.c.b16 %v514, %v510
    %v599 = vpack.c.b16 %v515, %v511
    %v600 = vpack.c.b16 %v516, %v512
    %v601 = vpack.c.b16 %v517, %v513
    %v602 = vpack.c.b16 %v522, %v518
    %v603 = vpack.c.b16 %v523, %v519
    %v604 = vpack.c.b16 %v524, %v520
    %v605 = vpack.c.b16 %v525, %v521
    %v606 = vpack.c.b16 %v530, %v526
    %v607 = vpack.c.b16 %v531, %v527
    %v608 = vpack.c.b16 %v532, %v528
    %v609 = vpack.c.b16 %v533, %v529
    %v610 = vpack.c.b16 %v538, %v534
    %v611 = vpack.c.b16 %v539, %v535
    %v612 = vpack.c.b16 %v540, %v536
    %v613 = vpack.c.b16 %v541, %v537
    %v614 = vpack.c.b16 %v546, %v542
    %v615 = vpack.c.b16 %v547, %v543
    %v616 = vpack.c.b16 %v548, %v544
    %v617 = vpack.c.b16 %v549, %v545
    %v618 = vpack.c.b16 %v554, %v550
    %v619 = vpack.c.b16 %v555, %v551
    %v620 = vpack.c.b16 %v556, %v552
    %v621 = vpack.c.b16 %v557, %v553
    %686 = vmatprep.subr.bf16.mxu0 %v559
    %687 = vmatpush1.bf16.msra.mxu0 %v558
    %688 = vmatprep.subr.bf16.mxu0 %v563
    %689 = vmatpush1.bf16.msra.mxu0 %v562
    %690 = vmatprep.subr.bf16.mxu0 %v567
    %691 = vmatpush1.bf16.msra.mxu0 %v566
    %692 = vmatprep.subr.bf16.mxu0 %v571
    %693 = vmatpush1.bf16.msra.mxu0 %v570
    %694 = vmatprep.subr.bf16.mxu0 %v575
    %695 = vmatpush1.bf16.msra.mxu0 %v574
    %696 = vmatprep.subr.bf16.mxu0 %v579
    %697 = vmatpush1.bf16.msra.mxu0 %v578
    %698 = vmatprep.subr.bf16.mxu0 %v583
    %699 = vmatpush1.bf16.msra.mxu0 %v582
    %700 = vmatprep.subr.bf16.mxu0 %v587
    %701 = vmatpush1.bf16.msra.mxu0 %v586
    %702 = vmatprep.subr.bf16.mxu0 %v591
    %703 = vmatpush1.bf16.msra.mxu0 %v590
    %704 = vmatprep.subr.bf16.mxu0 %v595
    %705 = vmatpush1.bf16.msra.mxu0 %v594
    %706 = vmatprep.subr.bf16.mxu0 %v599
    %707 = vmatpush1.bf16.msra.mxu0 %v598
    %708 = vmatprep.subr.bf16.mxu0 %v603
    %709 = vmatpush1.bf16.msra.mxu0 %v602
    %710 = vmatprep.subr.bf16.mxu0 %v607
    %711 = vmatpush1.bf16.msra.mxu0 %v606
    %712 = vmatprep.subr.bf16.mxu0 %v611
    %713 = vmatpush1.bf16.msra.mxu0 %v610
    %714 = vmatprep.subr.bf16.mxu0 %v615
    %715 = vmatpush1.bf16.msra.mxu0 %v614
    %716 = vmatprep.subr.bf16.mxu0 %v619
    %717 = vmatpush1.bf16.msra.mxu0 %v618
    %718 = vmatprep.mubr.bf16.mxu0 %v279
    %719 = vmatmul.mubr.bf16.gmra.mrb[0].mxu0 %v278
    %v720 = vpop.f32.mrb[0].mxu0
    %v721 = vadd.f32 %v349, %v720
    %v722 = vpop.f32.mrb[0].mxu0
    %v723 = vadd.f32 %v353, %v722
    %v724 = vpop.f32.mrb[0].mxu0
    %v725 = vpop.f32.mrb[0].mxu0
    %726 = vdwg.mxu0
    %727 = vmatprep.subr.bf16.mxu0 %v561
    %728 = vmatpush1.bf16.msra.mxu0 %v560
    %729 = vmatprep.subr.bf16.mxu0 %v565
    %730 = vmatpush1.bf16.msra.mxu0 %v564
    %731 = vmatprep.subr.bf16.mxu0 %v569
    %732 = vmatpush1.bf16.msra.mxu0 %v568
    %733 = vmatprep.subr.bf16.mxu0 %v573
    %734 = vmatpush1.bf16.msra.mxu0 %v572
    %735 = vmatprep.subr.bf16.mxu0 %v577
    %736 = vmatpush1.bf16.msra.mxu0 %v576
    %737 = vmatprep.subr.bf16.mxu0 %v581
    %738 = vmatpush1.bf16.msra.mxu0 %v580
    %739 = vmatprep.subr.bf16.mxu0 %v585
    %740 = vmatpush1.bf16.msra.mxu0 %v584
    %741 = vmatprep.subr.bf16.mxu0 %v589
    %742 = vmatpush1.bf16.msra.mxu0 %v588
    %743 = vmatprep.subr.bf16.mxu0 %v593
    %744 = vmatpush1.bf16.msra.mxu0 %v592
    %745 = vmatprep.subr.bf16.mxu0 %v597
    %746 = vmatpush1.bf16.msra.mxu0 %v596
    %747 = vmatprep.subr.bf16.mxu0 %v601
    %748 = vmatpush1.bf16.msra.mxu0 %v600
    %749 = vmatprep.subr.bf16.mxu0 %v605
    %750 = vmatpush1.bf16.msra.mxu0 %v604
    %751 = vmatprep.subr.bf16.mxu0 %v609
    %752 = vmatpush1.bf16.msra.mxu0 %v608
    %753 = vmatprep.subr.bf16.mxu0 %v613
    %754 = vmatpush1.bf16.msra.mxu0 %v612
    %755 = vmatprep.subr.bf16.mxu0 %v617
    %756 = vmatpush1.bf16.msra.mxu0 %v616
    %757 = vmatprep.subr.bf16.mxu0 %v621
    %758 = vmatpush1.bf16.msra.mxu0 %v620
    %759 = vmatprep.mubr.bf16.mxu0 %v279
    %760 = vmatmul.mubr.bf16.gmra.mrb[0].mxu0 %v278
    %v761 = vpop.f32.mrb[0].mxu0
    %v762 = vadd.f32 %v357, %v761
    %v763 = vpop.f32.mrb[0].mxu0
    %v764 = vadd.f32 %v361, %v763
    %v765 = vpop.f32.mrb[0].mxu0
    %v766 = vpop.f32.mrb[0].mxu0
    %767 = vdwg.mxu0
    %v768 = vmax.f32 %v721, 0.0
    %v769 = vmax.f32 %v723, 0.0
    %v770 = vmax.f32 %v762, 0.0
    %v771 = vmax.f32 %v764, 0.0
    %v772 = vmax.f32 %v768, %v769
    %v773 = vmax.f32 %v770, %v771
    %v774 = vmax.f32 %v772, %v773
    %v775 = vpack.c.bf16 %v774, %v774
    %v776 = vld [vmem:[%s3 + $0x4] sm:$0xf]
    %v777 = vld [vmem:[%s3 + $0xc] sm:$0xf]
    %v778 = vld [vmem:[%s3 + $0x14] sm:$0xf]
    %v779 = vld [vmem:[%s3 + $0x1c] sm:$0xf]
    %v780 = vld [vmem:[%s3 + $0x24] sm:$0xf]
    %v781 = vld [vmem:[%s3 + $0x2c] sm:$0xf]
    %v782 = vld [vmem:[%s3 + $0x34] sm:$0xf]
    %v783 = vld [vmem:[%s3 + $0x3c] sm:$0xf]
    %v784 = vld [vmem:[%s3 + $0x44] sm:$0xf]
    %v785 = vld [vmem:[%s3 + $0x4c] sm:$0xf]
    %v786 = vld [vmem:[%s3 + $0x54] sm:$0xf]
    %v787 = vld [vmem:[%s3 + $0x5c] sm:$0xf]
    %v788 = vld [vmem:[%s3 + $0x64] sm:$0xf]
    %v789 = vld [vmem:[%s3 + $0x6c] sm:$0xf]
    %v790 = vld [vmem:[%s3 + $0x74] sm:$0xf]
    %v791 = vld [vmem:[%s3 + $0x7c] sm:$0xf]
    %v792 = vld [vmem:[%s4 + $0x3] ss:$0 sm:$0xff]
    %v809 = vunpack.c.l.b16 %v776
    %v810 = vunpack.c.l.b16 %v777
    %v811 = vunpack.c.l.b16 %v778
    %v812 = vunpack.c.l.b16 %v779
    %v813 = vunpack.c.l.b16 %v780
    %v814 = vunpack.c.l.b16 %v781
    %v815 = vunpack.c.l.b16 %v782
    %v816 = vunpack.c.l.b16 %v783
    %v817 = vunpack.c.l.b16 %v784
    %v818 = vunpack.c.l.b16 %v785
    %v819 = vunpack.c.l.b16 %v786
    %v820 = vunpack.c.l.b16 %v787
    %v821 = vunpack.c.l.b16 %v788
    %v822 = vunpack.c.l.b16 %v789
    %v823 = vunpack.c.l.b16 %v790
    %v824 = vunpack.c.l.b16 %v791
    %v825 = vpack.c.b16 %v810, %v809
    %v826 = vpack.c.b16 %v812, %v811
    %v827 = vpack.c.b16 %v814, %v813
    %v828 = vpack.c.b16 %v816, %v815
    %v829 = vpack.c.b16 %v818, %v817
    %v830 = vpack.c.b16 %v820, %v819
    %v831 = vpack.c.b16 %v822, %v821
    %v832 = vpack.c.b16 %v824, %v823
    %841 = vmatprep.subr.bf16.mxu0 0
    %842 = vmatpush1.bf16.msra.mxu0 %v825
    %843 = vmatprep.subr.bf16.mxu0 0
    %844 = vmatpush1.bf16.msra.mxu0 %v826
    %845 = vmatprep.subr.bf16.mxu0 0
    %846 = vmatpush1.bf16.msra.mxu0 %v827
    %847 = vmatprep.subr.bf16.mxu0 0
    %848 = vmatpush1.bf16.msra.mxu0 %v828
    %849 = vmatprep.subr.bf16.mxu0 0
    %850 = vmatpush1.bf16.msra.mxu0 %v829
    %851 = vmatprep.subr.bf16.mxu0 0
    %852 = vmatpush1.bf16.msra.mxu0 %v830
    %853 = vmatprep.subr.bf16.mxu0 0
    %854 = vmatpush1.bf16.msra.mxu0 %v831
    %855 = vmatprep.subr.bf16.mxu0 0
    %856 = vmatpush1.bf16.msra.mxu0 %v832
    %857 = vmatprep.subr.bf16.mxu0 0
    %858 = vmatpush1.bf16.msra.mxu0 0
    %859 = vmatprep.subr.bf16.mxu0 0
    %860 = vmatpush1.bf16.msra.mxu0 0
    %861 = vmatprep.subr.bf16.mxu0 0
    %862 = vmatpush1.bf16.msra.mxu0 0
    %863 = vmatprep.subr.bf16.mxu0 0
    %864 = vmatpush1.bf16.msra.mxu0 0
    %865 = vmatprep.subr.bf16.mxu0 0
    %866 = vmatpush1.bf16.msra.mxu0 0
    %867 = vmatprep.subr.bf16.mxu0 0
    %868 = vmatpush1.bf16.msra.mxu0 0
    %869 = vmatprep.subr.bf16.mxu0 0
    %870 = vmatpush1.bf16.msra.mxu0 0
    %871 = vmatprep.subr.bf16.mxu0 0
    %872 = vmatpush1.bf16.msra.mxu0 0
    %873 = vmatprep.mubr.bf16.mxu0 0
    %874 = vmatmul.mubr.bf16.gmra.mrb[0].mxu0 %v775
    %v875 = vpop.f32.mrb[0].mxu0
    %v876 = vadd.f32 %v792, %v875
    %v877 = vpop.f32.mrb[0].mxu0
    %v878 = vpop.f32.mrb[0].mxu0
    %v879 = vpop.f32.mrb[0].mxu0
    %880 = vdwg.mxu0
    %v881 = vmax.f32 %v876, 0.0
    %v882 = vpack.c.bf16 %v881, %v881
    %v883 = vld [vmem:[%s3] sm:$0xf]
    %v884 = vld [vmem:[%s3 + $0x8] sm:$0xf]
    %v885 = vld [vmem:[%s3 + $0x10] sm:$0xf]
    %v886 = vld [vmem:[%s3 + $0x18] sm:$0xf]
    %v891 = vunpack.c.l.b16 %v883
    %v892 = vunpack.c.l.b16 %v884
    %v893 = vunpack.c.l.b16 %v885
    %v894 = vunpack.c.l.b16 %v886
    %v895 = vpack.c.b16 %v892, %v891
    %v896 = vpack.c.b16 %v894, %v893
    %vm899 = vcmask 261120
    %v901 = vsel %vm899, %v882, 0
    %903 = vmatprep.subr.bf16.mxu0 0
    %904 = vmatpush1.bf16.msra.mxu0 %v895
    %905 = vmatprep.subr.bf16.mxu0 0
    %906 = vmatpush1.bf16.msra.mxu0 %v896
    %907 = vmatprep.subr.bf16.mxu0 0
    %908 = vmatpush1.bf16.msra.mxu0 0
    %909 = vmatprep.subr.bf16.mxu0 0
    %910 = vmatpush1.bf16.msra.mxu0 0
    %911 = vmatprep.subr.bf16.mxu0 0
    %912 = vmatpush1.bf16.msra.mxu0 0
    %913 = vmatprep.subr.bf16.mxu0 0
    %914 = vmatpush1.bf16.msra.mxu0 0
    %915 = vmatprep.subr.bf16.mxu0 0
    %916 = vmatpush1.bf16.msra.mxu0 0
    %917 = vmatprep.subr.bf16.mxu0 0
    %918 = vmatpush1.bf16.msra.mxu0 0
    %919 = vmatprep.subr.bf16.mxu0 0
    %920 = vmatpush1.bf16.msra.mxu0 0
    %921 = vmatprep.subr.bf16.mxu0 0
    %922 = vmatpush1.bf16.msra.mxu0 0
    %923 = vmatprep.subr.bf16.mxu0 0
    %924 = vmatpush1.bf16.msra.mxu0 0
    %925 = vmatprep.subr.bf16.mxu0 0
    %926 = vmatpush1.bf16.msra.mxu0 0
    %927 = vmatprep.subr.bf16.mxu0 0
    %928 = vmatpush1.bf16.msra.mxu0 0
    %929 = vmatprep.subr.bf16.mxu0 0
    %930 = vmatpush1.bf16.msra.mxu0 0
    %931 = vmatprep.subr.bf16.mxu0 0
    %932 = vmatpush1.bf16.msra.mxu0 0
    %933 = vmatprep.subr.bf16.mxu0 0
    %934 = vmatpush1.bf16.msra.mxu0 0
    %935 = vmatprep.mubr.bf16.mxu0 0
    %936 = vmatmul.mubr.bf16.gmra.mrb[0].mxu0 %v901
    %v937 = vpop.f32.mrb[0].mxu0
    %v938 = vadd.f32 0.0, %v937
    %v939 = vpop.f32.mrb[0].mxu0
    %v940 = vpop.f32.mrb[0].mxu0
    %v941 = vpop.f32.mrb[0].mxu0
    %942 = vdwg.mxu0
    %v943 = vld [vmem:[%s4 + $0x20] sm:$0xff]
    %v945 = vsel %vm899, %v881, 0
    %v948 = vsel %vm899, %v943, 0
    %950 = vmatprep.subr.mxu0 0.0
    %951 = vmatpush1.xpose.msra.mxu0 %v948
    %952 = vmatprep.subr.mxu0 0.0
    %953 = vmatpush1.xpose.msra.mxu0 0.0
    %954 = vmatprep.subr.mxu0 0.0
    %955 = vmatpush1.xpose.msra.mxu0 0.0
    %956 = vmatprep.subr.mxu0 0.0
    %957 = vmatpush1.xpose.msra.mxu0 0.0
    %958 = vmatprep.subr.mxu0 0.0
    %959 = vmatpush1.xpose.msra.mxu0 0.0
    %960 = vmatprep.subr.mxu0 0.0
    %961 = vmatpush1.xpose.msra.mxu0 0.0
    %962 = vmatprep.subr.mxu0 0.0
    %963 = vmatpush1.xpose.msra.mxu0 0.0
    %964 = vmatprep.subr.mxu0 0.0
    %965 = vmatpush1.xpose.msra.mxu0 0.0
    %966 = vmatprep.subr.mxu0 0.0
    %967 = vmatpush1.xpose.msra.mxu0 0.0
    %968 = vmatprep.subr.mxu0 0.0
    %969 = vmatpush1.xpose.msra.mxu0 0.0
    %970 = vmatprep.subr.mxu0 0.0
    %971 = vmatpush1.xpose.msra.mxu0 0.0
    %972 = vmatprep.subr.mxu0 0.0
    %973 = vmatpush1.xpose.msra.mxu0 0.0
    %974 = vmatprep.subr.mxu0 0.0
    %975 = vmatpush1.xpose.msra.mxu0 0.0
    %976 = vmatprep.subr.mxu0 0.0
    %977 = vmatpush1.xpose.msra.mxu0 0.0
    %978 = vmatprep.subr.mxu0 0.0
    %979 = vmatpush1.xpose.msra.mxu0 0.0
    %980 = vmatprep.subr.mxu0 0.0
    %981 = vmatpush1.xpose.msra.mxu0 0.0
    %982 = vmatprep.subr.mxu0 0.0
    %983 = vmatpush1.xpose.msra.mxu0 0.0
    %984 = vmatprep.subr.mxu0 0.0
    %985 = vmatpush1.xpose.msra.mxu0 0.0
    %986 = vmatprep.subr.mxu0 0.0
    %987 = vmatpush1.xpose.msra.mxu0 0.0
    %988 = vmatprep.subr.mxu0 0.0
    %989 = vmatpush1.xpose.msra.mxu0 0.0
    %990 = vmatprep.subr.mxu0 0.0
    %991 = vmatpush1.xpose.msra.mxu0 0.0
    %992 = vmatprep.subr.mxu0 0.0
    %993 = vmatpush1.xpose.msra.mxu0 0.0
    %994 = vmatprep.subr.mxu0 0.0
    %995 = vmatpush1.xpose.msra.mxu0 0.0
    %996 = vmatprep.subr.mxu0 0.0
    %997 = vmatpush1.xpose.msra.mxu0 0.0
    %998 = vmatprep.subr.mxu0 0.0
    %999 = vmatpush1.xpose.msra.mxu0 0.0
    %1000 = vmatprep.subr.mxu0 0.0
    %1001 = vmatpush1.xpose.msra.mxu0 0.0
    %1002 = vmatprep.subr.mxu0 0.0
    %1003 = vmatpush1.xpose.msra.mxu0 0.0
    %1004 = vmatprep.subr.mxu0 0.0
    %1005 = vmatpush1.xpose.msra.mxu0 0.0
    %1006 = vmatprep.subr.mxu0 0.0
    %1007 = vmatpush1.xpose.msra.mxu0 0.0
    %1008 = vmatprep.subr.mxu0 0.0
    %1009 = vmatpush1.xpose.msra.mxu0 0.0
    %1010 = vmatprep.subr.mxu0 0.0
    %1011 = vmatpush1.xpose.msra.mxu0 0.0
    %1012 = vmatprep.subr.mxu0 0.0
    %1013 = vmatpush1.xpose.msra.mxu0 0.0
    %1014 = vmatprep.mubr.f32.mxu0 0.0
    %1015 = vmatmul.mubr.f32.gmra.mrb[0].mxu0 %v945
    %v1016 = vpop.f32.mrb[0].mxu0
    %v1017 = vadd.f32 0.0, %v1016
    %v1018 = vpop.f32.mrb[0].mxu0
    %1019 = vdwg.mxu0
    %v1020 = vrot.slane %v943, 4
    %v1021 = vsel %vm899, %v1020, 0
    %1023 = vmatprep.subr.mxu0 0.0
    %1024 = vmatpush1.xpose.msra.mxu0 %v945
    %1025 = vmatprep.subr.mxu0 0.0
    %1026 = vmatpush1.xpose.msra.mxu0 0.0
    %1027 = vmatprep.subr.mxu0 0.0
    %1028 = vmatpush1.xpose.msra.mxu0 0.0
    %1029 = vmatprep.subr.mxu0 0.0
    %1030 = vmatpush1.xpose.msra.mxu0 0.0
    %1031 = vmatprep.subr.mxu0 0.0
    %1032 = vmatpush1.xpose.msra.mxu0 0.0
    %1033 = vmatprep.subr.mxu0 0.0
    %1034 = vmatpush1.xpose.msra.mxu0 0.0
    %1035 = vmatprep.subr.mxu0 0.0
    %1036 = vmatpush1.xpose.msra.mxu0 0.0
    %1037 = vmatprep.subr.mxu0 0.0
    %1038 = vmatpush1.xpose.msra.mxu0 0.0
    %1039 = vmatprep.subr.mxu0 0.0
    %1040 = vmatpush1.xpose.msra.mxu0 0.0
    %1041 = vmatprep.subr.mxu0 0.0
    %1042 = vmatpush1.xpose.msra.mxu0 0.0
    %1043 = vmatprep.subr.mxu0 0.0
    %1044 = vmatpush1.xpose.msra.mxu0 0.0
    %1045 = vmatprep.subr.mxu0 0.0
    %1046 = vmatpush1.xpose.msra.mxu0 0.0
    %1047 = vmatprep.subr.mxu0 0.0
    %1048 = vmatpush1.xpose.msra.mxu0 0.0
    %1049 = vmatprep.subr.mxu0 0.0
    %1050 = vmatpush1.xpose.msra.mxu0 0.0
    %1051 = vmatprep.subr.mxu0 0.0
    %1052 = vmatpush1.xpose.msra.mxu0 0.0
    %1053 = vmatprep.subr.mxu0 0.0
    %1054 = vmatpush1.xpose.msra.mxu0 0.0
    %1055 = vmatprep.subr.mxu0 0.0
    %1056 = vmatpush1.xpose.msra.mxu0 0.0
    %1057 = vmatprep.subr.mxu0 0.0
    %1058 = vmatpush1.xpose.msra.mxu0 0.0
    %1059 = vmatprep.subr.mxu0 0.0
    %1060 = vmatpush1.xpose.msra.mxu0 0.0
    %1061 = vmatprep.subr.mxu0 0.0
    %1062 = vmatpush1.xpose.msra.mxu0 0.0
    %1063 = vmatprep.subr.mxu0 0.0
    %1064 = vmatpush1.xpose.msra.mxu0 0.0
    %1065 = vmatprep.subr.mxu0 0.0
    %1066 = vmatpush1.xpose.msra.mxu0 0.0
    %1067 = vmatprep.subr.mxu0 0.0
    %1068 = vmatpush1.xpose.msra.mxu0 0.0
    %1069 = vmatprep.subr.mxu0 0.0
    %1070 = vmatpush1.xpose.msra.mxu0 0.0
    %1071 = vmatprep.subr.mxu0 0.0
    %1072 = vmatpush1.xpose.msra.mxu0 0.0
    %1073 = vmatprep.subr.mxu0 0.0
    %1074 = vmatpush1.xpose.msra.mxu0 0.0
    %1075 = vmatprep.subr.mxu0 0.0
    %1076 = vmatpush1.xpose.msra.mxu0 0.0
    %1077 = vmatprep.subr.mxu0 0.0
    %1078 = vmatpush1.xpose.msra.mxu0 0.0
    %1079 = vmatprep.subr.mxu0 0.0
    %1080 = vmatpush1.xpose.msra.mxu0 0.0
    %1081 = vmatprep.subr.mxu0 0.0
    %1082 = vmatpush1.xpose.msra.mxu0 0.0
    %1083 = vmatprep.subr.mxu0 0.0
    %1084 = vmatpush1.xpose.msra.mxu0 0.0
    %1085 = vmatprep.subr.mxu0 0.0
    %1086 = vmatpush1.xpose.msra.mxu0 0.0
    %1087 = vmatprep.mubr.f32.mxu0 0.0
    %1088 = vmatmul.mubr.f32.gmra.mrb[0].mxu0 %v1021
    %v1089 = vpop.f32.mrb[0].mxu0
    %v1090 = vadd.f32 0.0, %v1089
    %v1091 = vpop.f32.mrb[0].mxu0
    %1092 = vdwg.mxu0
    %v1093 = vld [vmem:[%s1] sm:$0xff]
    %vm1094 = vcmp.gt.f32.partialorder %v1093, 0.0
    %1096 = vset.pattern.permute.xlu0 0
    %1097 = vperm.xlu0 %1096, %v1017
    %v1098 = vpop.permute.xlu0 %1097
    %v1100 = vlaneseq
    %v1101 = vshrl.u32 %v1100, 7
    %v1102 = vsub.s32 0, %v1101
    %v1103 = vrot.slane %v1090, %v1102
    %v1104 = vadd.f32 %v1098, %v1103
    %vm1105 = vcmp.gt.f32.partialorder %v1104, 0.0
    %v1106 = vmul.f32 %v1104, 0.2
    %v1107 = vsel %vm1105, %v1104, %v1106
    %v1108 = vsel %vm1094, %v1107, -1e+30
    %vm1109 = vcmask 64512
    %v1110 = vsel %vm1109, %v1108, -inf
    %1111 = vmax.xlane.f32.xlu0 %v1110
    %v1112 = vpop.xlane.xlu0 %1111
    %v1113 = vsub.f32 %v1108, %v1112
    %v1114 = vmul.f32 %v1113, 1.442695
    %v1115 = vpow.pop %v1114
    %v1116 = vsel %vm1109, %v1115, 0.0
    %1117 = vadd.xlane.f32.xlu0 %v1116
    %v1118 = vpop.xlane.xlu0 %1117
    %v1119 = vrcp.pop %v1118
    %v1120 = vmul.f32 %v1115, %v1119
    %v1122 = vsel %vm1109, %v1120, 0
    %1124 = vmatprep.subr.mxu0 0.0
    %1125 = vmatpush1.msra.mxu0 %v938
    %1126 = vmatprep.subr.mxu0 0.0
    %1127 = vmatpush1.msra.mxu0 0.0
    %1128 = vmatprep.subr.mxu0 0.0
    %1129 = vmatpush1.msra.mxu0 0.0
    %1130 = vmatprep.subr.mxu0 0.0
    %1131 = vmatpush1.msra.mxu0 0.0
    %1132 = vmatprep.subr.mxu0 0.0
    %1133 = vmatpush1.msra.mxu0 0.0
    %1134 = vmatprep.subr.mxu0 0.0
    %1135 = vmatpush1.msra.mxu0 0.0
    %1136 = vmatprep.subr.mxu0 0.0
    %1137 = vmatpush1.msra.mxu0 0.0
    %1138 = vmatprep.subr.mxu0 0.0
    %1139 = vmatpush1.msra.mxu0 0.0
    %1140 = vmatprep.subr.mxu0 0.0
    %1141 = vmatpush1.msra.mxu0 0.0
    %1142 = vmatprep.subr.mxu0 0.0
    %1143 = vmatpush1.msra.mxu0 0.0
    %1144 = vmatprep.subr.mxu0 0.0
    %1145 = vmatpush1.msra.mxu0 0.0
    %1146 = vmatprep.subr.mxu0 0.0
    %1147 = vmatpush1.msra.mxu0 0.0
    %1148 = vmatprep.subr.mxu0 0.0
    %1149 = vmatpush1.msra.mxu0 0.0
    %1150 = vmatprep.subr.mxu0 0.0
    %1151 = vmatpush1.msra.mxu0 0.0
    %1152 = vmatprep.subr.mxu0 0.0
    %1153 = vmatpush1.msra.mxu0 0.0
    %1154 = vmatprep.subr.mxu0 0.0
    %1155 = vmatpush1.msra.mxu0 0.0
    %1156 = vmatprep.subr.mxu0 0.0
    %1157 = vmatpush1.msra.mxu0 0.0
    %1158 = vmatprep.subr.mxu0 0.0
    %1159 = vmatpush1.msra.mxu0 0.0
    %1160 = vmatprep.subr.mxu0 0.0
    %1161 = vmatpush1.msra.mxu0 0.0
    %1162 = vmatprep.subr.mxu0 0.0
    %1163 = vmatpush1.msra.mxu0 0.0
    %1164 = vmatprep.subr.mxu0 0.0
    %1165 = vmatpush1.msra.mxu0 0.0
    %1166 = vmatprep.subr.mxu0 0.0
    %1167 = vmatpush1.msra.mxu0 0.0
    %1168 = vmatprep.subr.mxu0 0.0
    %1169 = vmatpush1.msra.mxu0 0.0
    %1170 = vmatprep.subr.mxu0 0.0
    %1171 = vmatpush1.msra.mxu0 0.0
    %1172 = vmatprep.subr.mxu0 0.0
    %1173 = vmatpush1.msra.mxu0 0.0
    %1174 = vmatprep.subr.mxu0 0.0
    %1175 = vmatpush1.msra.mxu0 0.0
    %1176 = vmatprep.subr.mxu0 0.0
    %1177 = vmatpush1.msra.mxu0 0.0
    %1178 = vmatprep.subr.mxu0 0.0
    %1179 = vmatpush1.msra.mxu0 0.0
    %1180 = vmatprep.subr.mxu0 0.0
    %1181 = vmatpush1.msra.mxu0 0.0
    %1182 = vmatprep.subr.mxu0 0.0
    %1183 = vmatpush1.msra.mxu0 0.0
    %1184 = vmatprep.subr.mxu0 0.0
    %1185 = vmatpush1.msra.mxu0 0.0
    %1186 = vmatprep.subr.mxu0 0.0
    %1187 = vmatpush1.msra.mxu0 0.0
    %1188 = vmatprep.mubr.f32.mxu0 0.0
    %1189 = vmatmul.mubr.f32.gmra.mrb[0].mxu0 %v1122
    %v1190 = vpop.f32.mrb[0].mxu0
    %v1191 = vadd.f32 0.0, %v1190
    %v1192 = vpop.f32.mrb[0].mxu0
    %1193 = vdwg.mxu0
    %1194 = vst.msk [vmem:[#allocation2] sm:$0xff] %vm899, %v1191
    %1195 = vset.pattern.permute.xlu0 1
    %1196 = vperm.xlu0 %1195, %v1017
    %v1197 = vpop.permute.xlu0 %1196
    %v1199 = vlaneseq
    %v1200 = vshrl.u32 %v1199, 7
    %v1201 = vsub.s32 1, %v1200
    %v1202 = vrot.slane %v1090, %v1201
    %v1203 = vadd.f32 %v1197, %v1202
    %vm1204 = vcmp.gt.f32.partialorder %v1203, 0.0
    %v1205 = vmul.f32 %v1203, 0.2
    %v1206 = vsel %vm1204, %v1203, %v1205
    %v1207 = vsel %vm1094, %v1206, -1e+30
    %v1208 = vsel %vm1109, %v1207, -inf
    %1209 = vmax.xlane.f32.xlu0 %v1208
    %v1210 = vpop.xlane.xlu0 %1209
    %v1211 = vsub.f32 %v1207, %v1210
    %v1212 = vmul.f32 %v1211, 1.442695
    %v1213 = vpow.pop %v1212
    %v1214 = vsel %vm1109, %v1213, 0.0
    %1215 = vadd.xlane.f32.xlu0 %v1214
    %v1216 = vpop.xlane.xlu0 %1215
    %v1217 = vrcp.pop %v1216
    %v1218 = vmul.f32 %v1213, %v1217
    %1220 = vrot.lane.b32.xlu0 %v938, 96
    %v1221 = vpop.permute.xlu0 %1220
    %v1224 = vsel %vm1109, %v1218, 0
    %1226 = vmatprep.subr.mxu0 0.0
    %1227 = vmatpush1.msra.mxu0 %v1221
    %1228 = vmatprep.subr.mxu0 0.0
    %1229 = vmatpush1.msra.mxu0 0.0
    %1230 = vmatprep.subr.mxu0 0.0
    %1231 = vmatpush1.msra.mxu0 0.0
    %1232 = vmatprep.subr.mxu0 0.0
    %1233 = vmatpush1.msra.mxu0 0.0
    %1234 = vmatprep.subr.mxu0 0.0
    %1235 = vmatpush1.msra.mxu0 0.0
    %1236 = vmatprep.subr.mxu0 0.0
    %1237 = vmatpush1.msra.mxu0 0.0
    %1238 = vmatprep.subr.mxu0 0.0
    %1239 = vmatpush1.msra.mxu0 0.0
    %1240 = vmatprep.subr.mxu0 0.0
    %1241 = vmatpush1.msra.mxu0 0.0
    %1242 = vmatprep.subr.mxu0 0.0
    %1243 = vmatpush1.msra.mxu0 0.0
    %1244 = vmatprep.subr.mxu0 0.0
    %1245 = vmatpush1.msra.mxu0 0.0
    %1246 = vmatprep.subr.mxu0 0.0
    %1247 = vmatpush1.msra.mxu0 0.0
    %1248 = vmatprep.subr.mxu0 0.0
    %1249 = vmatpush1.msra.mxu0 0.0
    %1250 = vmatprep.subr.mxu0 0.0
    %1251 = vmatpush1.msra.mxu0 0.0
    %1252 = vmatprep.subr.mxu0 0.0
    %1253 = vmatpush1.msra.mxu0 0.0
    %1254 = vmatprep.subr.mxu0 0.0
    %1255 = vmatpush1.msra.mxu0 0.0
    %1256 = vmatprep.subr.mxu0 0.0
    %1257 = vmatpush1.msra.mxu0 0.0
    %1258 = vmatprep.subr.mxu0 0.0
    %1259 = vmatpush1.msra.mxu0 0.0
    %1260 = vmatprep.subr.mxu0 0.0
    %1261 = vmatpush1.msra.mxu0 0.0
    %1262 = vmatprep.subr.mxu0 0.0
    %1263 = vmatpush1.msra.mxu0 0.0
    %1264 = vmatprep.subr.mxu0 0.0
    %1265 = vmatpush1.msra.mxu0 0.0
    %1266 = vmatprep.subr.mxu0 0.0
    %1267 = vmatpush1.msra.mxu0 0.0
    %1268 = vmatprep.subr.mxu0 0.0
    %1269 = vmatpush1.msra.mxu0 0.0
    %1270 = vmatprep.subr.mxu0 0.0
    %1271 = vmatpush1.msra.mxu0 0.0
    %1272 = vmatprep.subr.mxu0 0.0
    %1273 = vmatpush1.msra.mxu0 0.0
    %1274 = vmatprep.subr.mxu0 0.0
    %1275 = vmatpush1.msra.mxu0 0.0
    %1276 = vmatprep.subr.mxu0 0.0
    %1277 = vmatpush1.msra.mxu0 0.0
    %1278 = vmatprep.subr.mxu0 0.0
    %1279 = vmatpush1.msra.mxu0 0.0
    %1280 = vmatprep.subr.mxu0 0.0
    %1281 = vmatpush1.msra.mxu0 0.0
    %1282 = vmatprep.subr.mxu0 0.0
    %1283 = vmatpush1.msra.mxu0 0.0
    %1284 = vmatprep.subr.mxu0 0.0
    %1285 = vmatpush1.msra.mxu0 0.0
    %1286 = vmatprep.subr.mxu0 0.0
    %1287 = vmatpush1.msra.mxu0 0.0
    %1288 = vmatprep.subr.mxu0 0.0
    %1289 = vmatpush1.msra.mxu0 0.0
    %1290 = vmatprep.mubr.f32.mxu0 0.0
    %1291 = vmatmul.mubr.f32.gmra.mrb[0].mxu0 %v1224
    %v1292 = vpop.f32.mrb[0].mxu0
    %v1293 = vadd.f32 0.0, %v1292
    %v1294 = vpop.f32.mrb[0].mxu0
    %1295 = vdwg.mxu0
    %1297 = vrot.lane.b32.xlu0 %v1293, 32
    %v1298 = vpop.permute.xlu0 %1297
    %vm1300 = vcmask 523520
    %1301 = vst.msk [vmem:[#allocation2] sm:$0xff] %vm1300, %v1298
    %1302 = vset.pattern.permute.xlu0 2
    %1303 = vperm.xlu0 %1302, %v1017
    %v1304 = vpop.permute.xlu0 %1303
    %v1306 = vlaneseq
    %v1307 = vshrl.u32 %v1306, 7
    %v1308 = vsub.s32 2, %v1307
    %v1309 = vrot.slane %v1090, %v1308
    %v1310 = vadd.f32 %v1304, %v1309
    %vm1311 = vcmp.gt.f32.partialorder %v1310, 0.0
    %v1312 = vmul.f32 %v1310, 0.2
    %v1313 = vsel %vm1311, %v1310, %v1312
    %v1314 = vsel %vm1094, %v1313, -1e+30
    %v1315 = vsel %vm1109, %v1314, -inf
    %1316 = vmax.xlane.f32.xlu0 %v1315
    %v1317 = vpop.xlane.xlu0 %1316
    %v1318 = vsub.f32 %v1314, %v1317
    %v1319 = vmul.f32 %v1318, 1.442695
    %v1320 = vpow.pop %v1319
    %v1321 = vsel %vm1109, %v1320, 0.0
    %1322 = vadd.xlane.f32.xlu0 %v1321
    %v1323 = vpop.xlane.xlu0 %1322
    %v1324 = vrcp.pop %v1323
    %v1325 = vmul.f32 %v1320, %v1324
    %1326 = vrot.lane.b32.xlu0 %v938, 64
    %v1327 = vpop.permute.xlu0 %1326
    %v1330 = vsel %vm1109, %v1325, 0
    %1332 = vmatprep.subr.mxu0 0.0
    %1333 = vmatpush1.msra.mxu0 %v1327
    %1334 = vmatprep.subr.mxu0 0.0
    %1335 = vmatpush1.msra.mxu0 0.0
    %1336 = vmatprep.subr.mxu0 0.0
    %1337 = vmatpush1.msra.mxu0 0.0
    %1338 = vmatprep.subr.mxu0 0.0
    %1339 = vmatpush1.msra.mxu0 0.0
    %1340 = vmatprep.subr.mxu0 0.0
    %1341 = vmatpush1.msra.mxu0 0.0
    %1342 = vmatprep.subr.mxu0 0.0
    %1343 = vmatpush1.msra.mxu0 0.0
    %1344 = vmatprep.subr.mxu0 0.0
    %1345 = vmatpush1.msra.mxu0 0.0
    %1346 = vmatprep.subr.mxu0 0.0
    %1347 = vmatpush1.msra.mxu0 0.0
    %1348 = vmatprep.subr.mxu0 0.0
    %1349 = vmatpush1.msra.mxu0 0.0
    %1350 = vmatprep.subr.mxu0 0.0
    %1351 = vmatpush1.msra.mxu0 0.0
    %1352 = vmatprep.subr.mxu0 0.0
    %1353 = vmatpush1.msra.mxu0 0.0
    %1354 = vmatprep.subr.mxu0 0.0
    %1355 = vmatpush1.msra.mxu0 0.0
    %1356 = vmatprep.subr.mxu0 0.0
    %1357 = vmatpush1.msra.mxu0 0.0
    %1358 = vmatprep.subr.mxu0 0.0
    %1359 = vmatpush1.msra.mxu0 0.0
    %1360 = vmatprep.subr.mxu0 0.0
    %1361 = vmatpush1.msra.mxu0 0.0
    %1362 = vmatprep.subr.mxu0 0.0
    %1363 = vmatpush1.msra.mxu0 0.0
    %1364 = vmatprep.subr.mxu0 0.0
    %1365 = vmatpush1.msra.mxu0 0.0
    %1366 = vmatprep.subr.mxu0 0.0
    %1367 = vmatpush1.msra.mxu0 0.0
    %1368 = vmatprep.subr.mxu0 0.0
    %1369 = vmatpush1.msra.mxu0 0.0
    %1370 = vmatprep.subr.mxu0 0.0
    %1371 = vmatpush1.msra.mxu0 0.0
    %1372 = vmatprep.subr.mxu0 0.0
    %1373 = vmatpush1.msra.mxu0 0.0
    %1374 = vmatprep.subr.mxu0 0.0
    %1375 = vmatpush1.msra.mxu0 0.0
    %1376 = vmatprep.subr.mxu0 0.0
    %1377 = vmatpush1.msra.mxu0 0.0
    %1378 = vmatprep.subr.mxu0 0.0
    %1379 = vmatpush1.msra.mxu0 0.0
    %1380 = vmatprep.subr.mxu0 0.0
    %1381 = vmatpush1.msra.mxu0 0.0
    %1382 = vmatprep.subr.mxu0 0.0
    %1383 = vmatpush1.msra.mxu0 0.0
    %1384 = vmatprep.subr.mxu0 0.0
    %1385 = vmatpush1.msra.mxu0 0.0
    %1386 = vmatprep.subr.mxu0 0.0
    %1387 = vmatpush1.msra.mxu0 0.0
    %1388 = vmatprep.subr.mxu0 0.0
    %1389 = vmatpush1.msra.mxu0 0.0
    %1390 = vmatprep.subr.mxu0 0.0
    %1391 = vmatpush1.msra.mxu0 0.0
    %1392 = vmatprep.subr.mxu0 0.0
    %1393 = vmatpush1.msra.mxu0 0.0
    %1394 = vmatprep.subr.mxu0 0.0
    %1395 = vmatpush1.msra.mxu0 0.0
    %1396 = vmatprep.mubr.f32.mxu0 0.0
    %1397 = vmatmul.mubr.f32.gmra.mrb[0].mxu0 %v1330
    %v1398 = vpop.f32.mrb[0].mxu0
    %v1399 = vadd.f32 0.0, %v1398
    %v1400 = vpop.f32.mrb[0].mxu0
    %1401 = vdwg.mxu0
    %1403 = vrot.lane.b32.xlu0 %v1399, 64
    %v1404 = vpop.permute.xlu0 %1403
    %vm1406 = vcmask 785920
    %1407 = vst.msk [vmem:[#allocation2] sm:$0xff] %vm1406, %v1404
    %1408 = vset.pattern.permute.xlu0 3
    %1409 = vperm.xlu0 %1408, %v1017
    %v1410 = vpop.permute.xlu0 %1409
    %v1412 = vlaneseq
    %v1413 = vshrl.u32 %v1412, 7
    %v1414 = vsub.s32 3, %v1413
    %v1415 = vrot.slane %v1090, %v1414
    %v1416 = vadd.f32 %v1410, %v1415
    %vm1417 = vcmp.gt.f32.partialorder %v1416, 0.0
    %v1418 = vmul.f32 %v1416, 0.2
    %v1419 = vsel %vm1417, %v1416, %v1418
    %v1420 = vsel %vm1094, %v1419, -1e+30
    %v1421 = vsel %vm1109, %v1420, -inf
    %1422 = vmax.xlane.f32.xlu0 %v1421
    %v1423 = vpop.xlane.xlu0 %1422
    %v1424 = vsub.f32 %v1420, %v1423
    %v1425 = vmul.f32 %v1424, 1.442695
    %v1426 = vpow.pop %v1425
    %v1427 = vsel %vm1109, %v1426, 0.0
    %1428 = vadd.xlane.f32.xlu0 %v1427
    %v1429 = vpop.xlane.xlu0 %1428
    %v1430 = vrcp.pop %v1429
    %v1431 = vmul.f32 %v1426, %v1430
    %1432 = vrot.lane.b32.xlu0 %v938, 32
    %v1433 = vpop.permute.xlu0 %1432
    %v1436 = vsel %vm1109, %v1431, 0
    %1438 = vmatprep.subr.mxu0 0.0
    %1439 = vmatpush1.msra.mxu0 %v1433
    %1440 = vmatprep.subr.mxu0 0.0
    %1441 = vmatpush1.msra.mxu0 0.0
    %1442 = vmatprep.subr.mxu0 0.0
    %1443 = vmatpush1.msra.mxu0 0.0
    %1444 = vmatprep.subr.mxu0 0.0
    %1445 = vmatpush1.msra.mxu0 0.0
    %1446 = vmatprep.subr.mxu0 0.0
    %1447 = vmatpush1.msra.mxu0 0.0
    %1448 = vmatprep.subr.mxu0 0.0
    %1449 = vmatpush1.msra.mxu0 0.0
    %1450 = vmatprep.subr.mxu0 0.0
    %1451 = vmatpush1.msra.mxu0 0.0
    %1452 = vmatprep.subr.mxu0 0.0
    %1453 = vmatpush1.msra.mxu0 0.0
    %1454 = vmatprep.subr.mxu0 0.0
    %1455 = vmatpush1.msra.mxu0 0.0
    %1456 = vmatprep.subr.mxu0 0.0
    %1457 = vmatpush1.msra.mxu0 0.0
    %1458 = vmatprep.subr.mxu0 0.0
    %1459 = vmatpush1.msra.mxu0 0.0
    %1460 = vmatprep.subr.mxu0 0.0
    %1461 = vmatpush1.msra.mxu0 0.0
    %1462 = vmatprep.subr.mxu0 0.0
    %1463 = vmatpush1.msra.mxu0 0.0
    %1464 = vmatprep.subr.mxu0 0.0
    %1465 = vmatpush1.msra.mxu0 0.0
    %1466 = vmatprep.subr.mxu0 0.0
    %1467 = vmatpush1.msra.mxu0 0.0
    %1468 = vmatprep.subr.mxu0 0.0
    %1469 = vmatpush1.msra.mxu0 0.0
    %1470 = vmatprep.subr.mxu0 0.0
    %1471 = vmatpush1.msra.mxu0 0.0
    %1472 = vmatprep.subr.mxu0 0.0
    %1473 = vmatpush1.msra.mxu0 0.0
    %1474 = vmatprep.subr.mxu0 0.0
    %1475 = vmatpush1.msra.mxu0 0.0
    %1476 = vmatprep.subr.mxu0 0.0
    %1477 = vmatpush1.msra.mxu0 0.0
    %1478 = vmatprep.subr.mxu0 0.0
    %1479 = vmatpush1.msra.mxu0 0.0
    %1480 = vmatprep.subr.mxu0 0.0
    %1481 = vmatpush1.msra.mxu0 0.0
    %1482 = vmatprep.subr.mxu0 0.0
    %1483 = vmatpush1.msra.mxu0 0.0
    %1484 = vmatprep.subr.mxu0 0.0
    %1485 = vmatpush1.msra.mxu0 0.0
    %1486 = vmatprep.subr.mxu0 0.0
    %1487 = vmatpush1.msra.mxu0 0.0
    %1488 = vmatprep.subr.mxu0 0.0
    %1489 = vmatpush1.msra.mxu0 0.0
    %1490 = vmatprep.subr.mxu0 0.0
    %1491 = vmatpush1.msra.mxu0 0.0
    %1492 = vmatprep.subr.mxu0 0.0
    %1493 = vmatpush1.msra.mxu0 0.0
    %1494 = vmatprep.subr.mxu0 0.0
    %1495 = vmatpush1.msra.mxu0 0.0
    %1496 = vmatprep.subr.mxu0 0.0
    %1497 = vmatpush1.msra.mxu0 0.0
    %1498 = vmatprep.subr.mxu0 0.0
    %1499 = vmatpush1.msra.mxu0 0.0
    %1500 = vmatprep.subr.mxu0 0.0
    %1501 = vmatpush1.msra.mxu0 0.0
    %1502 = vmatprep.mubr.f32.mxu0 0.0
    %1503 = vmatmul.mubr.f32.gmra.mrb[0].mxu0 %v1436
    %v1504 = vpop.f32.mrb[0].mxu0
    %v1505 = vadd.f32 0.0, %v1504
    %v1506 = vpop.f32.mrb[0].mxu0
    %1507 = vdwg.mxu0
    %1509 = vrot.lane.b32.xlu0 %v1505, 96
    %v1510 = vpop.permute.xlu0 %1509
    %vm1512 = vcmask 1048320
    %1513 = vst.msk [vmem:[#allocation2] sm:$0xff] %vm1512, %v1510
    %v1514 = vld [vmem:[#allocation2] sm:$0xff]
    %v1515 = vld [vmem:[%s4 + $0x2] ss:$0 sm:$0xff]
    %v1516 = vadd.f32 %v1514, %v1515
    %v1517 = vmax.f32 %v1516, 0.0
    %1519 = vrot.lane.b32.xlu0 %v1517, 64
    %v1520 = vpop.permute.xlu0 %1519
    %v1522 = vadd.f32 %v1517, %v1520
    %v1523 = vpack.c.bf16 %v1522, %v1522
    %v1524 = vld [vmem:[%s3 + $0x20] sm:$0xf]
    %v1525 = vld [vmem:[%s3 + $0x28] sm:$0xf]
    %v1526 = vld [vmem:[%s3 + $0x30] sm:$0xf]
    %v1527 = vld [vmem:[%s3 + $0x38] sm:$0xf]
    %v1528 = vld [vmem:[%s3 + $0x40] sm:$0xf]
    %v1529 = vld [vmem:[%s3 + $0x48] sm:$0xf]
    %v1530 = vld [vmem:[%s3 + $0x50] sm:$0xf]
    %v1531 = vld [vmem:[%s3 + $0x58] sm:$0xf]
    %v1532 = vld [vmem:[%s4 + $0x4] ss:$0 sm:$0xff]
    %v1541 = vunpack.c.l.b16 %v1524
    %v1542 = vunpack.c.l.b16 %v1525
    %v1543 = vunpack.c.l.b16 %v1526
    %v1544 = vunpack.c.l.b16 %v1527
    %v1545 = vunpack.c.l.b16 %v1528
    %v1546 = vunpack.c.l.b16 %v1529
    %v1547 = vunpack.c.l.b16 %v1530
    %v1548 = vunpack.c.l.b16 %v1531
    %v1549 = vpack.c.b16 %v1542, %v1541
    %v1550 = vpack.c.b16 %v1544, %v1543
    %v1551 = vpack.c.b16 %v1546, %v1545
    %v1552 = vpack.c.b16 %v1548, %v1547
    %vm1557 = vcmask 523264
    %v1559 = vsel %vm1557, %v1523, 0
    %1561 = vmatprep.subr.bf16.mxu0 0
    %1562 = vmatpush1.bf16.msra.mxu0 %v1549
    %1563 = vmatprep.subr.bf16.mxu0 0
    %1564 = vmatpush1.bf16.msra.mxu0 %v1550
    %1565 = vmatprep.subr.bf16.mxu0 0
    %1566 = vmatpush1.bf16.msra.mxu0 %v1551
    %1567 = vmatprep.subr.bf16.mxu0 0
    %1568 = vmatpush1.bf16.msra.mxu0 %v1552
    %1569 = vmatprep.subr.bf16.mxu0 0
    %1570 = vmatpush1.bf16.msra.mxu0 0
    %1571 = vmatprep.subr.bf16.mxu0 0
    %1572 = vmatpush1.bf16.msra.mxu0 0
    %1573 = vmatprep.subr.bf16.mxu0 0
    %1574 = vmatpush1.bf16.msra.mxu0 0
    %1575 = vmatprep.subr.bf16.mxu0 0
    %1576 = vmatpush1.bf16.msra.mxu0 0
    %1577 = vmatprep.subr.bf16.mxu0 0
    %1578 = vmatpush1.bf16.msra.mxu0 0
    %1579 = vmatprep.subr.bf16.mxu0 0
    %1580 = vmatpush1.bf16.msra.mxu0 0
    %1581 = vmatprep.subr.bf16.mxu0 0
    %1582 = vmatpush1.bf16.msra.mxu0 0
    %1583 = vmatprep.subr.bf16.mxu0 0
    %1584 = vmatpush1.bf16.msra.mxu0 0
    %1585 = vmatprep.subr.bf16.mxu0 0
    %1586 = vmatpush1.bf16.msra.mxu0 0
    %1587 = vmatprep.subr.bf16.mxu0 0
    %1588 = vmatpush1.bf16.msra.mxu0 0
    %1589 = vmatprep.subr.bf16.mxu0 0
    %1590 = vmatpush1.bf16.msra.mxu0 0
    %1591 = vmatprep.subr.bf16.mxu0 0
    %1592 = vmatpush1.bf16.msra.mxu0 0
    %1593 = vmatprep.mubr.bf16.mxu0 0
    %1594 = vmatmul.mubr.bf16.gmra.mrb[0].mxu0 %v1559
    %v1595 = vpop.f32.mrb[0].mxu0
    %v1596 = vadd.f32 %v1532, %v1595
    %v1597 = vpop.f32.mrb[0].mxu0
    %v1598 = vpop.f32.mrb[0].mxu0
    %v1599 = vpop.f32.mrb[0].mxu0
    %1600 = vdwg.mxu0
    %v1601 = vmax.f32 %v1596, 0.0
    %v1602 = vpack.c.bf16 %v1601, %v1601
    %v1603 = vld [vmem:[%s3 + $0x60] sm:$0xf]
    %v1604 = vld [vmem:[%s3 + $0x68] sm:$0xf]
    %v1605 = vld [vmem:[%s3 + $0x70] sm:$0xf]
    %v1606 = vld [vmem:[%s3 + $0x78] sm:$0xf]
    %v1607 = vld [vmem:[%s4 + $0x5] ss:$0 sm:$0xff]
    %v1612 = vunpack.c.l.b16 %v1603
    %v1613 = vunpack.c.l.b16 %v1604
    %v1614 = vunpack.c.l.b16 %v1605
    %v1615 = vunpack.c.l.b16 %v1606
    %v1616 = vpack.c.b16 %v1613, %v1612
    %v1617 = vpack.c.b16 %v1615, %v1614
    %v1621 = vsel %vm899, %v1602, 0
    %1623 = vmatprep.subr.bf16.mxu0 0
    %1624 = vmatpush1.bf16.msra.mxu0 %v1616
    %1625 = vmatprep.subr.bf16.mxu0 0
    %1626 = vmatpush1.bf16.msra.mxu0 %v1617
    %1627 = vmatprep.subr.bf16.mxu0 0
    %1628 = vmatpush1.bf16.msra.mxu0 0
    %1629 = vmatprep.subr.bf16.mxu0 0
    %1630 = vmatpush1.bf16.msra.mxu0 0
    %1631 = vmatprep.subr.bf16.mxu0 0
    %1632 = vmatpush1.bf16.msra.mxu0 0
    %1633 = vmatprep.subr.bf16.mxu0 0
    %1634 = vmatpush1.bf16.msra.mxu0 0
    %1635 = vmatprep.subr.bf16.mxu0 0
    %1636 = vmatpush1.bf16.msra.mxu0 0
    %1637 = vmatprep.subr.bf16.mxu0 0
    %1638 = vmatpush1.bf16.msra.mxu0 0
    %1639 = vmatprep.subr.bf16.mxu0 0
    %1640 = vmatpush1.bf16.msra.mxu0 0
    %1641 = vmatprep.subr.bf16.mxu0 0
    %1642 = vmatpush1.bf16.msra.mxu0 0
    %1643 = vmatprep.subr.bf16.mxu0 0
    %1644 = vmatpush1.bf16.msra.mxu0 0
    %1645 = vmatprep.subr.bf16.mxu0 0
    %1646 = vmatpush1.bf16.msra.mxu0 0
    %1647 = vmatprep.subr.bf16.mxu0 0
    %1648 = vmatpush1.bf16.msra.mxu0 0
    %1649 = vmatprep.subr.bf16.mxu0 0
    %1650 = vmatpush1.bf16.msra.mxu0 0
    %1651 = vmatprep.subr.bf16.mxu0 0
    %1652 = vmatpush1.bf16.msra.mxu0 0
    %1653 = vmatprep.subr.bf16.mxu0 0
    %1654 = vmatpush1.bf16.msra.mxu0 0
    %1655 = vmatprep.mubr.bf16.mxu0 0
    %1656 = vmatmul.mubr.bf16.gmra.mrb[0].mxu0 %v1621
    %v1657 = vpop.f32.mrb[0].mxu0
    %v1658 = vadd.f32 %v1607, %v1657
    %v1659 = vpop.f32.mrb[0].mxu0
    %v1660 = vpop.f32.mrb[0].mxu0
    %v1661 = vpop.f32.mrb[0].mxu0
    %1662 = vdwg.mxu0
    %vm1663 = vcmask 39936
    %1664 = vst.msk [vmem:[#allocation3] sm:$0xff] %vm1663, %v1658
    // Predicated region
    $region22: #{forward.7} parent=1 // pred_check
      _
    $region23: #{forward.7} parent=1 // pred_check_branch
      %1666 = sbr.rel (0) target = $region25
    $region24: #{forward.7} parent=1 // pred_region
      %s1668 = ssub.s32 128, 128
      %1669 = vsyncadd [#allocation4], %s1668
      %s1671 = sshll.u32 [#allocation3], 4
      %s1672 = int_to_ptr.vmem [resolvable:$true] %s1671
      %1674 = dma.vmem_to_hbm [thread:$0]  %s1672, 128, %s5, [#allocation4]
    $region25: #{forward.7} parent=1 // pred_fallthru
      _
    // Predicated region
    $region26: #{forward.7} parent=1 // pred_check
      _
    $region27: #{forward.7} parent=1 // pred_check_branch
      %1676 = sbr.rel (0) target = $region29
    $region28: #{forward.7} parent=1 // pred_region
      %1677 = dma.done [#allocation4], 128
    $region29: #{forward.7} parent=1 // pred_fallthru
      _
    %1678 = vsyncpa [#allocation4], 1

</llo_original>
